<compile_context>
chip_gen: v7x
topology: tpu7x:2x2x1
jax: 0.10.0
libtpu: 0.0.40
codegen_flags: <defaults>
</compile_context>

<pallas_src>
import math

import jax
import jax.numpy as jnp
from jax.experimental import pallas as pl
from jax.experimental.pallas import tpu as pltpu


# ----------------------------------------------------------------------------------
# In-kernel helpers
# ----------------------------------------------------------------------------------
def _layernorm(x, gamma, beta, eps=1e-5):
    mu = jnp.mean(x, axis=-1, keepdims=True)
    var = jnp.mean((x - mu) ** 2, axis=-1, keepdims=True)
    return (x - mu) * jax.lax.rsqrt(var + eps) * gamma + beta


def _dot(x, w_ref):
    """MXU matmul; activations cast to the (possibly bf16) weight dtype, f32 accum."""
    w = w_ref[...]
    return jnp.dot(x.astype(w.dtype), w, preferred_element_type=jnp.float32)


# ----------------------------------------------------------------------------------
# Kernel
# ----------------------------------------------------------------------------------
def r_critic_kernel(
    # data (per grid block)
    obs_ref, h_ref, mask_ref,
    # broadcast (resident) inputs
    bias_ref,                                   # (Bb, Bb) additive block-diag mask
    fn_ref,                                     # feature LayerNorm gamma/beta (2, O)
    w1_ref, b1_ref, ln1_ref,                    # MLPBase fc1
    w2_ref, b2_ref, ln2_ref,                    # MLPBase fc_h (layer_N = 1)
    wqkv_ref, wo_ref, bo_ref,                   # MAC: fused Q|K|V proj, out proj
    wgru_ref, bgru_ref,                         # GRU: single fused (2H, 4*Hp) matmul
    lng_ref,                                    # post-GRU LayerNorm
    wv_ref, bv_ref,                             # v_out as row vector + scalar bias
    # outputs
    values_ref, h_out_ref,
):
    f32 = jnp.float32
    x = obs_ref[...]                            # (Bb, O) f32
    H = h_ref.shape[1]
    Hp = wqkv_ref.shape[1] // 3                 # 128-lane-aligned column-group stride
    mm = wqkv_ref.dtype                         # matmul operand dtype (bf16 or f32)

    # ---------------- MLPBase ----------------
    x = _layernorm(x, fn_ref[0:1, :], fn_ref[1:2, :])
    x = jnp.maximum(_dot(x, w1_ref) + b1_ref[...], 0.0)       # Linear + ReLU
    x = _layernorm(x, ln1_ref[0:1, :], ln1_ref[1:2, :])
    x = jnp.maximum(_dot(x, w2_ref) + b2_ref[...], 0.0)
    x = _layernorm(x, ln2_ref[0:1, :], ln2_ref[1:2, :])       # (Bb, H)

    # ---------------- MAC (communication) ----------------
    # TODO(synk): exact MAC architecture of r_mappo_comm is not available here;
    # implemented as residual scaled-dot-product attention restricted to agents of
    # the same rollout thread (precomputed additive block-diagonal bias).
    qkv = _dot(x, wqkv_ref)                                    # (Bb, 3*Hp), f32 accum
    q = qkv[:, 0:H] * (1.0 / float(H) ** 0.5)                  # pre-scale q (cheaper)
    k = qkv[:, Hp:Hp + H]
    v = qkv[:, 2 * Hp:2 * Hp + H]
    logits = jax.lax.dot_general(
        q.astype(mm), k.astype(mm), (((1,), (1,)), ((), ())),
        preferred_element_type=f32)                            # (Bb, Bb)
    logits = logits + bias_ref[...]                            # 0 / -1e30 additive mask
    logits = logits - jnp.max(logits, axis=-1, keepdims=True)
    p = jnp.exp(logits)                                        # masked entries -> 0
    p = p * pl.reciprocal(jnp.sum(p, axis=-1, keepdims=True), approx=True)
    msg = jnp.dot(p.astype(mm), v.astype(mm), preferred_element_type=f32)  # (Bb, H)
    msg = _dot(msg, wo_ref) + bo_ref[...]
    x = x + msg                                                # residual

    # ------------- RNNLayer: masked single-step GRU (one fused matmul) + LayerNorm -
    h = h_ref[...] * mask_ref[...]                             # (Bb, H) * (Bb, 1)
    g = _dot(jnp.concatenate([x, h], axis=-1), wgru_ref) + bgru_ref[...]   # (Bb, 4*Hp)
    r = jax.nn.sigmoid(g[:, 0:H])                              # r = sig(Wir x+bir+Whr h+bhr)
    z = jax.nn.sigmoid(g[:, Hp:Hp + H])                        # z = sig(Wiz x+biz+Whz h+bhz)
    n = jnp.tanh(g[:, 2 * Hp:2 * Hp + H] + r * g[:, 3 * Hp:3 * Hp + H])
    h_new = (1.0 - z) * n + z * h
    h_out_ref[...] = h_new
    feat = _layernorm(h_new, lng_ref[0:1, :], lng_ref[1:2, :])

    # ---------------- v_out (VPU multiply + lane reduce, no N=1 matmul) ----------
    values_ref[...] = (
        jnp.sum(feat * wv_ref[...], axis=-1, keepdims=True) + bv_ref[...]
    )


# ----------------------------------------------------------------------------------
# Wrapper
# ----------------------------------------------------------------------------------
_PARAM_ORDER = [
    "fn",
    "w1", "b1", "ln1",
    "w2", "b2", "ln2",
    "wqkv", "wo", "bo",
    "wgru", "bgru",
    "ln_gru",
    "w_vout", "b_vout",
]
_MATMUL_WEIGHTS = ("w1", "w2", "wqkv", "wo", "wgru")


def _round_up(x, m):
    return ((x + m - 1) // m) * m


def _tensorcores_per_chip():
    """2 on v7x (megacore grid sharding), else 1 (v5e/v6e are single-TC)."""
    try:
        kind = jax.devices()[0].device_kind.lower()
    except Exception:
        return 1
    return 2 if "v7" in kind else 1


def _pick_rows_per_block(B, num_agents, *, num_cores=1, max_rows=256):
    """Rows per grid block: a multiple of lcm(8, num_agents) dividing B, capped at
    max_rows (the dense block-diagonal attention is O(rows^2), so keep it small),
    and leaving at least `num_cores` grid steps so v7x megacore has work."""
    group = math.lcm(8, num_agents)
    if B % group != 0:
        return B                              # single full-array block (always legal)
    max_rows = max(max_rows, group)
    rb = group
    while (B % (rb * 2) == 0) and (rb * 2 <= max_rows) and (B // (rb * 2) >= num_cores):
        rb *= 2
    return rb


def r_critic_forward(params, cent_obs, rnn_states, masks, *, num_agents,
                     rows_per_block=None, matmul_dtype=jnp.bfloat16):
    """values, new_rnn_states = R_Critic(cent_obs, rnn_states, masks)."""
    B, O = cent_obs.shape
    H = params["w1"].shape[1]
    assert B % num_agents == 0, "batch must be n_threads * num_agents, agent-fastest"

    obs = cent_obs.astype(jnp.float32)
    h_in = rnn_states.reshape(B, H).astype(jnp.float32)          # recurrent_N = 1
    m = masks.astype(jnp.float32)

    if rows_per_block is None:
        rows_per_block = _pick_rows_per_block(
            B, num_agents, num_cores=_tensorcores_per_chip())
    assert B % rows_per_block == 0 and rows_per_block % num_agents == 0
    grid = (B // rows_per_block,)

    # Block-diagonal additive attention bias; identical for every grid block because
    # rows_per_block % num_agents == 0 and rows are agent-fastest within a thread.
    tid = jnp.arange(rows_per_block, dtype=jnp.int32) // num_agents
    attn_bias = jnp.where(tid[:, None] == tid[None, :], 0.0, -1e30).astype(jnp.float32)

    # Pack parameters (cast only MXU weight slabs to matmul_dtype).
    broadcast_inputs = [attn_bias]
    for key in _PARAM_ORDER:
        p = params[key]
        broadcast_inputs.append(p.astype(matmul_dtype) if key in _MATMUL_WEIGHTS
                                else p.astype(jnp.float32))

    data_specs = [
        pl.BlockSpec((rows_per_block, O), lambda i: (i, 0)),   # obs
        pl.BlockSpec((rows_per_block, H), lambda i: (i, 0)),   # h
        pl.BlockSpec((rows_per_block, 1), lambda i: (i, 0)),   # mask
    ]
    out_specs = (
        pl.BlockSpec((rows_per_block, 1), lambda i: (i, 0)),
        pl.BlockSpec((rows_per_block, H), lambda i: (i, 0)),
    )
    out_shape = (
        jax.ShapeDtypeStruct((B, 1), jnp.float32),
        jax.ShapeDtypeStruct((B, H), jnp.float32),
    )

    # Explicit VMEM budget (generation-safe: capped at v7x's 64 MiB).
    def _nbytes(a):
        return int(a.size) * a.dtype.itemsize
    param_bytes = sum(_nbytes(p) for p in broadcast_inputs)
    block_bytes = 4 * rows_per_block * (O + 2 * H + 2)            # obs+h+h_out+mask+vals
    attn_bytes = 4 * rows_per_block * rows_per_block * 4          # logits/exp/etc
    est = 2 * (param_bytes + block_bytes) + attn_bytes + (8 << 20)
    vmem_limit = int(min(max(est, 32 << 20), 64 << 20))

    def _broadcast_spec(shape, single_buffered):
        if single_buffered:
            # Constant index_map -> one resident copy; double buffering buys nothing.
            return pl.BlockSpec(shape, lambda *_: (0,) * len(shape),
                                pipeline_mode=pl.Buffered(1))
        return pl.BlockSpec(shape, lambda *_: (0,) * len(shape))

    def _build_call(single_buffered):
        in_specs = data_specs + [_broadcast_spec(p.shape, single_buffered)
                                 for p in broadcast_inputs]
        return pl.pallas_call(
            r_critic_kernel,
            grid=grid,
            out_shape=out_shape,
            in_specs=in_specs,
            out_specs=out_specs,
            compiler_params=pltpu.CompilerParams(
                dimension_semantics=("parallel",),
                vmem_limit_bytes=vmem_limit,
            ),
        )

    try:
        values, h_out = _build_call(True)(obs, h_in, m, *broadcast_inputs)
    except Exception:
        # Fallback for JAX builds where pipeline_mode=pl.Buffered(1) is unsupported.
        values, h_out = _build_call(False)(obs, h_in, m, *broadcast_inputs)

    return values, h_out.reshape(B, 1, H)


# ----------------------------------------------------------------------------------
# Parameter packing (PyTorch checkpoints: transpose (out,in) Linear weights to
# (in,out); nn.GRU gate order is r|z|n).
# ----------------------------------------------------------------------------------
def pack_qkv_weights(wq, wk, wv):
    """Stack Q/K/V projections (each (in, H)) into (in, 3*Hp); each column group is
    aligned to a 128-lane boundary so in-kernel slices start on vreg boundaries."""
    in_dim, H = wq.shape
    Hp = _round_up(H, 128)
    out = jnp.zeros((in_dim, 3 * Hp), wq.dtype)
    out = out.at[:, 0:H].set(wq)
    out = out.at[:, Hp:Hp + H].set(wk)
    out = out.at[:, 2 * Hp:2 * Hp + H].set(wv)
    return out


def pack_gru_weights(w_ih, w_hh, b_ih, b_hh):
    """w_ih/w_hh: (H, 3H), gate order r|z|n (already (in,out)).  Returns a (2H, 4*Hp)
    fused weight and (1, 4*Hp) fused bias with column groups r-sum | z-sum | gi_n | gh_n
    so the GRU step is a single matmul over the concatenated [x | h] input."""
    H = w_ih.shape[0]
    Hp = _round_up(H, 128)
    w = jnp.zeros((2 * H, 4 * Hp), w_ih.dtype)
    b = jnp.zeros((1, 4 * Hp), jnp.float32)
    # r and z gates: x- and h-side contributions summed by the single matmul
    w = w.at[0:H, 0:H].set(w_ih[:, 0:H])
    w = w.at[H:2 * H, 0:H].set(w_hh[:, 0:H])
    w = w.at[0:H, Hp:Hp + H].set(w_ih[:, H:2 * H])
    w = w.at[H:2 * H, Hp:Hp + H].set(w_hh[:, H:2 * H])
    # candidate gate: keep x- and h-side separate (h side is gated by r)
    w = w.at[0:H, 2 * Hp:2 * Hp + H].set(w_ih[:, 2 * H:3 * H])
    w = w.at[H:2 * H, 3 * Hp:3 * Hp + H].set(w_hh[:, 2 * H:3 * H])
    b = b.at[0, 0:H].set(b_ih[0:H] + b_hh[0:H])
    b = b.at[0, Hp:Hp + H].set(b_ih[H:2 * H] + b_hh[H:2 * H])
    b = b.at[0, 2 * Hp:2 * Hp + H].set(b_ih[2 * H:3 * H])
    b = b.at[0, 3 * Hp:3 * Hp + H].set(b_hh[2 * H:3 * H])
    return w, b


def init_params(key, obs_dim, hidden):
    """Deterministic synthetic parameters, pre-packed into fused layouts."""
    ks = jax.random.split(key, 12)
    s = 0.1
    H = hidden

    def ln(dim):
        return jnp.concatenate(
            [jnp.ones((1, dim), jnp.float32), jnp.zeros((1, dim), jnp.float32)], 0)

    wq = s * jax.random.normal(ks[2], (H, H), jnp.float32)
    wk = s * jax.random.normal(ks[3], (H, H), jnp.float32)
    wv = s * jax.random.normal(ks[4], (H, H), jnp.float32)
    w_ih = s * jax.random.normal(ks[6], (H, 3 * H), jnp.float32)
    w_hh = s * jax.random.normal(ks[7], (H, 3 * H), jnp.float32)
    b_ih = jnp.zeros((3 * H,), jnp.float32)
    b_hh = jnp.zeros((3 * H,), jnp.float32)
    wgru, bgru = pack_gru_weights(w_ih, w_hh, b_ih, b_hh)

    return {
        "fn": ln(obs_dim),                                           # feature LayerNorm
        "w1": s * jax.random.normal(ks[0], (obs_dim, H), jnp.float32),
        "b1": jnp.zeros((1, H), jnp.float32),
        "ln1": ln(H),
        "w2": s * jax.random.normal(ks[1], (H, H), jnp.float32),
        "b2": jnp.zeros((1, H), jnp.float32),
        "ln2": ln(H),
        "wqkv": pack_qkv_weights(wq, wk, wv),                        # (H, 3*Hp)
        "wo": s * jax.random.normal(ks[5], (H, H), jnp.float32),
        "bo": jnp.zeros((1, H), jnp.float32),
        "wgru": wgru,                                                # (2H, 4*Hp)
        "bgru": bgru,                                                # (1, 4*Hp)
        "ln_gru": ln(H),
        "w_vout": s * jax.random.normal(ks[8], (1, H), jnp.float32),
        "b_vout": jnp.zeros((1, 1), jnp.float32),
    }


if __name__ == "__main__":
    key = jax.random.PRNGKey(0)
    k_par, k_obs, k_rnn = jax.random.split(key, 3)

    num_agents = 2
    n_threads = 8
    B = n_threads * num_agents        # 16 rows, agent-fastest ordering
    obs_dim = 48
    hidden = 32

    params = init_params(k_par, obs_dim, hidden)
    cent_obs = jax.random.normal(k_obs, (B, obs_dim), jnp.float32)
    rnn_states = jax.random.normal(k_rnn, (B, 1, hidden), jnp.float32)
    masks = jnp.ones((B, 1), jnp.float32)

    values, new_rnn_states = r_critic_forward(
        params, cent_obs, rnn_states, masks, num_agents=num_agents)
    jax.block_until_ready((values, new_rnn_states))

    assert values.shape == (B, 1)
    assert new_rnn_states.shape == (B, 1, hidden)
    assert bool(jnp.all(jnp.isfinite(values)))
    assert bool(jnp.all(jnp.isfinite(new_rnn_states)))
    print("KERNEL_OK")
</pallas_src>

<mosaic_0001>
module attributes {stable_mosaic.version = 11 : i64} {
  func.func @r_critic_kernel(%arg0: i32, %arg1: memref<16x48xf32, #tpu.memory_space<vmem>>, %arg2: memref<16x32xf32, #tpu.memory_space<vmem>>, %arg3: memref<16x1xf32, #tpu.memory_space<vmem>>, %arg4: memref<16x16xf32, #tpu.memory_space<vmem>>, %arg5: memref<2x48xf32, #tpu.memory_space<vmem>>, %arg6: memref<48x32xbf16, #tpu.memory_space<vmem>>, %arg7: memref<1x32xf32, #tpu.memory_space<vmem>>, %arg8: memref<2x32xf32, #tpu.memory_space<vmem>>, %arg9: memref<32x32xbf16, #tpu.memory_space<vmem>>, %arg10: memref<1x32xf32, #tpu.memory_space<vmem>>, %arg11: memref<2x32xf32, #tpu.memory_space<vmem>>, %arg12: memref<32x384xbf16, #tpu.memory_space<vmem>>, %arg13: memref<32x32xbf16, #tpu.memory_space<vmem>>, %arg14: memref<1x32xf32, #tpu.memory_space<vmem>>, %arg15: memref<64x512xbf16, #tpu.memory_space<vmem>>, %arg16: memref<1x512xf32, #tpu.memory_space<vmem>>, %arg17: memref<2x32xf32, #tpu.memory_space<vmem>>, %arg18: memref<1x32xf32, #tpu.memory_space<vmem>>, %arg19: memref<1x1xf32, #tpu.memory_space<vmem>>, %arg20: memref<16x1xf32, #tpu.memory_space<vmem>>, %arg21: memref<16x32xf32, #tpu.memory_space<vmem>>) attributes {dimension_semantics = [#tpu.dimension_semantics<parallel>], iteration_bounds = array<i64: 1>, scalar_prefetch = 0 : i64, scratch_operands = 0 : i64, tpu.core_type = #tpu.core_type<tc>, window_params = [{transform_indices = @transform_0, window_bounds = array<i64: 16, 48>}, {transform_indices = @transform_1, window_bounds = array<i64: 16, 32>}, {transform_indices = @transform_2, window_bounds = array<i64: 16, 1>}, {pipeline_mode = #tpu.pipeline_mode<synchronous>, transform_indices = @transform_3, window_bounds = array<i64: 16, 16>}, {pipeline_mode = #tpu.pipeline_mode<synchronous>, transform_indices = @transform_4, window_bounds = array<i64: 2, 48>}, {pipeline_mode = #tpu.pipeline_mode<synchronous>, transform_indices = @transform_5, window_bounds = array<i64: 48, 32>}, {pipeline_mode = #tpu.pipeline_mode<synchronous>, transform_indices = @transform_6, window_bounds = array<i64: 1, 32>}, {pipeline_mode = #tpu.pipeline_mode<synchronous>, transform_indices = @transform_7, window_bounds = array<i64: 2, 32>}, {pipeline_mode = #tpu.pipeline_mode<synchronous>, transform_indices = @transform_8, window_bounds = array<i64: 32, 32>}, {pipeline_mode = #tpu.pipeline_mode<synchronous>, transform_indices = @transform_9, window_bounds = array<i64: 1, 32>}, {pipeline_mode = #tpu.pipeline_mode<synchronous>, transform_indices = @transform_10, window_bounds = array<i64: 2, 32>}, {pipeline_mode = #tpu.pipeline_mode<synchronous>, transform_indices = @transform_11, window_bounds = array<i64: 32, 384>}, {pipeline_mode = #tpu.pipeline_mode<synchronous>, transform_indices = @transform_12, window_bounds = array<i64: 32, 32>}, {pipeline_mode = #tpu.pipeline_mode<synchronous>, transform_indices = @transform_13, window_bounds = array<i64: 1, 32>}, {pipeline_mode = #tpu.pipeline_mode<synchronous>, transform_indices = @transform_14, window_bounds = array<i64: 64, 512>}, {pipeline_mode = #tpu.pipeline_mode<synchronous>, transform_indices = @transform_15, window_bounds = array<i64: 1, 512>}, {pipeline_mode = #tpu.pipeline_mode<synchronous>, transform_indices = @transform_16, window_bounds = array<i64: 2, 32>}, {pipeline_mode = #tpu.pipeline_mode<synchronous>, transform_indices = @transform_17, window_bounds = array<i64: 1, 32>}, {pipeline_mode = #tpu.pipeline_mode<synchronous>, transform_indices = @transform_18, window_bounds = array<i64: 1, 1>}, {transform_indices = @transform_19, window_bounds = array<i64: 16, 1>}, {transform_indices = @transform_20, window_bounds = array<i64: 16, 32>}]} {
    %c0 = arith.constant 0 : index
    %c0_0 = arith.constant 0 : index
    %0 = vector.load %arg1[%c0, %c0_0] : memref<16x48xf32, #tpu.memory_space<vmem>>, vector<16x48xf32>
    %c0_1 = arith.constant 0 : index
    %c0_2 = arith.constant 0 : index
    %1 = vector.load %arg5[%c0_1, %c0_2] : memref<2x48xf32, #tpu.memory_space<vmem>>, vector<1x48xf32>
    %c1 = arith.constant 1 : index
    %c0_3 = arith.constant 0 : index
    %2 = vector.load %arg5[%c1, %c0_3] : memref<2x48xf32, #tpu.memory_space<vmem>>, vector<1x48xf32>
    %cst = arith.constant dense<0.000000e+00> : vector<16xf32>
    %3 = vector.multi_reduction <add>, %0, %cst [1] : vector<16x48xf32> to vector<16xf32>
    %4 = vector.shape_cast %3 : vector<16xf32> to vector<16x1xf32>
    %cst_4 = arith.constant 4.800000e+01 : f32
    %5 = vector.broadcast %cst_4 : f32 to vector<16x1xf32>
    %6 = arith.divf %4, %5 : vector<16x1xf32>
    %7 = vector.broadcast %6 : vector<16x1xf32> to vector<16x48xf32>
    %8 = arith.subf %0, %7 : vector<16x48xf32>
    %9 = arith.mulf %8, %8 : vector<16x48xf32>
    %cst_5 = arith.constant dense<0.000000e+00> : vector<16xf32>
    %10 = vector.multi_reduction <add>, %9, %cst_5 [1] : vector<16x48xf32> to vector<16xf32>
    %11 = vector.shape_cast %10 : vector<16xf32> to vector<16x1xf32>
    %cst_6 = arith.constant 4.800000e+01 : f32
    %12 = vector.broadcast %cst_6 : f32 to vector<16x1xf32>
    %13 = arith.divf %11, %12 : vector<16x1xf32>
    %14 = vector.broadcast %6 : vector<16x1xf32> to vector<16x48xf32>
    %15 = arith.subf %0, %14 : vector<16x48xf32>
    %cst_7 = arith.constant 9.99999974E-6 : f32
    %16 = vector.broadcast %cst_7 : f32 to vector<16x1xf32>
    %17 = arith.addf %13, %16 : vector<16x1xf32>
    %18 = math.rsqrt %17 : vector<16x1xf32>
    %19 = vector.broadcast %18 : vector<16x1xf32> to vector<16x48xf32>
    %20 = arith.mulf %15, %19 : vector<16x48xf32>
    %21 = vector.broadcast %1 : vector<1x48xf32> to vector<16x48xf32>
    %22 = arith.mulf %20, %21 : vector<16x48xf32>
    %23 = vector.broadcast %2 : vector<1x48xf32> to vector<16x48xf32>
    %24 = arith.addf %22, %23 : vector<16x48xf32>
    %c0_8 = arith.constant 0 : index
    %c0_9 = arith.constant 0 : index
    %25 = vector.load %arg6[%c0_8, %c0_9] : memref<48x32xbf16, #tpu.memory_space<vmem>>, vector<48x32xbf16>
    %26 = arith.truncf %24 : vector<16x48xf32> to vector<16x48xbf16>
    %cst_10 = arith.constant dense<0.000000e+00> : vector<16x32xf32>
    %27 = tpu.matmul %26, %25, %cst_10 {dimension_numbers = #tpu.dot_dimension_numbers<[1], [0], [0], [1], [0, 0, 1, 1], [], []>} : vector<16x48xbf16>, vector<48x32xbf16>, vector<16x32xf32> -> vector<16x32xf32>
    %c0_11 = arith.constant 0 : index
    %c0_12 = arith.constant 0 : index
    %28 = vector.load %arg7[%c0_11, %c0_12] : memref<1x32xf32, #tpu.memory_space<vmem>>, vector<1x32xf32>
    %29 = vector.broadcast %28 : vector<1x32xf32> to vector<16x32xf32>
    %30 = arith.addf %27, %29 : vector<16x32xf32>
    %cst_13 = arith.constant 0.000000e+00 : f32
    %31 = vector.broadcast %cst_13 : f32 to vector<16x32xf32>
    %32 = arith.maximumf %30, %31 : vector<16x32xf32>
    %c0_14 = arith.constant 0 : index
    %c0_15 = arith.constant 0 : index
    %33 = vector.load %arg8[%c0_14, %c0_15] : memref<2x32xf32, #tpu.memory_space<vmem>>, vector<1x32xf32>
    %c1_16 = arith.constant 1 : index
    %c0_17 = arith.constant 0 : index
    %34 = vector.load %arg8[%c1_16, %c0_17] : memref<2x32xf32, #tpu.memory_space<vmem>>, vector<1x32xf32>
    %cst_18 = arith.constant dense<0.000000e+00> : vector<16xf32>
    %35 = vector.multi_reduction <add>, %32, %cst_18 [1] : vector<16x32xf32> to vector<16xf32>
    %36 = vector.shape_cast %35 : vector<16xf32> to vector<16x1xf32>
    %cst_19 = arith.constant 3.200000e+01 : f32
    %37 = vector.broadcast %cst_19 : f32 to vector<16x1xf32>
    %38 = arith.divf %36, %37 : vector<16x1xf32>
    %39 = vector.broadcast %38 : vector<16x1xf32> to vector<16x32xf32>
    %40 = arith.subf %32, %39 : vector<16x32xf32>
    %41 = arith.mulf %40, %40 : vector<16x32xf32>
    %cst_20 = arith.constant dense<0.000000e+00> : vector<16xf32>
    %42 = vector.multi_reduction <add>, %41, %cst_20 [1] : vector<16x32xf32> to vector<16xf32>
    %43 = vector.shape_cast %42 : vector<16xf32> to vector<16x1xf32>
    %cst_21 = arith.constant 3.200000e+01 : f32
    %44 = vector.broadcast %cst_21 : f32 to vector<16x1xf32>
    %45 = arith.divf %43, %44 : vector<16x1xf32>
    %46 = vector.broadcast %38 : vector<16x1xf32> to vector<16x32xf32>
    %47 = arith.subf %32, %46 : vector<16x32xf32>
    %cst_22 = arith.constant 9.99999974E-6 : f32
    %48 = vector.broadcast %cst_22 : f32 to vector<16x1xf32>
    %49 = arith.addf %45, %48 : vector<16x1xf32>
    %50 = math.rsqrt %49 : vector<16x1xf32>
    %51 = vector.broadcast %50 : vector<16x1xf32> to vector<16x32xf32>
    %52 = arith.mulf %47, %51 : vector<16x32xf32>
    %53 = vector.broadcast %33 : vector<1x32xf32> to vector<16x32xf32>
    %54 = arith.mulf %52, %53 : vector<16x32xf32>
    %55 = vector.broadcast %34 : vector<1x32xf32> to vector<16x32xf32>
    %56 = arith.addf %54, %55 : vector<16x32xf32>
    %c0_23 = arith.constant 0 : index
    %c0_24 = arith.constant 0 : index
    %57 = vector.load %arg9[%c0_23, %c0_24] : memref<32x32xbf16, #tpu.memory_space<vmem>>, vector<32x32xbf16>
    %58 = arith.truncf %56 : vector<16x32xf32> to vector<16x32xbf16>
    %cst_25 = arith.constant dense<0.000000e+00> : vector<16x32xf32>
    %59 = tpu.matmul %58, %57, %cst_25 {dimension_numbers = #tpu.dot_dimension_numbers<[1], [0], [0], [1], [0, 0, 1, 1], [], []>} : vector<16x32xbf16>, vector<32x32xbf16>, vector<16x32xf32> -> vector<16x32xf32>
    %c0_26 = arith.constant 0 : index
    %c0_27 = arith.constant 0 : index
    %60 = vector.load %arg10[%c0_26, %c0_27] : memref<1x32xf32, #tpu.memory_space<vmem>>, vector<1x32xf32>
    %61 = vector.broadcast %60 : vector<1x32xf32> to vector<16x32xf32>
    %62 = arith.addf %59, %61 : vector<16x32xf32>
    %cst_28 = arith.constant 0.000000e+00 : f32
    %63 = vector.broadcast %cst_28 : f32 to vector<16x32xf32>
    %64 = arith.maximumf %62, %63 : vector<16x32xf32>
    %c0_29 = arith.constant 0 : index
    %c0_30 = arith.constant 0 : index
    %65 = vector.load %arg11[%c0_29, %c0_30] : memref<2x32xf32, #tpu.memory_space<vmem>>, vector<1x32xf32>
    %c1_31 = arith.constant 1 : index
    %c0_32 = arith.constant 0 : index
    %66 = vector.load %arg11[%c1_31, %c0_32] : memref<2x32xf32, #tpu.memory_space<vmem>>, vector<1x32xf32>
    %cst_33 = arith.constant dense<0.000000e+00> : vector<16xf32>
    %67 = vector.multi_reduction <add>, %64, %cst_33 [1] : vector<16x32xf32> to vector<16xf32>
    %68 = vector.shape_cast %67 : vector<16xf32> to vector<16x1xf32>
    %cst_34 = arith.constant 3.200000e+01 : f32
    %69 = vector.broadcast %cst_34 : f32 to vector<16x1xf32>
    %70 = arith.divf %68, %69 : vector<16x1xf32>
    %71 = vector.broadcast %70 : vector<16x1xf32> to vector<16x32xf32>
    %72 = arith.subf %64, %71 : vector<16x32xf32>
    %73 = arith.mulf %72, %72 : vector<16x32xf32>
    %cst_35 = arith.constant dense<0.000000e+00> : vector<16xf32>
    %74 = vector.multi_reduction <add>, %73, %cst_35 [1] : vector<16x32xf32> to vector<16xf32>
    %75 = vector.shape_cast %74 : vector<16xf32> to vector<16x1xf32>
    %cst_36 = arith.constant 3.200000e+01 : f32
    %76 = vector.broadcast %cst_36 : f32 to vector<16x1xf32>
    %77 = arith.divf %75, %76 : vector<16x1xf32>
    %78 = vector.broadcast %70 : vector<16x1xf32> to vector<16x32xf32>
    %79 = arith.subf %64, %78 : vector<16x32xf32>
    %cst_37 = arith.constant 9.99999974E-6 : f32
    %80 = vector.broadcast %cst_37 : f32 to vector<16x1xf32>
    %81 = arith.addf %77, %80 : vector<16x1xf32>
    %82 = math.rsqrt %81 : vector<16x1xf32>
    %83 = vector.broadcast %82 : vector<16x1xf32> to vector<16x32xf32>
    %84 = arith.mulf %79, %83 : vector<16x32xf32>
    %85 = vector.broadcast %65 : vector<1x32xf32> to vector<16x32xf32>
    %86 = arith.mulf %84, %85 : vector<16x32xf32>
    %87 = vector.broadcast %66 : vector<1x32xf32> to vector<16x32xf32>
    %88 = arith.addf %86, %87 : vector<16x32xf32>
    %c0_38 = arith.constant 0 : index
    %c0_39 = arith.constant 0 : index
    %89 = vector.load %arg12[%c0_38, %c0_39] : memref<32x384xbf16, #tpu.memory_space<vmem>>, vector<32x384xbf16>
    %90 = arith.truncf %88 : vector<16x32xf32> to vector<16x32xbf16>
    %cst_40 = arith.constant dense<0.000000e+00> : vector<16x384xf32>
    %91 = tpu.matmul %90, %89, %cst_40 {dimension_numbers = #tpu.dot_dimension_numbers<[1], [0], [0], [1], [0, 0, 1, 1], [], []>} : vector<16x32xbf16>, vector<32x384xbf16>, vector<16x384xf32> -> vector<16x384xf32>
    %92 = vector.extract_strided_slice %91 {offsets = [0, 0], sizes = [16, 32], strides = [1, 1]} : vector<16x384xf32> to vector<16x32xf32>
    %cst_41 = arith.constant 0.176776692 : f32
    %93 = vector.broadcast %cst_41 : f32 to vector<16x32xf32>
    %94 = arith.mulf %92, %93 : vector<16x32xf32>
    %95 = vector.extract_strided_slice %91 {offsets = [0, 128], sizes = [16, 32], strides = [1, 1]} : vector<16x384xf32> to vector<16x32xf32>
    %96 = vector.extract_strided_slice %91 {offsets = [0, 256], sizes = [16, 32], strides = [1, 1]} : vector<16x384xf32> to vector<16x32xf32>
    %97 = arith.truncf %94 : vector<16x32xf32> to vector<16x32xbf16>
    %98 = arith.truncf %95 : vector<16x32xf32> to vector<16x32xbf16>
    %cst_42 = arith.constant dense<0.000000e+00> : vector<16x16xf32>
    %99 = tpu.matmul %97, %98, %cst_42 {dimension_numbers = #tpu.dot_dimension_numbers<[1], [1], [0], [0], [0, 0, 1, 0], [], []>} : vector<16x32xbf16>, vector<16x32xbf16>, vector<16x16xf32> -> vector<16x16xf32>
    %c0_43 = arith.constant 0 : index
    %c0_44 = arith.constant 0 : index
    %100 = vector.load %arg4[%c0_43, %c0_44] : memref<16x16xf32, #tpu.memory_space<vmem>>, vector<16x16xf32>
    %101 = arith.addf %99, %100 : vector<16x16xf32>
    %cst_45 = arith.constant dense<0xFF800000> : vector<16xf32>
    %102 = vector.multi_reduction <maximumf>, %101, %cst_45 [1] : vector<16x16xf32> to vector<16xf32>
    %103 = vector.shape_cast %102 : vector<16xf32> to vector<16x1xf32>
    %104 = vector.broadcast %103 : vector<16x1xf32> to vector<16x16xf32>
    %105 = arith.subf %101, %104 : vector<16x16xf32>
    %106 = math.exp %105 : vector<16x16xf32>
    %cst_46 = arith.constant dense<0.000000e+00> : vector<16xf32>
    %107 = vector.multi_reduction <add>, %106, %cst_46 [1] : vector<16x16xf32> to vector<16xf32>
    %108 = vector.shape_cast %107 : vector<16xf32> to vector<16x1xf32>
    %109 = tpu.reciprocal %108 {approx = true} : vector<16x1xf32> -> vector<16x1xf32>
    %110 = vector.broadcast %109 : vector<16x1xf32> to vector<16x16xf32>
    %111 = arith.mulf %106, %110 : vector<16x16xf32>
    %112 = arith.truncf %111 : vector<16x16xf32> to vector<16x16xbf16>
    %113 = arith.truncf %96 : vector<16x32xf32> to vector<16x32xbf16>
    %cst_47 = arith.constant dense<0.000000e+00> : vector<16x32xf32>
    %114 = tpu.matmul %112, %113, %cst_47 {dimension_numbers = #tpu.dot_dimension_numbers<[1], [0], [0], [1], [0, 0, 1, 1], [], []>} : vector<16x16xbf16>, vector<16x32xbf16>, vector<16x32xf32> -> vector<16x32xf32>
    %c0_48 = arith.constant 0 : index
    %c0_49 = arith.constant 0 : index
    %115 = vector.load %arg13[%c0_48, %c0_49] : memref<32x32xbf16, #tpu.memory_space<vmem>>, vector<32x32xbf16>
    %116 = arith.truncf %114 : vector<16x32xf32> to vector<16x32xbf16>
    %cst_50 = arith.constant dense<0.000000e+00> : vector<16x32xf32>
    %117 = tpu.matmul %116, %115, %cst_50 {dimension_numbers = #tpu.dot_dimension_numbers<[1], [0], [0], [1], [0, 0, 1, 1], [], []>} : vector<16x32xbf16>, vector<32x32xbf16>, vector<16x32xf32> -> vector<16x32xf32>
    %c0_51 = arith.constant 0 : index
    %c0_52 = arith.constant 0 : index
    %118 = vector.load %arg14[%c0_51, %c0_52] : memref<1x32xf32, #tpu.memory_space<vmem>>, vector<1x32xf32>
    %119 = vector.broadcast %118 : vector<1x32xf32> to vector<16x32xf32>
    %120 = arith.addf %117, %119 : vector<16x32xf32>
    %121 = arith.addf %88, %120 : vector<16x32xf32>
    %c0_53 = arith.constant 0 : index
    %c0_54 = arith.constant 0 : index
    %122 = vector.load %arg2[%c0_53, %c0_54] : memref<16x32xf32, #tpu.memory_space<vmem>>, vector<16x32xf32>
    %c0_55 = arith.constant 0 : index
    %c0_56 = arith.constant 0 : index
    %123 = vector.load %arg3[%c0_55, %c0_56] : memref<16x1xf32, #tpu.memory_space<vmem>>, vector<16x1xf32>
    %124 = vector.broadcast %123 : vector<16x1xf32> to vector<16x32xf32>
    %125 = arith.mulf %122, %124 : vector<16x32xf32>
    %126 = tpu.concatenate %121, %125 in 1 : vector<16x32xf32>, vector<16x32xf32> -> vector<16x64xf32>
    %c0_57 = arith.constant 0 : index
    %c0_58 = arith.constant 0 : index
    %127 = vector.load %arg15[%c0_57, %c0_58] : memref<64x512xbf16, #tpu.memory_space<vmem>>, vector<64x512xbf16>
    %128 = arith.truncf %126 : vector<16x64xf32> to vector<16x64xbf16>
    %cst_59 = arith.constant dense<0.000000e+00> : vector<16x512xf32>
    %129 = tpu.matmul %128, %127, %cst_59 {dimension_numbers = #tpu.dot_dimension_numbers<[1], [0], [0], [1], [0, 0, 1, 1], [], []>} : vector<16x64xbf16>, vector<64x512xbf16>, vector<16x512xf32> -> vector<16x512xf32>
    %c0_60 = arith.constant 0 : index
    %c0_61 = arith.constant 0 : index
    %130 = vector.load %arg16[%c0_60, %c0_61] : memref<1x512xf32, #tpu.memory_space<vmem>>, vector<1x512xf32>
    %131 = vector.broadcast %130 : vector<1x512xf32> to vector<16x512xf32>
    %132 = arith.addf %129, %131 : vector<16x512xf32>
    %133 = vector.extract_strided_slice %132 {offsets = [0, 0], sizes = [16, 32], strides = [1, 1]} : vector<16x512xf32> to vector<16x32xf32>
    %134 = arith.negf %133 : vector<16x32xf32>
    %135 = math.exp %134 : vector<16x32xf32>
    %cst_62 = arith.constant 1.000000e+00 : f32
    %136 = vector.broadcast %cst_62 : f32 to vector<16x32xf32>
    %137 = arith.addf %136, %135 : vector<16x32xf32>
    %138 = arith.divf %136, %137 : vector<16x32xf32>
    %139 = vector.extract_strided_slice %132 {offsets = [0, 128], sizes = [16, 32], strides = [1, 1]} : vector<16x512xf32> to vector<16x32xf32>
    %140 = arith.negf %139 : vector<16x32xf32>
    %141 = math.exp %140 : vector<16x32xf32>
    %cst_63 = arith.constant 1.000000e+00 : f32
    %142 = vector.broadcast %cst_63 : f32 to vector<16x32xf32>
    %143 = arith.addf %142, %141 : vector<16x32xf32>
    %144 = arith.divf %142, %143 : vector<16x32xf32>
    %145 = vector.extract_strided_slice %132 {offsets = [0, 256], sizes = [16, 32], strides = [1, 1]} : vector<16x512xf32> to vector<16x32xf32>
    %146 = vector.extract_strided_slice %132 {offsets = [0, 384], sizes = [16, 32], strides = [1, 1]} : vector<16x512xf32> to vector<16x32xf32>
    %147 = arith.mulf %138, %146 : vector<16x32xf32>
    %148 = arith.addf %145, %147 : vector<16x32xf32>
    %149 = math.tanh %148 : vector<16x32xf32>
    %cst_64 = arith.constant 1.000000e+00 : f32
    %150 = vector.broadcast %cst_64 : f32 to vector<16x32xf32>
    %151 = arith.subf %150, %144 : vector<16x32xf32>
    %152 = arith.mulf %151, %149 : vector<16x32xf32>
    %153 = arith.mulf %144, %125 : vector<16x32xf32>
    %154 = arith.addf %152, %153 : vector<16x32xf32>
    %c0_65 = arith.constant 0 : index
    %c0_66 = arith.constant 0 : index
    %155 = vector.load %arg21[%c0_65, %c0_66] : memref<16x32xf32, #tpu.memory_space<vmem>>, vector<16x32xf32>
    tpu.vector_store %arg21[%c0_65, %c0_66], %154 {strides = array<i32>} : memref<16x32xf32, #tpu.memory_space<vmem>>, vector<16x32xf32>,
    %c0_67 = arith.constant 0 : index
    %c0_68 = arith.constant 0 : index
    %156 = vector.load %arg17[%c0_67, %c0_68] : memref<2x32xf32, #tpu.memory_space<vmem>>, vector<1x32xf32>
    %c1_69 = arith.constant 1 : index
    %c0_70 = arith.constant 0 : index
    %157 = vector.load %arg17[%c1_69, %c0_70] : memref<2x32xf32, #tpu.memory_space<vmem>>, vector<1x32xf32>
    %cst_71 = arith.constant dense<0.000000e+00> : vector<16xf32>
    %158 = vector.multi_reduction <add>, %154, %cst_71 [1] : vector<16x32xf32> to vector<16xf32>
    %159 = vector.shape_cast %158 : vector<16xf32> to vector<16x1xf32>
    %cst_72 = arith.constant 3.200000e+01 : f32
    %160 = vector.broadcast %cst_72 : f32 to vector<16x1xf32>
    %161 = arith.divf %159, %160 : vector<16x1xf32>
    %162 = vector.broadcast %161 : vector<16x1xf32> to vector<16x32xf32>
    %163 = arith.subf %154, %162 : vector<16x32xf32>
    %164 = arith.mulf %163, %163 : vector<16x32xf32>
    %cst_73 = arith.constant dense<0.000000e+00> : vector<16xf32>
    %165 = vector.multi_reduction <add>, %164, %cst_73 [1] : vector<16x32xf32> to vector<16xf32>
    %166 = vector.shape_cast %165 : vector<16xf32> to vector<16x1xf32>
    %cst_74 = arith.constant 3.200000e+01 : f32
    %167 = vector.broadcast %cst_74 : f32 to vector<16x1xf32>
    %168 = arith.divf %166, %167 : vector<16x1xf32>
    %169 = vector.broadcast %161 : vector<16x1xf32> to vector<16x32xf32>
    %170 = arith.subf %154, %169 : vector<16x32xf32>
    %cst_75 = arith.constant 9.99999974E-6 : f32
    %171 = vector.broadcast %cst_75 : f32 to vector<16x1xf32>
    %172 = arith.addf %168, %171 : vector<16x1xf32>
    %173 = math.rsqrt %172 : vector<16x1xf32>
    %174 = vector.broadcast %173 : vector<16x1xf32> to vector<16x32xf32>
    %175 = arith.mulf %170, %174 : vector<16x32xf32>
    %176 = vector.broadcast %156 : vector<1x32xf32> to vector<16x32xf32>
    %177 = arith.mulf %175, %176 : vector<16x32xf32>
    %178 = vector.broadcast %157 : vector<1x32xf32> to vector<16x32xf32>
    %179 = arith.addf %177, %178 : vector<16x32xf32>
    %c0_76 = arith.constant 0 : index
    %c0_77 = arith.constant 0 : index
    %180 = vector.load %arg18[%c0_76, %c0_77] : memref<1x32xf32, #tpu.memory_space<vmem>>, vector<1x32xf32>
    %181 = vector.broadcast %180 : vector<1x32xf32> to vector<16x32xf32>
    %182 = arith.mulf %179, %181 : vector<16x32xf32>
    %cst_78 = arith.constant dense<0.000000e+00> : vector<16xf32>
    %183 = vector.multi_reduction <add>, %182, %cst_78 [1] : vector<16x32xf32> to vector<16xf32>
    %184 = vector.shape_cast %183 : vector<16xf32> to vector<16x1xf32>
    %c0_79 = arith.constant 0 : index
    %c0_80 = arith.constant 0 : index
    %185 = vector.load %arg19[%c0_79, %c0_80] : memref<1x1xf32, #tpu.memory_space<vmem>>, vector<1x1xf32>
    %186 = vector.broadcast %185 : vector<1x1xf32> to vector<16x1xf32>
    %187 = arith.addf %184, %186 : vector<16x1xf32>
    %c0_81 = arith.constant 0 : index
    %c0_82 = arith.constant 0 : index
    %188 = vector.load %arg20[%c0_81, %c0_82] : memref<16x1xf32, #tpu.memory_space<vmem>>, vector<16x1xf32>
    tpu.vector_store %arg20[%c0_81, %c0_82], %187 {strides = array<i32>} : memref<16x1xf32, #tpu.memory_space<vmem>>, vector<16x1xf32>,
    return
  }
  func.func @transform_0(%arg0: i32) -> (i32, i32) {
    %c0_i32 = arith.constant 0 : i32
    %c0_i32_0 = arith.constant 0 : i32
    return %arg0, %c0_i32 : i32, i32
  }
  func.func @transform_1(%arg0: i32) -> (i32, i32) {
    %c0_i32 = arith.constant 0 : i32
    %c0_i32_0 = arith.constant 0 : i32
    return %arg0, %c0_i32 : i32, i32
  }
  func.func @transform_2(%arg0: i32) -> (i32, i32) {
    %c0_i32 = arith.constant 0 : i32
    %c0_i32_0 = arith.constant 0 : i32
    return %arg0, %c0_i32 : i32, i32
  }
  func.func @transform_3(%arg0: i32) -> (i32, i32) {
    %c0_i32 = arith.constant 0 : i32
    %c0_i32_0 = arith.constant 0 : i32
    %c0_i32_1 = arith.constant 0 : i32
    return %c0_i32, %c0_i32_0 : i32, i32
  }
  func.func @transform_4(%arg0: i32) -> (i32, i32) {
    %c0_i32 = arith.constant 0 : i32
    %c0_i32_0 = arith.constant 0 : i32
    %c0_i32_1 = arith.constant 0 : i32
    return %c0_i32, %c0_i32_0 : i32, i32
  }
  func.func @transform_5(%arg0: i32) -> (i32, i32) {
    %c0_i32 = arith.constant 0 : i32
    %c0_i32_0 = arith.constant 0 : i32
    %c0_i32_1 = arith.constant 0 : i32
    return %c0_i32, %c0_i32_0 : i32, i32
  }
  func.func @transform_6(%arg0: i32) -> (i32, i32) {
    %c0_i32 = arith.constant 0 : i32
    %c0_i32_0 = arith.constant 0 : i32
    %c0_i32_1 = arith.constant 0 : i32
    return %c0_i32, %c0_i32_0 : i32, i32
  }
  func.func @transform_7(%arg0: i32) -> (i32, i32) {
    %c0_i32 = arith.constant 0 : i32
    %c0_i32_0 = arith.constant 0 : i32
    %c0_i32_1 = arith.constant 0 : i32
    return %c0_i32, %c0_i32_0 : i32, i32
  }
  func.func @transform_8(%arg0: i32) -> (i32, i32) {
    %c0_i32 = arith.constant 0 : i32
    %c0_i32_0 = arith.constant 0 : i32
    %c0_i32_1 = arith.constant 0 : i32
    return %c0_i32, %c0_i32_0 : i32, i32
  }
  func.func @transform_9(%arg0: i32) -> (i32, i32) {
    %c0_i32 = arith.constant 0 : i32
    %c0_i32_0 = arith.constant 0 : i32
    %c0_i32_1 = arith.constant 0 : i32
    return %c0_i32, %c0_i32_0 : i32, i32
  }
  func.func @transform_10(%arg0: i32) -> (i32, i32) {
    %c0_i32 = arith.constant 0 : i32
    %c0_i32_0 = arith.constant 0 : i32
    %c0_i32_1 = arith.constant 0 : i32
    return %c0_i32, %c0_i32_0 : i32, i32
  }
  func.func @transform_11(%arg0: i32) -> (i32, i32) {
    %c0_i32 = arith.constant 0 : i32
    %c0_i32_0 = arith.constant 0 : i32
    %c0_i32_1 = arith.constant 0 : i32
    return %c0_i32, %c0_i32_0 : i32, i32
  }
  func.func @transform_12(%arg0: i32) -> (i32, i32) {
    %c0_i32 = arith.constant 0 : i32
    %c0_i32_0 = arith.constant 0 : i32
    %c0_i32_1 = arith.constant 0 : i32
    return %c0_i32, %c0_i32_0 : i32, i32
  }
  func.func @transform_13(%arg0: i32) -> (i32, i32) {
    %c0_i32 = arith.constant 0 : i32
    %c0_i32_0 = arith.constant 0 : i32
    %c0_i32_1 = arith.constant 0 : i32
    return %c0_i32, %c0_i32_0 : i32, i32
  }
  func.func @transform_14(%arg0: i32) -> (i32, i32) {
    %c0_i32 = arith.constant 0 : i32
    %c0_i32_0 = arith.constant 0 : i32
    %c0_i32_1 = arith.constant 0 : i32
    return %c0_i32, %c0_i32_0 : i32, i32
  }
  func.func @transform_15(%arg0: i32) -> (i32, i32) {
    %c0_i32 = arith.constant 0 : i32
    %c0_i32_0 = arith.constant 0 : i32
    %c0_i32_1 = arith.constant 0 : i32
    return %c0_i32, %c0_i32_0 : i32, i32
  }
  func.func @transform_16(%arg0: i32) -> (i32, i32) {
    %c0_i32 = arith.constant 0 : i32
    %c0_i32_0 = arith.constant 0 : i32
    %c0_i32_1 = arith.constant 0 : i32
    return %c0_i32, %c0_i32_0 : i32, i32
  }
  func.func @transform_17(%arg0: i32) -> (i32, i32) {
    %c0_i32 = arith.constant 0 : i32
    %c0_i32_0 = arith.constant 0 : i32
    %c0_i32_1 = arith.constant 0 : i32
    return %c0_i32, %c0_i32_0 : i32, i32
  }
  func.func @transform_18(%arg0: i32) -> (i32, i32) {
    %c0_i32 = arith.constant 0 : i32
    %c0_i32_0 = arith.constant 0 : i32
    %c0_i32_1 = arith.constant 0 : i32
    return %c0_i32, %c0_i32_0 : i32, i32
  }
  func.func @transform_19(%arg0: i32) -> (i32, i32) {
    %c0_i32 = arith.constant 0 : i32
    %c0_i32_0 = arith.constant 0 : i32
    return %arg0, %c0_i32 : i32, i32
  }
  func.func @transform_20(%arg0: i32) -> (i32, i32) {
    %c0_i32 = arith.constant 0 : i32
    %c0_i32_0 = arith.constant 0 : i32
    return %arg0, %c0_i32 : i32, i32
  }
}

module attributes {stable_mosaic.version = 11 : i64} {
  func.func @r_critic_kernel(%arg0: i32, %arg1: memref<16x48xf32, #tpu.memory_space<vmem>>, %arg2: memref<16x32xf32, #tpu.memory_space<vmem>>, %arg3: memref<16x1xf32, #tpu.memory_space<vmem>>, %arg4: memref<16x16xf32, #tpu.memory_space<vmem>>, %arg5: memref<2x48xf32, #tpu.memory_space<vmem>>, %arg6: memref<48x32xbf16, #tpu.memory_space<vmem>>, %arg7: memref<1x32xf32, #tpu.memory_space<vmem>>, %arg8: memref<2x32xf32, #tpu.memory_space<vmem>>, %arg9: memref<32x32xbf16, #tpu.memory_space<vmem>>, %arg10: memref<1x32xf32, #tpu.memory_space<vmem>>, %arg11: memref<2x32xf32, #tpu.memory_space<vmem>>, %arg12: memref<32x384xbf16, #tpu.memory_space<vmem>>, %arg13: memref<32x32xbf16, #tpu.memory_space<vmem>>, %arg14: memref<1x32xf32, #tpu.memory_space<vmem>>, %arg15: memref<64x512xbf16, #tpu.memory_space<vmem>>, %arg16: memref<1x512xf32, #tpu.memory_space<vmem>>, %arg17: memref<2x32xf32, #tpu.memory_space<vmem>>, %arg18: memref<1x32xf32, #tpu.memory_space<vmem>>, %arg19: memref<1x1xf32, #tpu.memory_space<vmem>>, %arg20: memref<16x1xf32, #tpu.memory_space<vmem>>, %arg21: memref<16x32xf32, #tpu.memory_space<vmem>>) attributes {dimension_semantics = [#tpu.dimension_semantics<parallel>], iteration_bounds = array<i64: 1>, scalar_prefetch = 0 : i64, scratch_operands = 0 : i64, tpu.core_type = #tpu.core_type<tc>, window_params = [{transform_indices = @transform_0, window_bounds = array<i64: 16, 48>}, {transform_indices = @transform_1, window_bounds = array<i64: 16, 32>}, {transform_indices = @transform_2, window_bounds = array<i64: 16, 1>}, {pipeline_mode = #tpu.pipeline_mode<synchronous>, transform_indices = @transform_3, window_bounds = array<i64: 16, 16>}, {pipeline_mode = #tpu.pipeline_mode<synchronous>, transform_indices = @transform_4, window_bounds = array<i64: 2, 48>}, {pipeline_mode = #tpu.pipeline_mode<synchronous>, transform_indices = @transform_5, window_bounds = array<i64: 48, 32>}, {pipeline_mode = #tpu.pipeline_mode<synchronous>, transform_indices = @transform_6, window_bounds = array<i64: 1, 32>}, {pipeline_mode = #tpu.pipeline_mode<synchronous>, transform_indices = @transform_7, window_bounds = array<i64: 2, 32>}, {pipeline_mode = #tpu.pipeline_mode<synchronous>, transform_indices = @transform_8, window_bounds = array<i64: 32, 32>}, {pipeline_mode = #tpu.pipeline_mode<synchronous>, transform_indices = @transform_9, window_bounds = array<i64: 1, 32>}, {pipeline_mode = #tpu.pipeline_mode<synchronous>, transform_indices = @transform_10, window_bounds = array<i64: 2, 32>}, {pipeline_mode = #tpu.pipeline_mode<synchronous>, transform_indices = @transform_11, window_bounds = array<i64: 32, 384>}, {pipeline_mode = #tpu.pipeline_mode<synchronous>, transform_indices = @transform_12, window_bounds = array<i64: 32, 32>}, {pipeline_mode = #tpu.pipeline_mode<synchronous>, transform_indices = @transform_13, window_bounds = array<i64: 1, 32>}, {pipeline_mode = #tpu.pipeline_mode<synchronous>, transform_indices = @transform_14, window_bounds = array<i64: 64, 512>}, {pipeline_mode = #tpu.pipeline_mode<synchronous>, transform_indices = @transform_15, window_bounds = array<i64: 1, 512>}, {pipeline_mode = #tpu.pipeline_mode<synchronous>, transform_indices = @transform_16, window_bounds = array<i64: 2, 32>}, {pipeline_mode = #tpu.pipeline_mode<synchronous>, transform_indices = @transform_17, window_bounds = array<i64: 1, 32>}, {pipeline_mode = #tpu.pipeline_mode<synchronous>, transform_indices = @transform_18, window_bounds = array<i64: 1, 1>}, {transform_indices = @transform_19, window_bounds = array<i64: 16, 1>}, {transform_indices = @transform_20, window_bounds = array<i64: 16, 32>}]} {
    %c0 = arith.constant 0 : index
    %c0_0 = arith.constant 0 : index
    %0 = vector.load %arg1[%c0, %c0_0] : memref<16x48xf32, #tpu.memory_space<vmem>>, vector<16x48xf32>
    %c0_1 = arith.constant 0 : index
    %c0_2 = arith.constant 0 : index
    %1 = vector.load %arg5[%c0_1, %c0_2] : memref<2x48xf32, #tpu.memory_space<vmem>>, vector<1x48xf32>
    %c1 = arith.constant 1 : index
    %c0_3 = arith.constant 0 : index
    %2 = vector.load %arg5[%c1, %c0_3] : memref<2x48xf32, #tpu.memory_space<vmem>>, vector<1x48xf32>
    %cst = arith.constant dense<0.000000e+00> : vector<16xf32>
    %3 = vector.multi_reduction <add>, %0, %cst [1] : vector<16x48xf32> to vector<16xf32>
    %4 = vector.shape_cast %3 : vector<16xf32> to vector<16x1xf32>
    %cst_4 = arith.constant 4.800000e+01 : f32
    %5 = vector.broadcast %cst_4 : f32 to vector<16x1xf32>
    %6 = arith.divf %4, %5 : vector<16x1xf32>
    %7 = vector.broadcast %6 : vector<16x1xf32> to vector<16x48xf32>
    %8 = arith.subf %0, %7 : vector<16x48xf32>
    %9 = arith.mulf %8, %8 : vector<16x48xf32>
    %cst_5 = arith.constant dense<0.000000e+00> : vector<16xf32>
    %10 = vector.multi_reduction <add>, %9, %cst_5 [1] : vector<16x48xf32> to vector<16xf32>
    %11 = vector.shape_cast %10 : vector<16xf32> to vector<16x1xf32>
    %cst_6 = arith.constant 4.800000e+01 : f32
    %12 = vector.broadcast %cst_6 : f32 to vector<16x1xf32>
    %13 = arith.divf %11, %12 : vector<16x1xf32>
    %14 = vector.broadcast %6 : vector<16x1xf32> to vector<16x48xf32>
    %15 = arith.subf %0, %14 : vector<16x48xf32>
    %cst_7 = arith.constant 9.99999974E-6 : f32
    %16 = vector.broadcast %cst_7 : f32 to vector<16x1xf32>
    %17 = arith.addf %13, %16 : vector<16x1xf32>
    %18 = math.rsqrt %17 : vector<16x1xf32>
    %19 = vector.broadcast %18 : vector<16x1xf32> to vector<16x48xf32>
    %20 = arith.mulf %15, %19 : vector<16x48xf32>
    %21 = vector.broadcast %1 : vector<1x48xf32> to vector<16x48xf32>
    %22 = arith.mulf %20, %21 : vector<16x48xf32>
    %23 = vector.broadcast %2 : vector<1x48xf32> to vector<16x48xf32>
    %24 = arith.addf %22, %23 : vector<16x48xf32>
    %c0_8 = arith.constant 0 : index
    %c0_9 = arith.constant 0 : index
    %25 = vector.load %arg6[%c0_8, %c0_9] : memref<48x32xbf16, #tpu.memory_space<vmem>>, vector<48x32xbf16>
    %26 = arith.truncf %24 : vector<16x48xf32> to vector<16x48xbf16>
    %cst_10 = arith.constant dense<0.000000e+00> : vector<16x32xf32>
    %27 = tpu.matmul %26, %25, %cst_10 {dimension_numbers = #tpu.dot_dimension_numbers<[1], [0], [0], [1], [0, 0, 1, 1], [], []>} : vector<16x48xbf16>, vector<48x32xbf16>, vector<16x32xf32> -> vector<16x32xf32>
    %c0_11 = arith.constant 0 : index
    %c0_12 = arith.constant 0 : index
    %28 = vector.load %arg7[%c0_11, %c0_12] : memref<1x32xf32, #tpu.memory_space<vmem>>, vector<1x32xf32>
    %29 = vector.broadcast %28 : vector<1x32xf32> to vector<16x32xf32>
    %30 = arith.addf %27, %29 : vector<16x32xf32>
    %cst_13 = arith.constant 0.000000e+00 : f32
    %31 = vector.broadcast %cst_13 : f32 to vector<16x32xf32>
    %32 = arith.maximumf %30, %31 : vector<16x32xf32>
    %c0_14 = arith.constant 0 : index
    %c0_15 = arith.constant 0 : index
    %33 = vector.load %arg8[%c0_14, %c0_15] : memref<2x32xf32, #tpu.memory_space<vmem>>, vector<1x32xf32>
    %c1_16 = arith.constant 1 : index
    %c0_17 = arith.constant 0 : index
    %34 = vector.load %arg8[%c1_16, %c0_17] : memref<2x32xf32, #tpu.memory_space<vmem>>, vector<1x32xf32>
    %cst_18 = arith.constant dense<0.000000e+00> : vector<16xf32>
    %35 = vector.multi_reduction <add>, %32, %cst_18 [1] : vector<16x32xf32> to vector<16xf32>
    %36 = vector.shape_cast %35 : vector<16xf32> to vector<16x1xf32>
    %cst_19 = arith.constant 3.200000e+01 : f32
    %37 = vector.broadcast %cst_19 : f32 to vector<16x1xf32>
    %38 = arith.divf %36, %37 : vector<16x1xf32>
    %39 = vector.broadcast %38 : vector<16x1xf32> to vector<16x32xf32>
    %40 = arith.subf %32, %39 : vector<16x32xf32>
    %41 = arith.mulf %40, %40 : vector<16x32xf32>
    %cst_20 = arith.constant dense<0.000000e+00> : vector<16xf32>
    %42 = vector.multi_reduction <add>, %41, %cst_20 [1] : vector<16x32xf32> to vector<16xf32>
    %43 = vector.shape_cast %42 : vector<16xf32> to vector<16x1xf32>
    %cst_21 = arith.constant 3.200000e+01 : f32
    %44 = vector.broadcast %cst_21 : f32 to vector<16x1xf32>
    %45 = arith.divf %43, %44 : vector<16x1xf32>
    %46 = vector.broadcast %38 : vector<16x1xf32> to vector<16x32xf32>
    %47 = arith.subf %32, %46 : vector<16x32xf32>
    %cst_22 = arith.constant 9.99999974E-6 : f32
    %48 = vector.broadcast %cst_22 : f32 to vector<16x1xf32>
    %49 = arith.addf %45, %48 : vector<16x1xf32>
    %50 = math.rsqrt %49 : vector<16x1xf32>
    %51 = vector.broadcast %50 : vector<16x1xf32> to vector<16x32xf32>
    %52 = arith.mulf %47, %51 : vector<16x32xf32>
    %53 = vector.broadcast %33 : vector<1x32xf32> to vector<16x32xf32>
    %54 = arith.mulf %52, %53 : vector<16x32xf32>
    %55 = vector.broadcast %34 : vector<1x32xf32> to vector<16x32xf32>
    %56 = arith.addf %54, %55 : vector<16x32xf32>
    %c0_23 = arith.constant 0 : index
    %c0_24 = arith.constant 0 : index
    %57 = vector.load %arg9[%c0_23, %c0_24] : memref<32x32xbf16, #tpu.memory_space<vmem>>, vector<32x32xbf16>
    %58 = arith.truncf %56 : vector<16x32xf32> to vector<16x32xbf16>
    %cst_25 = arith.constant dense<0.000000e+00> : vector<16x32xf32>
    %59 = tpu.matmul %58, %57, %cst_25 {dimension_numbers = #tpu.dot_dimension_numbers<[1], [0], [0], [1], [0, 0, 1, 1], [], []>} : vector<16x32xbf16>, vector<32x32xbf16>, vector<16x32xf32> -> vector<16x32xf32>
    %c0_26 = arith.constant 0 : index
    %c0_27 = arith.constant 0 : index
    %60 = vector.load %arg10[%c0_26, %c0_27] : memref<1x32xf32, #tpu.memory_space<vmem>>, vector<1x32xf32>
    %61 = vector.broadcast %60 : vector<1x32xf32> to vector<16x32xf32>
    %62 = arith.addf %59, %61 : vector<16x32xf32>
    %cst_28 = arith.constant 0.000000e+00 : f32
    %63 = vector.broadcast %cst_28 : f32 to vector<16x32xf32>
    %64 = arith.maximumf %62, %63 : vector<16x32xf32>
    %c0_29 = arith.constant 0 : index
    %c0_30 = arith.constant 0 : index
    %65 = vector.load %arg11[%c0_29, %c0_30] : memref<2x32xf32, #tpu.memory_space<vmem>>, vector<1x32xf32>
    %c1_31 = arith.constant 1 : index
    %c0_32 = arith.constant 0 : index
    %66 = vector.load %arg11[%c1_31, %c0_32] : memref<2x32xf32, #tpu.memory_space<vmem>>, vector<1x32xf32>
    %cst_33 = arith.constant dense<0.000000e+00> : vector<16xf32>
    %67 = vector.multi_reduction <add>, %64, %cst_33 [1] : vector<16x32xf32> to vector<16xf32>
    %68 = vector.shape_cast %67 : vector<16xf32> to vector<16x1xf32>
    %cst_34 = arith.constant 3.200000e+01 : f32
    %69 = vector.broadcast %cst_34 : f32 to vector<16x1xf32>
    %70 = arith.divf %68, %69 : vector<16x1xf32>
    %71 = vector.broadcast %70 : vector<16x1xf32> to vector<16x32xf32>
    %72 = arith.subf %64, %71 : vector<16x32xf32>
    %73 = arith.mulf %72, %72 : vector<16x32xf32>
    %cst_35 = arith.constant dense<0.000000e+00> : vector<16xf32>
    %74 = vector.multi_reduction <add>, %73, %cst_35 [1] : vector<16x32xf32> to vector<16xf32>
    %75 = vector.shape_cast %74 : vector<16xf32> to vector<16x1xf32>
    %cst_36 = arith.constant 3.200000e+01 : f32
    %76 = vector.broadcast %cst_36 : f32 to vector<16x1xf32>
    %77 = arith.divf %75, %76 : vector<16x1xf32>
    %78 = vector.broadcast %70 : vector<16x1xf32> to vector<16x32xf32>
    %79 = arith.subf %64, %78 : vector<16x32xf32>
    %cst_37 = arith.constant 9.99999974E-6 : f32
    %80 = vector.broadcast %cst_37 : f32 to vector<16x1xf32>
    %81 = arith.addf %77, %80 : vector<16x1xf32>
    %82 = math.rsqrt %81 : vector<16x1xf32>
    %83 = vector.broadcast %82 : vector<16x1xf32> to vector<16x32xf32>
    %84 = arith.mulf %79, %83 : vector<16x32xf32>
    %85 = vector.broadcast %65 : vector<1x32xf32> to vector<16x32xf32>
    %86 = arith.mulf %84, %85 : vector<16x32xf32>
    %87 = vector.broadcast %66 : vector<1x32xf32> to vector<16x32xf32>
    %88 = arith.addf %86, %87 : vector<16x32xf32>
    %c0_38 = arith.constant 0 : index
    %c0_39 = arith.constant 0 : index
    %89 = vector.load %arg12[%c0_38, %c0_39] : memref<32x384xbf16, #tpu.memory_space<vmem>>, vector<32x384xbf16>
    %90 = arith.truncf %88 : vector<16x32xf32> to vector<16x32xbf16>
    %cst_40 = arith.constant dense<0.000000e+00> : vector<16x384xf32>
    %91 = tpu.matmul %90, %89, %cst_40 {dimension_numbers = #tpu.dot_dimension_numbers<[1], [0], [0], [1], [0, 0, 1, 1], [], []>} : vector<16x32xbf16>, vector<32x384xbf16>, vector<16x384xf32> -> vector<16x384xf32>
    %92 = vector.extract_strided_slice %91 {offsets = [0, 0], sizes = [16, 32], strides = [1, 1]} : vector<16x384xf32> to vector<16x32xf32>
    %cst_41 = arith.constant 0.176776692 : f32
    %93 = vector.broadcast %cst_41 : f32 to vector<16x32xf32>
    %94 = arith.mulf %92, %93 : vector<16x32xf32>
    %95 = vector.extract_strided_slice %91 {offsets = [0, 128], sizes = [16, 32], strides = [1, 1]} : vector<16x384xf32> to vector<16x32xf32>
    %96 = vector.extract_strided_slice %91 {offsets = [0, 256], sizes = [16, 32], strides = [1, 1]} : vector<16x384xf32> to vector<16x32xf32>
    %97 = arith.truncf %94 : vector<16x32xf32> to vector<16x32xbf16>
    %98 = arith.truncf %95 : vector<16x32xf32> to vector<16x32xbf16>
    %cst_42 = arith.constant dense<0.000000e+00> : vector<16x16xf32>
    %99 = tpu.matmul %97, %98, %cst_42 {dimension_numbers = #tpu.dot_dimension_numbers<[1], [1], [0], [0], [0, 0, 1, 0], [], []>} : vector<16x32xbf16>, vector<16x32xbf16>, vector<16x16xf32> -> vector<16x16xf32>
    %c0_43 = arith.constant 0 : index
    %c0_44 = arith.constant 0 : index
    %100 = vector.load %arg4[%c0_43, %c0_44] : memref<16x16xf32, #tpu.memory_space<vmem>>, vector<16x16xf32>
    %101 = arith.addf %99, %100 : vector<16x16xf32>
    %cst_45 = arith.constant dense<0xFF800000> : vector<16xf32>
    %102 = vector.multi_reduction <maximumf>, %101, %cst_45 [1] : vector<16x16xf32> to vector<16xf32>
    %103 = vector.shape_cast %102 : vector<16xf32> to vector<16x1xf32>
    %104 = vector.broadcast %103 : vector<16x1xf32> to vector<16x16xf32>
    %105 = arith.subf %101, %104 : vector<16x16xf32>
    %106 = math.exp %105 : vector<16x16xf32>
    %cst_46 = arith.constant dense<0.000000e+00> : vector<16xf32>
    %107 = vector.multi_reduction <add>, %106, %cst_46 [1] : vector<16x16xf32> to vector<16xf32>
    %108 = vector.shape_cast %107 : vector<16xf32> to vector<16x1xf32>
    %109 = tpu.reciprocal %108 {approx = true} : vector<16x1xf32> -> vector<16x1xf32>
    %110 = vector.broadcast %109 : vector<16x1xf32> to vector<16x16xf32>
    %111 = arith.mulf %106, %110 : vector<16x16xf32>
    %112 = arith.truncf %111 : vector<16x16xf32> to vector<16x16xbf16>
    %113 = arith.truncf %96 : vector<16x32xf32> to vector<16x32xbf16>
    %cst_47 = arith.constant dense<0.000000e+00> : vector<16x32xf32>
    %114 = tpu.matmul %112, %113, %cst_47 {dimension_numbers = #tpu.dot_dimension_numbers<[1], [0], [0], [1], [0, 0, 1, 1], [], []>} : vector<16x16xbf16>, vector<16x32xbf16>, vector<16x32xf32> -> vector<16x32xf32>
    %c0_48 = arith.constant 0 : index
    %c0_49 = arith.constant 0 : index
    %115 = vector.load %arg13[%c0_48, %c0_49] : memref<32x32xbf16, #tpu.memory_space<vmem>>, vector<32x32xbf16>
    %116 = arith.truncf %114 : vector<16x32xf32> to vector<16x32xbf16>
    %cst_50 = arith.constant dense<0.000000e+00> : vector<16x32xf32>
    %117 = tpu.matmul %116, %115, %cst_50 {dimension_numbers = #tpu.dot_dimension_numbers<[1], [0], [0], [1], [0, 0, 1, 1], [], []>} : vector<16x32xbf16>, vector<32x32xbf16>, vector<16x32xf32> -> vector<16x32xf32>
    %c0_51 = arith.constant 0 : index
    %c0_52 = arith.constant 0 : index
    %118 = vector.load %arg14[%c0_51, %c0_52] : memref<1x32xf32, #tpu.memory_space<vmem>>, vector<1x32xf32>
    %119 = vector.broadcast %118 : vector<1x32xf32> to vector<16x32xf32>
    %120 = arith.addf %117, %119 : vector<16x32xf32>
    %121 = arith.addf %88, %120 : vector<16x32xf32>
    %c0_53 = arith.constant 0 : index
    %c0_54 = arith.constant 0 : index
    %122 = vector.load %arg2[%c0_53, %c0_54] : memref<16x32xf32, #tpu.memory_space<vmem>>, vector<16x32xf32>
    %c0_55 = arith.constant 0 : index
    %c0_56 = arith.constant 0 : index
    %123 = vector.load %arg3[%c0_55, %c0_56] : memref<16x1xf32, #tpu.memory_space<vmem>>, vector<16x1xf32>
    %124 = vector.broadcast %123 : vector<16x1xf32> to vector<16x32xf32>
    %125 = arith.mulf %122, %124 : vector<16x32xf32>
    %126 = tpu.concatenate %121, %125 in 1 : vector<16x32xf32>, vector<16x32xf32> -> vector<16x64xf32>
    %c0_57 = arith.constant 0 : index
    %c0_58 = arith.constant 0 : index
    %127 = vector.load %arg15[%c0_57, %c0_58] : memref<64x512xbf16, #tpu.memory_space<vmem>>, vector<64x512xbf16>
    %128 = arith.truncf %126 : vector<16x64xf32> to vector<16x64xbf16>
    %cst_59 = arith.constant dense<0.000000e+00> : vector<16x512xf32>
    %129 = tpu.matmul %128, %127, %cst_59 {dimension_numbers = #tpu.dot_dimension_numbers<[1], [0], [0], [1], [0, 0, 1, 1], [], []>} : vector<16x64xbf16>, vector<64x512xbf16>, vector<16x512xf32> -> vector<16x512xf32>
    %c0_60 = arith.constant 0 : index
    %c0_61 = arith.constant 0 : index
    %130 = vector.load %arg16[%c0_60, %c0_61] : memref<1x512xf32, #tpu.memory_space<vmem>>, vector<1x512xf32>
    %131 = vector.broadcast %130 : vector<1x512xf32> to vector<16x512xf32>
    %132 = arith.addf %129, %131 : vector<16x512xf32>
    %133 = vector.extract_strided_slice %132 {offsets = [0, 0], sizes = [16, 32], strides = [1, 1]} : vector<16x512xf32> to vector<16x32xf32>
    %134 = arith.negf %133 : vector<16x32xf32>
    %135 = math.exp %134 : vector<16x32xf32>
    %cst_62 = arith.constant 1.000000e+00 : f32
    %136 = vector.broadcast %cst_62 : f32 to vector<16x32xf32>
    %137 = arith.addf %136, %135 : vector<16x32xf32>
    %138 = arith.divf %136, %137 : vector<16x32xf32>
    %139 = vector.extract_strided_slice %132 {offsets = [0, 128], sizes = [16, 32], strides = [1, 1]} : vector<16x512xf32> to vector<16x32xf32>
    %140 = arith.negf %139 : vector<16x32xf32>
    %141 = math.exp %140 : vector<16x32xf32>
    %cst_63 = arith.constant 1.000000e+00 : f32
    %142 = vector.broadcast %cst_63 : f32 to vector<16x32xf32>
    %143 = arith.addf %142, %141 : vector<16x32xf32>
    %144 = arith.divf %142, %143 : vector<16x32xf32>
    %145 = vector.extract_strided_slice %132 {offsets = [0, 256], sizes = [16, 32], strides = [1, 1]} : vector<16x512xf32> to vector<16x32xf32>
    %146 = vector.extract_strided_slice %132 {offsets = [0, 384], sizes = [16, 32], strides = [1, 1]} : vector<16x512xf32> to vector<16x32xf32>
    %147 = arith.mulf %138, %146 : vector<16x32xf32>
    %148 = arith.addf %145, %147 : vector<16x32xf32>
    %149 = math.tanh %148 : vector<16x32xf32>
    %cst_64 = arith.constant 1.000000e+00 : f32
    %150 = vector.broadcast %cst_64 : f32 to vector<16x32xf32>
    %151 = arith.subf %150, %144 : vector<16x32xf32>
    %152 = arith.mulf %151, %149 : vector<16x32xf32>
    %153 = arith.mulf %144, %125 : vector<16x32xf32>
    %154 = arith.addf %152, %153 : vector<16x32xf32>
    %c0_65 = arith.constant 0 : index
    %c0_66 = arith.constant 0 : index
    %155 = vector.load %arg21[%c0_65, %c0_66] : memref<16x32xf32, #tpu.memory_space<vmem>>, vector<16x32xf32>
    tpu.vector_store %arg21[%c0_65, %c0_66], %154 {strides = array<i32>} : memref<16x32xf32, #tpu.memory_space<vmem>>, vector<16x32xf32>,
    %c0_67 = arith.constant 0 : index
    %c0_68 = arith.constant 0 : index
    %156 = vector.load %arg17[%c0_67, %c0_68] : memref<2x32xf32, #tpu.memory_space<vmem>>, vector<1x32xf32>
    %c1_69 = arith.constant 1 : index
    %c0_70 = arith.constant 0 : index
    %157 = vector.load %arg17[%c1_69, %c0_70] : memref<2x32xf32, #tpu.memory_space<vmem>>, vector<1x32xf32>
    %cst_71 = arith.constant dense<0.000000e+00> : vector<16xf32>
    %158 = vector.multi_reduction <add>, %154, %cst_71 [1] : vector<16x32xf32> to vector<16xf32>
    %159 = vector.shape_cast %158 : vector<16xf32> to vector<16x1xf32>
    %cst_72 = arith.constant 3.200000e+01 : f32
    %160 = vector.broadcast %cst_72 : f32 to vector<16x1xf32>
    %161 = arith.divf %159, %160 : vector<16x1xf32>
    %162 = vector.broadcast %161 : vector<16x1xf32> to vector<16x32xf32>
    %163 = arith.subf %154, %162 : vector<16x32xf32>
    %164 = arith.mulf %163, %163 : vector<16x32xf32>
    %cst_73 = arith.constant dense<0.000000e+00> : vector<16xf32>
    %165 = vector.multi_reduction <add>, %164, %cst_73 [1] : vector<16x32xf32> to vector<16xf32>
    %166 = vector.shape_cast %165 : vector<16xf32> to vector<16x1xf32>
    %cst_74 = arith.constant 3.200000e+01 : f32
    %167 = vector.broadcast %cst_74 : f32 to vector<16x1xf32>
    %168 = arith.divf %166, %167 : vector<16x1xf32>
    %169 = vector.broadcast %161 : vector<16x1xf32> to vector<16x32xf32>
    %170 = arith.subf %154, %169 : vector<16x32xf32>
    %cst_75 = arith.constant 9.99999974E-6 : f32
    %171 = vector.broadcast %cst_75 : f32 to vector<16x1xf32>
    %172 = arith.addf %168, %171 : vector<16x1xf32>
    %173 = math.rsqrt %172 : vector<16x1xf32>
    %174 = vector.broadcast %173 : vector<16x1xf32> to vector<16x32xf32>
    %175 = arith.mulf %170, %174 : vector<16x32xf32>
    %176 = vector.broadcast %156 : vector<1x32xf32> to vector<16x32xf32>
    %177 = arith.mulf %175, %176 : vector<16x32xf32>
    %178 = vector.broadcast %157 : vector<1x32xf32> to vector<16x32xf32>
    %179 = arith.addf %177, %178 : vector<16x32xf32>
    %c0_76 = arith.constant 0 : index
    %c0_77 = arith.constant 0 : index
    %180 = vector.load %arg18[%c0_76, %c0_77] : memref<1x32xf32, #tpu.memory_space<vmem>>, vector<1x32xf32>
    %181 = vector.broadcast %180 : vector<1x32xf32> to vector<16x32xf32>
    %182 = arith.mulf %179, %181 : vector<16x32xf32>
    %cst_78 = arith.constant dense<0.000000e+00> : vector<16xf32>
    %183 = vector.multi_reduction <add>, %182, %cst_78 [1] : vector<16x32xf32> to vector<16xf32>
    %184 = vector.shape_cast %183 : vector<16xf32> to vector<16x1xf32>
    %c0_79 = arith.constant 0 : index
    %c0_80 = arith.constant 0 : index
    %185 = vector.load %arg19[%c0_79, %c0_80] : memref<1x1xf32, #tpu.memory_space<vmem>>, vector<1x1xf32>
    %186 = vector.broadcast %185 : vector<1x1xf32> to vector<16x1xf32>
    %187 = arith.addf %184, %186 : vector<16x1xf32>
    %c0_81 = arith.constant 0 : index
    %c0_82 = arith.constant 0 : index
    %188 = vector.load %arg20[%c0_81, %c0_82] : memref<16x1xf32, #tpu.memory_space<vmem>>, vector<16x1xf32>
    tpu.vector_store %arg20[%c0_81, %c0_82], %187 {strides = array<i32>} : memref<16x1xf32, #tpu.memory_space<vmem>>, vector<16x1xf32>,
    return
  }
  func.func @transform_0(%arg0: i32) -> (i32, i32) {
    %c0_i32 = arith.constant 0 : i32
    %c0_i32_0 = arith.constant 0 : i32
    return %arg0, %c0_i32 : i32, i32
  }
  func.func @transform_1(%arg0: i32) -> (i32, i32) {
    %c0_i32 = arith.constant 0 : i32
    %c0_i32_0 = arith.constant 0 : i32
    return %arg0, %c0_i32 : i32, i32
  }
  func.func @transform_2(%arg0: i32) -> (i32, i32) {
    %c0_i32 = arith.constant 0 : i32
    %c0_i32_0 = arith.constant 0 : i32
    return %arg0, %c0_i32 : i32, i32
  }
  func.func @transform_3(%arg0: i32) -> (i32, i32) {
    %c0_i32 = arith.constant 0 : i32
    %c0_i32_0 = arith.constant 0 : i32
    %c0_i32_1 = arith.constant 0 : i32
    return %c0_i32, %c0_i32_0 : i32, i32
  }
  func.func @transform_4(%arg0: i32) -> (i32, i32) {
    %c0_i32 = arith.constant 0 : i32
    %c0_i32_0 = arith.constant 0 : i32
    %c0_i32_1 = arith.constant 0 : i32
    return %c0_i32, %c0_i32_0 : i32, i32
  }
  func.func @transform_5(%arg0: i32) -> (i32, i32) {
    %c0_i32 = arith.constant 0 : i32
    %c0_i32_0 = arith.constant 0 : i32
    %c0_i32_1 = arith.constant 0 : i32
    return %c0_i32, %c0_i32_0 : i32, i32
  }
  func.func @transform_6(%arg0: i32) -> (i32, i32) {
    %c0_i32 = arith.constant 0 : i32
    %c0_i32_0 = arith.constant 0 : i32
    %c0_i32_1 = arith.constant 0 : i32
    return %c0_i32, %c0_i32_0 : i32, i32
  }
  func.func @transform_7(%arg0: i32) -> (i32, i32) {
    %c0_i32 = arith.constant 0 : i32
    %c0_i32_0 = arith.constant 0 : i32
    %c0_i32_1 = arith.constant 0 : i32
    return %c0_i32, %c0_i32_0 : i32, i32
  }
  func.func @transform_8(%arg0: i32) -> (i32, i32) {
    %c0_i32 = arith.constant 0 : i32
    %c0_i32_0 = arith.constant 0 : i32
    %c0_i32_1 = arith.constant 0 : i32
    return %c0_i32, %c0_i32_0 : i32, i32
  }
  func.func @transform_9(%arg0: i32) -> (i32, i32) {
    %c0_i32 = arith.constant 0 : i32
    %c0_i32_0 = arith.constant 0 : i32
    %c0_i32_1 = arith.constant 0 : i32
    return %c0_i32, %c0_i32_0 : i32, i32
  }
  func.func @transform_10(%arg0: i32) -> (i32, i32) {
    %c0_i32 = arith.constant 0 : i32
    %c0_i32_0 = arith.constant 0 : i32
    %c0_i32_1 = arith.constant 0 : i32
    return %c0_i32, %c0_i32_0 : i32, i32
  }
  func.func @transform_11(%arg0: i32) -> (i32, i32) {
    %c0_i32 = arith.constant 0 : i32
    %c0_i32_0 = arith.constant 0 : i32
    %c0_i32_1 = arith.constant 0 : i32
    return %c0_i32, %c0_i32_0 : i32, i32
  }
  func.func @transform_12(%arg0: i32) -> (i32, i32) {
    %c0_i32 = arith.constant 0 : i32
    %c0_i32_0 = arith.constant 0 : i32
    %c0_i32_1 = arith.constant 0 : i32
    return %c0_i32, %c0_i32_0 : i32, i32
  }
  func.func @transform_13(%arg0: i32) -> (i32, i32) {
    %c0_i32 = arith.constant 0 : i32
    %c0_i32_0 = arith.constant 0 : i32
    %c0_i32_1 = arith.constant 0 : i32
    return %c0_i32, %c0_i32_0 : i32, i32
  }
  func.func @transform_14(%arg0: i32) -> (i32, i32) {
    %c0_i32 = arith.constant 0 : i32
    %c0_i32_0 = arith.constant 0 : i32
    %c0_i32_1 = arith.constant 0 : i32
    return %c0_i32, %c0_i32_0 : i32, i32
  }
  func.func @transform_15(%arg0: i32) -> (i32, i32) {
    %c0_i32 = arith.constant 0 : i32
    %c0_i32_0 = arith.constant 0 : i32
    %c0_i32_1 = arith.constant 0 : i32
    return %c0_i32, %c0_i32_0 : i32, i32
  }
  func.func @transform_16(%arg0: i32) -> (i32, i32) {
    %c0_i32 = arith.constant 0 : i32
    %c0_i32_0 = arith.constant 0 : i32
    %c0_i32_1 = arith.constant 0 : i32
    return %c0_i32, %c0_i32_0 : i32, i32
  }
  func.func @transform_17(%arg0: i32) -> (i32, i32) {
    %c0_i32 = arith.constant 0 : i32
    %c0_i32_0 = arith.constant 0 : i32
    %c0_i32_1 = arith.constant 0 : i32
    return %c0_i32, %c0_i32_0 : i32, i32
  }
  func.func @transform_18(%arg0: i32) -> (i32, i32) {
    %c0_i32 = arith.constant 0 : i32
    %c0_i32_0 = arith.constant 0 : i32
    %c0_i32_1 = arith.constant 0 : i32
    return %c0_i32, %c0_i32_0 : i32, i32
  }
  func.func @transform_19(%arg0: i32) -> (i32, i32) {
    %c0_i32 = arith.constant 0 : i32
    %c0_i32_0 = arith.constant 0 : i32
    return %arg0, %c0_i32 : i32, i32
  }
  func.func @transform_20(%arg0: i32) -> (i32, i32) {
    %c0_i32 = arith.constant 0 : i32
    %c0_i32_0 = arith.constant 0 : i32
    return %arg0, %c0_i32 : i32, i32
  }
}

</mosaic_0001>

<llo_original>
// kernel: tpu_custom_call.1
$region0: #{tpu_custom_call.1}
  #allocation0 [shape = 'u32[]', space=smem, size = 0x4, offset = 0x4, fixed_abs, tag = 'smem constant byte address 0x4 - core index']
  #allocation1 [shape = 'u32[144,128]{1,0:T(1,128)}', space=vmem, size = 0x12000, scoped, tag = 'internal scratch']
  #allocation2 [shape = 'f32[1,1]{1,0:T(1,128)S(1)}', space=vmem, size = 0x200, scoped, tag = 'scoped memory for tpu_custom_call.1']
  %s0 = inlined_call_operand.vmem [shape: f32[16,48], index: 0, kind: input, shape index: {}]
  %s1 = inlined_call_operand.vmem [shape: f32[16,32], index: 1, kind: input, shape index: {}]
  %s2 = inlined_call_operand.vmem [shape: f32[16,1], index: 2, kind: input, shape index: {}]
  %s3 = inlined_call_operand.hbm [shape: f32[16,16], index: 3, kind: input, shape index: {}]
  %s4 = inlined_call_operand.vmem [shape: f32[2,48], index: 4, kind: input, shape index: {}]
  %s5 = inlined_call_operand.vmem [shape: bf16[48,32], index: 5, kind: input, shape index: {}]
  %s6 = inlined_call_operand.hbm [shape: f32[1,32], index: 6, kind: input, shape index: {}]
  %s7 = inlined_call_operand.hbm [shape: f32[2,32], index: 7, kind: input, shape index: {}]
  %s8 = inlined_call_operand.hbm [shape: bf16[32,32], index: 8, kind: input, shape index: {}]
  %s9 = inlined_call_operand.hbm [shape: f32[1,32], index: 9, kind: input, shape index: {}]
  %s10 = inlined_call_operand.hbm [shape: f32[2,32], index: 10, kind: input, shape index: {}]
  %s11 = inlined_call_operand.vmem [shape: bf16[32,384], index: 11, kind: input, shape index: {}]
  %s12 = inlined_call_operand.vmem [shape: bf16[32,32], index: 12, kind: input, shape index: {}]
  %s13 = inlined_call_operand.vmem [shape: f32[1,32], index: 13, kind: input, shape index: {}]
  %s14 = inlined_call_operand.hbm [shape: bf16[64,512], index: 14, kind: input, shape index: {}]
  %s15 = inlined_call_operand.vmem [shape: f32[1,512], index: 15, kind: input, shape index: {}]
  %s16 = inlined_call_operand.vmem [shape: f32[2,32], index: 16, kind: input, shape index: {}]
  %s17 = inlined_call_operand.vmem [shape: f32[1,32], index: 17, kind: input, shape index: {}]
  %s18 = inlined_call_operand.<no memory space> [shape: f32[1,1], index: 18, kind: input, shape index: {}]
  %s19 = inlined_call_operand.vmem [shape: f32[16,1], index: 19, kind: output, shape index: {0}]
  %s20 = inlined_call_operand.hbm [shape: f32[16,32], index: 20, kind: output, shape index: {1}]
  %21 = xla_tuple %s19, %s20
  %s22 = sld [smem:[#allocation0]]
  $region122: #{tpu_custom_call.1} parent=0
    _
  %s24 = ssub.s32 1, %s22
  %s25 = scalar_select 0, %s24, %s22
  %v26 = vstv %s18
  %27 = vst [vmem:[#allocation2] sm:$0x1] %v26
  $region1: #{tpu_custom_call.1} parent=0
    #allocation3 [shape = 'u8[8192]{0}', space=vmem, size = 0x2000, scoped, tag = 'input window, operand 3, single buffered']
    #allocation4 [shape = 's32[1]{0}', space=sflag, size = 0x4, scoped, tag = 'scoped memory for tpu_custom_call.1']
    #allocation5 [shape = 's32[1]{0}', space=sflag, size = 0x4, scoped, tag = 'scoped memory for tpu_custom_call.1']
    #allocation6 [shape = 'u8[512]{0}', space=vmem, size = 0x400, scoped, tag = 'input window, operand 6, single buffered']
    #allocation7 [shape = 's32[1]{0}', space=sflag, size = 0x4, scoped, tag = 'scoped memory for tpu_custom_call.1']
    #allocation8 [shape = 'u8[1024]{0}', space=vmem, size = 0x400, scoped, tag = 'input window, operand 7, single buffered']
    #allocation9 [shape = 'u8[8192]{0}', space=vmem, size = 0x2000, scoped, tag = 'input window, operand 8, single buffered']
    #allocation10 [shape = 's32[1]{0}', space=sflag, size = 0x4, scoped, tag = 'scoped memory for tpu_custom_call.1']
    #allocation11 [shape = 'u8[512]{0}', space=vmem, size = 0x400, scoped, tag = 'input window, operand 9, single buffered']
    #allocation12 [shape = 'u8[1024]{0}', space=vmem, size = 0x400, scoped, tag = 'input window, operand 10, single buffered']
    #allocation13 [shape = 's32[1]{0}', space=sflag, size = 0x4, scoped, tag = 'scoped memory for tpu_custom_call.1']
    #allocation14 [shape = 'u8[65536]{0}', space=vmem, size = 0x10000, scoped, tag = 'input window, operand 14, single buffered']
    #allocation15 [shape = 'u8[8192]{0}', space=vmem, size = 0x2000, scoped, tag = 'output window, operand 1, single buffered']
    %28 = vsyncpa [#allocation4], 0
    %29 = vsyncpa [#allocation7], 0
    %30 = vsyncpa [#allocation10], 0
    %31 = vsyncpa [#allocation13], 0
    %32 = vsyncpa [#allocation5], 0
    // Predicated region
    $region2: #{tpu_custom_call.1} parent=1 // pred_check
      _
    $region3: #{tpu_custom_call.1} parent=1 // pred_check_branch
      %34 = sbr.rel (0) target = $region5
    $region4: #{tpu_custom_call.1} parent=1 // pred_region
      _
    $region5: #{tpu_custom_call.1} parent=1 // pred_fallthru
      _
    // Predicated region
    $region6: #{tpu_custom_call.1} parent=1 // pred_check
      _
    $region7: #{tpu_custom_call.1} parent=1 // pred_check_branch
      %36 = sbr.rel (0) target = $region9
    $region8: #{tpu_custom_call.1} parent=1 // pred_region
      _
    $region9: #{tpu_custom_call.1} parent=1 // pred_fallthru
      _
    // Predicated region
    $region10: #{tpu_custom_call.1} parent=1 // pred_check
      _
    $region11: #{tpu_custom_call.1} parent=1 // pred_check_branch
      %38 = sbr.rel (0) target = $region13
    $region12: #{tpu_custom_call.1} parent=1 // pred_region
      _
    $region13: #{tpu_custom_call.1} parent=1 // pred_fallthru
      _
    // Predicated region
    $region14: #{tpu_custom_call.1} parent=1 // pred_check
      _
    $region15: #{tpu_custom_call.1} parent=1 // pred_check_branch
      %40 = sbr.rel (0) target = $region17
    $region16: #{tpu_custom_call.1} parent=1 // pred_region
      %s42 = ssub.s32 256, 256
      %43 = vsyncadd [#allocation4], %s42
      %s44 = sshll.u32 [#allocation3], 4
      %s45 = int_to_ptr.vmem [resolvable:$true] %s44
      %50 = dma.hbm_to_vmem [thread:$0]  %s3, 256, %s45, [#allocation4], 128, 128, 8
    $region17: #{tpu_custom_call.1} parent=1 // pred_fallthru
      _
    // Predicated region
    $region18: #{tpu_custom_call.1} parent=1 // pred_check
      _
    $region19: #{tpu_custom_call.1} parent=1 // pred_check_branch
      %52 = sbr.rel (0) target = $region21
    $region20: #{tpu_custom_call.1} parent=1 // pred_region
      _
    $region21: #{tpu_custom_call.1} parent=1 // pred_fallthru
      _
    // Predicated region
    $region22: #{tpu_custom_call.1} parent=1 // pred_check
      _
    $region23: #{tpu_custom_call.1} parent=1 // pred_check_branch
      %54 = sbr.rel (0) target = $region25
    $region24: #{tpu_custom_call.1} parent=1 // pred_region
      _
    $region25: #{tpu_custom_call.1} parent=1 // pred_fallthru
      _
    // Predicated region
    $region26: #{tpu_custom_call.1} parent=1 // pred_check
      _
    $region27: #{tpu_custom_call.1} parent=1 // pred_check_branch
      %56 = sbr.rel (0) target = $region29
    $region28: #{tpu_custom_call.1} parent=1 // pred_region
      %s58 = ssub.s32 16, 16
      %59 = vsyncadd [#allocation7], %s58
      %s61 = sshll.u32 [#allocation6], 4
      %s62 = int_to_ptr.vmem [resolvable:$true] %s61
      %64 = dma.hbm_to_vmem [thread:$0]  %s6, 16, %s62, [#allocation7]
    $region29: #{tpu_custom_call.1} parent=1 // pred_fallthru
      _
    // Predicated region
    $region30: #{tpu_custom_call.1} parent=1 // pred_check
      _
    $region31: #{tpu_custom_call.1} parent=1 // pred_check_branch
      %66 = sbr.rel (0) target = $region33
    $region32: #{tpu_custom_call.1} parent=1 // pred_region
      %s68 = ssub.s32 32, 32
      %69 = vsyncadd [#allocation7], %s68
      %s71 = sshll.u32 [#allocation8], 4
      %s72 = int_to_ptr.vmem [resolvable:$true] %s71
      %74 = dma.hbm_to_vmem [thread:$0]  %s7, 32, %s72, [#allocation7]
    $region33: #{tpu_custom_call.1} parent=1 // pred_fallthru
      _
    // Predicated region
    $region34: #{tpu_custom_call.1} parent=1 // pred_check
      _
    $region35: #{tpu_custom_call.1} parent=1 // pred_check_branch
      %76 = sbr.rel (0) target = $region37
    $region36: #{tpu_custom_call.1} parent=1 // pred_region
      %s78 = ssub.s32 256, 256
      %79 = vsyncadd [#allocation10], %s78
      %s80 = sshll.u32 [#allocation9], 4
      %s81 = int_to_ptr.vmem [resolvable:$true] %s80
      %86 = dma.hbm_to_vmem [thread:$0]  %s8, 256, %s81, [#allocation10], 64, 64, 4
    $region37: #{tpu_custom_call.1} parent=1 // pred_fallthru
      _
    // Predicated region
    $region38: #{tpu_custom_call.1} parent=1 // pred_check
      _
    $region39: #{tpu_custom_call.1} parent=1 // pred_check_branch
      %88 = sbr.rel (0) target = $region41
    $region40: #{tpu_custom_call.1} parent=1 // pred_region
      %s90 = ssub.s32 16, 16
      %91 = vsyncadd [#allocation10], %s90
      %s93 = sshll.u32 [#allocation11], 4
      %s94 = int_to_ptr.vmem [resolvable:$true] %s93
      %96 = dma.hbm_to_vmem [thread:$0]  %s9, 16, %s94, [#allocation10]
    $region41: #{tpu_custom_call.1} parent=1 // pred_fallthru
      _
    // Predicated region
    $region42: #{tpu_custom_call.1} parent=1 // pred_check
      _
    $region43: #{tpu_custom_call.1} parent=1 // pred_check_branch
      %98 = sbr.rel (0) target = $region45
    $region44: #{tpu_custom_call.1} parent=1 // pred_region
      %s100 = ssub.s32 32, 32
      %101 = vsyncadd [#allocation13], %s100
      %s103 = sshll.u32 [#allocation12], 4
      %s104 = int_to_ptr.vmem [resolvable:$true] %s103
      %106 = dma.hbm_to_vmem [thread:$0]  %s10, 32, %s104, [#allocation13]
    $region45: #{tpu_custom_call.1} parent=1 // pred_fallthru
      _
    // Predicated region
    $region46: #{tpu_custom_call.1} parent=1 // pred_check
      _
    $region47: #{tpu_custom_call.1} parent=1 // pred_check_branch
      %108 = sbr.rel (0) target = $region49
    $region48: #{tpu_custom_call.1} parent=1 // pred_region
      _
    $region49: #{tpu_custom_call.1} parent=1 // pred_fallthru
      _
    // Predicated region
    $region50: #{tpu_custom_call.1} parent=1 // pred_check
      _
    $region51: #{tpu_custom_call.1} parent=1 // pred_check_branch
      %110 = sbr.rel (0) target = $region53
    $region52: #{tpu_custom_call.1} parent=1 // pred_region
      _
    $region53: #{tpu_custom_call.1} parent=1 // pred_fallthru
      _
    // Predicated region
    $region54: #{tpu_custom_call.1} parent=1 // pred_check
      _
    $region55: #{tpu_custom_call.1} parent=1 // pred_check_branch
      %112 = sbr.rel (0) target = $region57
    $region56: #{tpu_custom_call.1} parent=1 // pred_region
      _
    $region57: #{tpu_custom_call.1} parent=1 // pred_fallthru
      _
    // Predicated region
    $region58: #{tpu_custom_call.1} parent=1 // pred_check
      _
    $region59: #{tpu_custom_call.1} parent=1 // pred_check_branch
      %114 = sbr.rel (0) target = $region61
    $region60: #{tpu_custom_call.1} parent=1 // pred_region
      %s116 = ssub.s32 2048, 2048
      %117 = vsyncadd [#allocation13], %s116
      %s118 = sshll.u32 [#allocation14], 4
      %s119 = int_to_ptr.vmem [resolvable:$true] %s118
      %124 = dma.hbm_to_vmem [thread:$0]  %s14, 2048, %s119, [#allocation13], 256, 256, 16
    $region61: #{tpu_custom_call.1} parent=1 // pred_fallthru
      _
    // Predicated region
    $region62: #{tpu_custom_call.1} parent=1 // pred_check
      _
    $region63: #{tpu_custom_call.1} parent=1 // pred_check_branch
      %126 = sbr.rel (0) target = $region65
    $region64: #{tpu_custom_call.1} parent=1 // pred_region
      _
    $region65: #{tpu_custom_call.1} parent=1 // pred_fallthru
      _
    // Predicated region
    $region66: #{tpu_custom_call.1} parent=1 // pred_check
      _
    $region67: #{tpu_custom_call.1} parent=1 // pred_check_branch
      %128 = sbr.rel (0) target = $region69
    $region68: #{tpu_custom_call.1} parent=1 // pred_region
      _
    $region69: #{tpu_custom_call.1} parent=1 // pred_fallthru
      _
    // Predicated region
    $region70: #{tpu_custom_call.1} parent=1 // pred_check
      _
    $region71: #{tpu_custom_call.1} parent=1 // pred_check_branch
      %130 = sbr.rel (0) target = $region73
    $region72: #{tpu_custom_call.1} parent=1 // pred_region
      _
    $region73: #{tpu_custom_call.1} parent=1 // pred_fallthru
      _
    // Predicated region
    $region74: #{tpu_custom_call.1} parent=1 // pred_check
      _
    $region75: #{tpu_custom_call.1} parent=1 // pred_check_branch
      %132 = sbr.rel (0) target = $region77
    $region76: #{tpu_custom_call.1} parent=1 // pred_region
      _
    $region77: #{tpu_custom_call.1} parent=1 // pred_fallthru
      _
    // Predicated region
    $region78: #{tpu_custom_call.1} parent=1 // pred_check
      _
    $region79: #{tpu_custom_call.1} parent=1 // pred_check_branch
      %134 = sbr.rel (0) target = $region81
    $region80: #{tpu_custom_call.1} parent=1 // pred_region
      %135 = dma.done [#allocation4], 256
    $region81: #{tpu_custom_call.1} parent=1 // pred_fallthru
      _
    // Predicated region
    $region82: #{tpu_custom_call.1} parent=1 // pred_check
      _
    $region83: #{tpu_custom_call.1} parent=1 // pred_check_branch
      %137 = sbr.rel (0) target = $region85
    $region84: #{tpu_custom_call.1} parent=1 // pred_region
      %138 = dma.done [#allocation7], 16
    $region85: #{tpu_custom_call.1} parent=1 // pred_fallthru
      _
    // Predicated region
    $region86: #{tpu_custom_call.1} parent=1 // pred_check
      _
    $region87: #{tpu_custom_call.1} parent=1 // pred_check_branch
      %140 = sbr.rel (0) target = $region89
    $region88: #{tpu_custom_call.1} parent=1 // pred_region
      %141 = dma.done [#allocation7], 32
    $region89: #{tpu_custom_call.1} parent=1 // pred_fallthru
      _
    // Predicated region
    $region90: #{tpu_custom_call.1} parent=1 // pred_check
      _
    $region91: #{tpu_custom_call.1} parent=1 // pred_check_branch
      %143 = sbr.rel (0) target = $region93
    $region92: #{tpu_custom_call.1} parent=1 // pred_region
      %144 = dma.done [#allocation10], 256
    $region93: #{tpu_custom_call.1} parent=1 // pred_fallthru
      _
    // Predicated region
    $region94: #{tpu_custom_call.1} parent=1 // pred_check
      _
    $region95: #{tpu_custom_call.1} parent=1 // pred_check_branch
      %146 = sbr.rel (0) target = $region97
    $region96: #{tpu_custom_call.1} parent=1 // pred_region
      %147 = dma.done [#allocation10], 16
    $region97: #{tpu_custom_call.1} parent=1 // pred_fallthru
      _
    // Predicated region
    $region98: #{tpu_custom_call.1} parent=1 // pred_check
      _
    $region99: #{tpu_custom_call.1} parent=1 // pred_check_branch
      %149 = sbr.rel (0) target = $region101
    $region100: #{tpu_custom_call.1} parent=1 // pred_region
      %150 = dma.done [#allocation13], 32
    $region101: #{tpu_custom_call.1} parent=1 // pred_fallthru
      _
    // Predicated region
    $region102: #{tpu_custom_call.1} parent=1 // pred_check
      _
    $region103: #{tpu_custom_call.1} parent=1 // pred_check_branch
      %152 = sbr.rel (0) target = $region105
    $region104: #{tpu_custom_call.1} parent=1 // pred_region
      %153 = dma.done [#allocation13], 2048
    $region105: #{tpu_custom_call.1} parent=1 // pred_fallthru
      _
    %v155 = vld [vmem:[%s0] sm:$0xff]
    %v156 = vld [vmem:[%s0 + $0x8] sm:$0xff]
    %v157 = vld [vmem:[%s4] sm:$0x1]
    %v158 = vld [vmem:[%s4 + $0x1] sm:$0x1]
    %vm159 = vcmask 392192
    %v160 = vsel %vm159, %v155, 0.0
    %161 = vadd.xlane.f32.xlu0 %v160
    %v162 = vpop.xlane.xlu0 %161
    %v163 = vsel %vm159, %v156, 0.0
    %164 = vadd.xlane.f32.xlu0 %v163
    %v165 = vpop.xlane.xlu0 %164
    %v166 = vrcp.pop 48.0
    %v167 = vmul.f32 %v162, %v166
    %v168 = vmul.f32 %v165, %v166
    %v169 = vsub.f32 %v155, %v167
    %v170 = vsub.f32 %v156, %v168
    %v171 = vmul.f32 %v169, %v169
    %v172 = vmul.f32 %v170, %v170
    %v173 = vsel %vm159, %v171, 0.0
    %174 = vadd.xlane.f32.xlu0 %v173
    %v175 = vpop.xlane.xlu0 %174
    %v176 = vsel %vm159, %v172, 0.0
    %177 = vadd.xlane.f32.xlu0 %v176
    %v178 = vpop.xlane.xlu0 %177
    %v179 = vmul.f32 %v175, %v166
    %v180 = vmul.f32 %v178, %v166
    %v181 = vadd.f32 %v179, 1e-05
    %v182 = vadd.f32 %v180, 1e-05
    %v183 = vrsqrt.pop %v181
    %v184 = vrsqrt.pop %v182
    %v185 = vmul.f32 %v169, %v183
    %v186 = vmul.f32 %v170, %v184
    %v187 = vlaneseq
    %v188 = vshrl.u32 %v187, 7
    %v189 = vsub.s32 0, %v188
    %v190 = vrot.slane %v157, %v189
    %v191 = vmul.f32 %v185, %v190
    %v192 = vmul.f32 %v186, %v190
    %v193 = vlaneseq
    %v194 = vshrl.u32 %v193, 7
    %v195 = vsub.s32 0, %v194
    %v196 = vrot.slane %v158, %v195
    %v197 = vadd.f32 %v191, %v196
    %v198 = vadd.f32 %v192, %v196
    %v199 = vld [vmem:[%s5] sm:$0xf]
    %v200 = vld [vmem:[%s5 + $0x4] sm:$0xf]
    %v201 = vld [vmem:[%s5 + $0x8] sm:$0xf]
    %v202 = vld [vmem:[%s5 + $0xc] sm:$0xf]
    %v203 = vld [vmem:[%s5 + $0x10] sm:$0xf]
    %v204 = vld [vmem:[%s5 + $0x14] sm:$0xf]
    %v205 = vpack.c.bf16 %v198, %v197
    %v206 = vld [vmem:[#allocation6] sm:$0x1]
    %v208 = vlaneseq
    %v209 = vshrl.u32 %v208, 7
    %v210 = vsub.s32 0, %v209
    %v211 = vrot.slane %v206, %v210
    %v219 = vunpack.c.l.b16 %v199
    %v220 = vunpack.c.l.b16 %v200
    %v221 = vunpack.c.l.b16 %v201
    %v222 = vunpack.c.l.b16 %v202
    %v223 = vunpack.c.l.b16 %v203
    %v224 = vunpack.c.l.b16 %v204
    %v225 = vpack.c.b16 %v220, %v219
    %v226 = vpack.c.b16 %v222, %v221
    %v227 = vpack.c.b16 %v224, %v223
    %v232 = vsel %vm159, %v205, 0
    %234 = vmatprep.subr.bf16.mxu0 0
    %235 = vmatpush1.bf16.msra.mxu0 %v225
    %236 = vmatprep.subr.bf16.mxu0 0
    %237 = vmatpush1.bf16.msra.mxu0 %v226
    %238 = vmatprep.subr.bf16.mxu0 0
    %239 = vmatpush1.bf16.msra.mxu0 %v227
    %240 = vmatprep.subr.bf16.mxu0 0
    %241 = vmatpush1.bf16.msra.mxu0 0
    %242 = vmatprep.subr.bf16.mxu0 0
    %243 = vmatpush1.bf16.msra.mxu0 0
    %244 = vmatprep.subr.bf16.mxu0 0
    %245 = vmatpush1.bf16.msra.mxu0 0
    %246 = vmatprep.subr.bf16.mxu0 0
    %247 = vmatpush1.bf16.msra.mxu0 0
    %248 = vmatprep.subr.bf16.mxu0 0
    %249 = vmatpush1.bf16.msra.mxu0 0
    %250 = vmatprep.subr.bf16.mxu0 0
    %251 = vmatpush1.bf16.msra.mxu0 0
    %252 = vmatprep.subr.bf16.mxu0 0
    %253 = vmatpush1.bf16.msra.mxu0 0
    %254 = vmatprep.subr.bf16.mxu0 0
    %255 = vmatpush1.bf16.msra.mxu0 0
    %256 = vmatprep.subr.bf16.mxu0 0
    %257 = vmatpush1.bf16.msra.mxu0 0
    %258 = vmatprep.subr.bf16.mxu0 0
    %259 = vmatpush1.bf16.msra.mxu0 0
    %260 = vmatprep.subr.bf16.mxu0 0
    %261 = vmatpush1.bf16.msra.mxu0 0
    %262 = vmatprep.subr.bf16.mxu0 0
    %263 = vmatpush1.bf16.msra.mxu0 0
    %264 = vmatprep.subr.bf16.mxu0 0
    %265 = vmatpush1.bf16.msra.mxu0 0
    %266 = vmatprep.mubr.bf16.mxu0 0
    %267 = vmatmul.mubr.bf16.gmra.mrb[0].mxu0 %v232
    %v268 = vpop.f32.mrb[0].mxu0
    %v269 = vadd.f32 %v211, %v268
    %v270 = vpop.f32.mrb[0].mxu0
    %v271 = vpop.f32.mrb[0].mxu0
    %v272 = vadd.f32 %v211, %v271
    %v273 = vpop.f32.mrb[0].mxu0
    %274 = vdwg.mxu0
    %v275 = vmax.f32 %v269, 0.0
    %v276 = vmax.f32 %v272, 0.0
    %v277 = vld [vmem:[#allocation8] sm:$0x1]
    %v278 = vld [vmem:[#allocation8 + $0x1] sm:$0x1]
    %vm279 = vcmask 261120
    %v280 = vsel %vm279, %v275, 0.0
    %281 = vadd.xlane.f32.xlu0 %v280
    %v282 = vpop.xlane.xlu0 %281
    %v283 = vsel %vm279, %v276, 0.0
    %284 = vadd.xlane.f32.xlu0 %v283
    %v285 = vpop.xlane.xlu0 %284
    %v286 = vrcp.pop 32.0
    %v287 = vmul.f32 %v282, %v286
    %v288 = vmul.f32 %v285, %v286
    %v289 = vsub.f32 %v275, %v287
    %v290 = vsub.f32 %v276, %v288
    %v291 = vmul.f32 %v289, %v289
    %v292 = vmul.f32 %v290, %v290
    %v293 = vsel %vm279, %v291, 0.0
    %294 = vadd.xlane.f32.xlu0 %v293
    %v295 = vpop.xlane.xlu0 %294
    %v296 = vsel %vm279, %v292, 0.0
    %297 = vadd.xlane.f32.xlu0 %v296
    %v298 = vpop.xlane.xlu0 %297
    %v299 = vmul.f32 %v295, %v286
    %v300 = vmul.f32 %v298, %v286
    %v301 = vadd.f32 %v299, 1e-05
    %v302 = vadd.f32 %v300, 1e-05
    %v303 = vrsqrt.pop %v301
    %v304 = vrsqrt.pop %v302
    %v305 = vmul.f32 %v289, %v303
    %v306 = vmul.f32 %v290, %v304
    %v307 = vlaneseq
    %v308 = vshrl.u32 %v307, 7
    %v309 = vsub.s32 0, %v308
    %v310 = vrot.slane %v277, %v309
    %v311 = vmul.f32 %v305, %v310
    %v312 = vmul.f32 %v306, %v310
    %v313 = vlaneseq
    %v314 = vshrl.u32 %v313, 7
    %v315 = vsub.s32 0, %v314
    %v316 = vrot.slane %v278, %v315
    %v317 = vadd.f32 %v311, %v316
    %v318 = vadd.f32 %v312, %v316
    %v319 = vld [vmem:[#allocation9] sm:$0xf]
    %v320 = vld [vmem:[#allocation9 + $0x4] sm:$0xf]
    %v321 = vld [vmem:[#allocation9 + $0x8] sm:$0xf]
    %v322 = vld [vmem:[#allocation9 + $0xc] sm:$0xf]
    %v323 = vpack.c.bf16 %v318, %v317
    %v324 = vld [vmem:[#allocation11] sm:$0x1]
    %v326 = vlaneseq
    %v327 = vshrl.u32 %v326, 7
    %v328 = vsub.s32 0, %v327
    %v329 = vrot.slane %v324, %v328
    %v335 = vunpack.c.l.b16 %v319
    %v336 = vunpack.c.l.b16 %v320
    %v337 = vunpack.c.l.b16 %v321
    %v338 = vunpack.c.l.b16 %v322
    %v339 = vpack.c.b16 %v336, %v335
    %v340 = vpack.c.b16 %v338, %v337
    %v344 = vsel %vm279, %v323, 0
    %346 = vmatprep.subr.bf16.mxu0 0
    %347 = vmatpush1.bf16.msra.mxu0 %v339
    %348 = vmatprep.subr.bf16.mxu0 0
    %349 = vmatpush1.bf16.msra.mxu0 %v340
    %350 = vmatprep.subr.bf16.mxu0 0
    %351 = vmatpush1.bf16.msra.mxu0 0
    %352 = vmatprep.subr.bf16.mxu0 0
    %353 = vmatpush1.bf16.msra.mxu0 0
    %354 = vmatprep.subr.bf16.mxu0 0
    %355 = vmatpush1.bf16.msra.mxu0 0
    %356 = vmatprep.subr.bf16.mxu0 0
    %357 = vmatpush1.bf16.msra.mxu0 0
    %358 = vmatprep.subr.bf16.mxu0 0
    %359 = vmatpush1.bf16.msra.mxu0 0
    %360 = vmatprep.subr.bf16.mxu0 0
    %361 = vmatpush1.bf16.msra.mxu0 0
    %362 = vmatprep.subr.bf16.mxu0 0
    %363 = vmatpush1.bf16.msra.mxu0 0
    %364 = vmatprep.subr.bf16.mxu0 0
    %365 = vmatpush1.bf16.msra.mxu0 0
    %366 = vmatprep.subr.bf16.mxu0 0
    %367 = vmatpush1.bf16.msra.mxu0 0
    %368 = vmatprep.subr.bf16.mxu0 0
    %369 = vmatpush1.bf16.msra.mxu0 0
    %370 = vmatprep.subr.bf16.mxu0 0
    %371 = vmatpush1.bf16.msra.mxu0 0
    %372 = vmatprep.subr.bf16.mxu0 0
    %373 = vmatpush1.bf16.msra.mxu0 0
    %374 = vmatprep.subr.bf16.mxu0 0
    %375 = vmatpush1.bf16.msra.mxu0 0
    %376 = vmatprep.subr.bf16.mxu0 0
    %377 = vmatpush1.bf16.msra.mxu0 0
    %378 = vmatprep.mubr.bf16.mxu0 0
    %379 = vmatmul.mubr.bf16.gmra.mrb[0].mxu0 %v344
    %v380 = vpop.f32.mrb[0].mxu0
    %v381 = vadd.f32 %v329, %v380
    %v382 = vpop.f32.mrb[0].mxu0
    %v383 = vpop.f32.mrb[0].mxu0
    %v384 = vadd.f32 %v329, %v383
    %v385 = vpop.f32.mrb[0].mxu0
    %386 = vdwg.mxu0
    %v387 = vmax.f32 %v381, 0.0
    %v388 = vmax.f32 %v384, 0.0
    %v389 = vld [vmem:[#allocation12] sm:$0x1]
    %v390 = vld [vmem:[#allocation12 + $0x1] sm:$0x1]
    %v391 = vsel %vm279, %v387, 0.0
    %392 = vadd.xlane.f32.xlu0 %v391
    %v393 = vpop.xlane.xlu0 %392
    %v394 = vsel %vm279, %v388, 0.0
    %395 = vadd.xlane.f32.xlu0 %v394
    %v396 = vpop.xlane.xlu0 %395
    %v397 = vmul.f32 %v393, %v286
    %v398 = vmul.f32 %v396, %v286
    %v399 = vsub.f32 %v387, %v397
    %v400 = vsub.f32 %v388, %v398
    %v401 = vmul.f32 %v399, %v399
    %v402 = vmul.f32 %v400, %v400
    %v403 = vsel %vm279, %v401, 0.0
    %404 = vadd.xlane.f32.xlu0 %v403
    %v405 = vpop.xlane.xlu0 %404
    %v406 = vsel %vm279, %v402, 0.0
    %407 = vadd.xlane.f32.xlu0 %v406
    %v408 = vpop.xlane.xlu0 %407
    %v409 = vmul.f32 %v405, %v286
    %v410 = vmul.f32 %v408, %v286
    %v411 = vadd.f32 %v409, 1e-05
    %v412 = vadd.f32 %v410, 1e-05
    %v413 = vrsqrt.pop %v411
    %v414 = vrsqrt.pop %v412
    %v415 = vmul.f32 %v399, %v413
    %v416 = vmul.f32 %v400, %v414
    %v417 = vlaneseq
    %v418 = vshrl.u32 %v417, 7
    %v419 = vsub.s32 0, %v418
    %v420 = vrot.slane %v389, %v419
    %v421 = vmul.f32 %v415, %v420
    %v422 = vmul.f32 %v416, %v420
    %v423 = vlaneseq
    %v424 = vshrl.u32 %v423, 7
    %v425 = vsub.s32 0, %v424
    %v426 = vrot.slane %v390, %v425
    %v427 = vadd.f32 %v421, %v426
    %v428 = vadd.f32 %v422, %v426
    %v429 = vld [vmem:[%s11] sm:$0xff]
    %v430 = vld [vmem:[%s11 + $0x8] sm:$0xf]
    %v431 = vld [vmem:[%s11 + $0xc] sm:$0xff]
    %v432 = vld [vmem:[%s11 + $0x14] sm:$0xf]
    %v433 = vld [vmem:[%s11 + $0x18] sm:$0xff]
    %v434 = vld [vmem:[%s11 + $0x20] sm:$0xf]
    %v435 = vld [vmem:[%s11 + $0x24] sm:$0xff]
    %v436 = vld [vmem:[%s11 + $0x2c] sm:$0xf]
    %v437 = vpack.c.bf16 %v428, %v427
    %v446 = vunpack.c.l.b16 %v429
    %v447 = vunpack.c.h.b16 %v429
    %v448 = vunpack.c.l.b16 %v430
    %v449 = vunpack.c.l.b16 %v431
    %v450 = vunpack.c.h.b16 %v431
    %v451 = vunpack.c.l.b16 %v432
    %v452 = vunpack.c.l.b16 %v433
    %v453 = vunpack.c.h.b16 %v433
    %v454 = vunpack.c.l.b16 %v434
    %v455 = vunpack.c.l.b16 %v435
    %v456 = vunpack.c.h.b16 %v435
    %v457 = vunpack.c.l.b16 %v436
    %v458 = vpack.c.b16 %v449, %v446
    %v459 = vpack.c.b16 %v450, %v447
    %v460 = vpack.c.b16 %v451, %v448
    %v461 = vpack.c.b16 %v455, %v452
    %v462 = vpack.c.b16 %v456, %v453
    %v463 = vpack.c.b16 %v457, %v454
    %v471 = vsel %vm279, %v437, 0
    %473 = vmatprep.subr.bf16.mxu0 %v459
    %474 = vmatpush1.bf16.msra.mxu0 %v458
    %475 = vmatprep.subr.bf16.mxu0 %v462
    %476 = vmatpush1.bf16.msra.mxu0 %v461
    %477 = vmatprep.subr.bf16.mxu0 0
    %478 = vmatpush1.bf16.msra.mxu0 0
    %479 = vmatprep.subr.bf16.mxu0 0
    %480 = vmatpush1.bf16.msra.mxu0 0
    %481 = vmatprep.subr.bf16.mxu0 0
    %482 = vmatpush1.bf16.msra.mxu0 0
    %483 = vmatprep.subr.bf16.mxu0 0
    %484 = vmatpush1.bf16.msra.mxu0 0
    %485 = vmatprep.subr.bf16.mxu0 0
    %486 = vmatpush1.bf16.msra.mxu0 0
    %487 = vmatprep.subr.bf16.mxu0 0
    %488 = vmatpush1.bf16.msra.mxu0 0
    %489 = vmatprep.subr.bf16.mxu0 0
    %490 = vmatpush1.bf16.msra.mxu0 0
    %491 = vmatprep.subr.bf16.mxu0 0
    %492 = vmatpush1.bf16.msra.mxu0 0
    %493 = vmatprep.subr.bf16.mxu0 0
    %494 = vmatpush1.bf16.msra.mxu0 0
    %495 = vmatprep.subr.bf16.mxu0 0
    %496 = vmatpush1.bf16.msra.mxu0 0
    %497 = vmatprep.subr.bf16.mxu0 0
    %498 = vmatpush1.bf16.msra.mxu0 0
    %499 = vmatprep.subr.bf16.mxu0 0
    %500 = vmatpush1.bf16.msra.mxu0 0
    %501 = vmatprep.subr.bf16.mxu0 0
    %502 = vmatpush1.bf16.msra.mxu0 0
    %503 = vmatprep.subr.bf16.mxu0 0
    %504 = vmatpush1.bf16.msra.mxu0 0
    %505 = vmatprep.mubr.bf16.mxu0 0
    %506 = vmatmul.mubr.bf16.gmra.mrb[0].mxu0 %v471
    %v507 = vpop.f32.mrb[0].mxu0
    %v508 = vadd.f32 0.0, %v507
    %v509 = vpop.f32.mrb[0].mxu0
    %v510 = vadd.f32 0.0, %v509
    %v511 = vpop.f32.mrb[0].mxu0
    %v512 = vadd.f32 0.0, %v511
    %v513 = vpop.f32.mrb[0].mxu0
    %v514 = vadd.f32 0.0, %v513
    %515 = vdwg.mxu0
    %516 = vmatprep.subr.bf16.mxu0 0
    %517 = vmatpush1.bf16.msra.mxu0 %v460
    %518 = vmatprep.subr.bf16.mxu0 0
    %519 = vmatpush1.bf16.msra.mxu0 %v463
    %520 = vmatprep.subr.bf16.mxu0 0
    %521 = vmatpush1.bf16.msra.mxu0 0
    %522 = vmatprep.subr.bf16.mxu0 0
    %523 = vmatpush1.bf16.msra.mxu0 0
    %524 = vmatprep.subr.bf16.mxu0 0
    %525 = vmatpush1.bf16.msra.mxu0 0
    %526 = vmatprep.subr.bf16.mxu0 0
    %527 = vmatpush1.bf16.msra.mxu0 0
    %528 = vmatprep.subr.bf16.mxu0 0
    %529 = vmatpush1.bf16.msra.mxu0 0
    %530 = vmatprep.subr.bf16.mxu0 0
    %531 = vmatpush1.bf16.msra.mxu0 0
    %532 = vmatprep.subr.bf16.mxu0 0
    %533 = vmatpush1.bf16.msra.mxu0 0
    %534 = vmatprep.subr.bf16.mxu0 0
    %535 = vmatpush1.bf16.msra.mxu0 0
    %536 = vmatprep.subr.bf16.mxu0 0
    %537 = vmatpush1.bf16.msra.mxu0 0
    %538 = vmatprep.subr.bf16.mxu0 0
    %539 = vmatpush1.bf16.msra.mxu0 0
    %540 = vmatprep.subr.bf16.mxu0 0
    %541 = vmatpush1.bf16.msra.mxu0 0
    %542 = vmatprep.subr.bf16.mxu0 0
    %543 = vmatpush1.bf16.msra.mxu0 0
    %544 = vmatprep.subr.bf16.mxu0 0
    %545 = vmatpush1.bf16.msra.mxu0 0
    %546 = vmatprep.subr.bf16.mxu0 0
    %547 = vmatpush1.bf16.msra.mxu0 0
    %548 = vmatprep.mubr.bf16.mxu0 0
    %549 = vmatmul.mubr.bf16.gmra.mrb[0].mxu0 %v471
    %v550 = vpop.f32.mrb[0].mxu0
    %v551 = vadd.f32 0.0, %v550
    %v552 = vpop.f32.mrb[0].mxu0
    %v553 = vpop.f32.mrb[0].mxu0
    %v554 = vadd.f32 0.0, %v553
    %v555 = vpop.f32.mrb[0].mxu0
    %556 = vdwg.mxu0
    %v557 = vmul.f32 %v508, 0.17677669
    %v558 = vmul.f32 %v512, 0.17677669
    %v559 = vpack.c.bf16 %v558, %v557
    %v560 = vpack.c.bf16 %v514, %v510
    %v561 = vld [vmem:[#allocation3] sm:$0xff]
    %v562 = vld [vmem:[#allocation3 + $0x8] sm:$0xff]
    %v564 = vsel %vm279, %v559, 0
    %v567 = vsel %vm279, %v560, 0
    %569 = vmatprep.subr.bf16.mxu0 0
    %570 = vmatpush1.bf16.xpose.msra.mxu0 %v567
    %571 = vmatprep.subr.bf16.mxu0 0
    %572 = vmatpush1.bf16.xpose.msra.mxu0 0
    %573 = vmatprep.subr.bf16.mxu0 0
    %574 = vmatpush1.bf16.xpose.msra.mxu0 0
    %575 = vmatprep.subr.bf16.mxu0 0
    %576 = vmatpush1.bf16.xpose.msra.mxu0 0
    %577 = vmatprep.subr.bf16.mxu0 0
    %578 = vmatpush1.bf16.xpose.msra.mxu0 0
    %579 = vmatprep.subr.bf16.mxu0 0
    %580 = vmatpush1.bf16.xpose.msra.mxu0 0
    %581 = vmatprep.subr.bf16.mxu0 0
    %582 = vmatpush1.bf16.xpose.msra.mxu0 0
    %583 = vmatprep.subr.bf16.mxu0 0
    %584 = vmatpush1.bf16.xpose.msra.mxu0 0
    %585 = vmatprep.subr.bf16.mxu0 0
    %586 = vmatpush1.bf16.xpose.msra.mxu0 0
    %587 = vmatprep.subr.bf16.mxu0 0
    %588 = vmatpush1.bf16.xpose.msra.mxu0 0
    %589 = vmatprep.subr.bf16.mxu0 0
    %590 = vmatpush1.bf16.xpose.msra.mxu0 0
    %591 = vmatprep.subr.bf16.mxu0 0
    %592 = vmatpush1.bf16.xpose.msra.mxu0 0
    %593 = vmatprep.subr.bf16.mxu0 0
    %594 = vmatpush1.bf16.xpose.msra.mxu0 0
    %595 = vmatprep.subr.bf16.mxu0 0
    %596 = vmatpush1.bf16.xpose.msra.mxu0 0
    %597 = vmatprep.subr.bf16.mxu0 0
    %598 = vmatpush1.bf16.xpose.msra.mxu0 0
    %599 = vmatprep.subr.bf16.mxu0 0
    %600 = vmatpush1.bf16.xpose.msra.mxu0 0
    %601 = vmatprep.mubr.bf16.mxu0 0
    %602 = vmatmul.mubr.bf16.gmra.mrb[0].mxu0 %v564
    %v603 = vpop.f32.mrb[0].mxu0
    %v604 = vadd.f32 %v561, %v603
    %v605 = vpop.f32.mrb[0].mxu0
    %v606 = vpop.f32.mrb[0].mxu0
    %v607 = vadd.f32 %v562, %v606
    %v608 = vpop.f32.mrb[0].mxu0
    %609 = vdwg.mxu0
    %vm610 = vcmask 130048
    %v611 = vsel %vm610, %v604, -inf
    %612 = vmax.xlane.f32.xlu0 %v611
    %v613 = vpop.xlane.xlu0 %612
    %v614 = vsel %vm610, %v607, -inf
    %615 = vmax.xlane.f32.xlu0 %v614
    %v616 = vpop.xlane.xlu0 %615
    %v617 = vsub.f32 %v604, %v613
    %v618 = vsub.f32 %v607, %v616
    %v619 = vmul.f32 %v617, 1.442695
    %v620 = vpow.pop %v619
    %v621 = vmul.f32 %v618, 1.442695
    %v622 = vpow.pop %v621
    %v623 = vsel %vm610, %v620, 0.0
    %624 = vadd.xlane.f32.xlu0 %v623
    %v625 = vpop.xlane.xlu0 %624
    %v626 = vsel %vm610, %v622, 0.0
    %627 = vadd.xlane.f32.xlu0 %v626
    %v628 = vpop.xlane.xlu0 %627
    %v629 = vrcp.pop %v625
    %v630 = vrcp.pop %v628
    %v631 = vmul.f32 %v620, %v629
    %v632 = vmul.f32 %v622, %v630
    %v633 = vpack.c.bf16 %v632, %v631
    %v634 = vpack.c.bf16 %v554, %v551
    %v636 = vsel %vm610, %v633, 0
    %638 = vmatprep.subr.bf16.mxu0 0
    %639 = vmatpush1.bf16.msra.mxu0 %v634
    %640 = vmatprep.subr.bf16.mxu0 0
    %641 = vmatpush1.bf16.msra.mxu0 0
    %642 = vmatprep.subr.bf16.mxu0 0
    %643 = vmatpush1.bf16.msra.mxu0 0
    %644 = vmatprep.subr.bf16.mxu0 0
    %645 = vmatpush1.bf16.msra.mxu0 0
    %646 = vmatprep.subr.bf16.mxu0 0
    %647 = vmatpush1.bf16.msra.mxu0 0
    %648 = vmatprep.subr.bf16.mxu0 0
    %649 = vmatpush1.bf16.msra.mxu0 0
    %650 = vmatprep.subr.bf16.mxu0 0
    %651 = vmatpush1.bf16.msra.mxu0 0
    %652 = vmatprep.subr.bf16.mxu0 0
    %653 = vmatpush1.bf16.msra.mxu0 0
    %654 = vmatprep.subr.bf16.mxu0 0
    %655 = vmatpush1.bf16.msra.mxu0 0
    %656 = vmatprep.subr.bf16.mxu0 0
    %657 = vmatpush1.bf16.msra.mxu0 0
    %658 = vmatprep.subr.bf16.mxu0 0
    %659 = vmatpush1.bf16.msra.mxu0 0
    %660 = vmatprep.subr.bf16.mxu0 0
    %661 = vmatpush1.bf16.msra.mxu0 0
    %662 = vmatprep.subr.bf16.mxu0 0
    %663 = vmatpush1.bf16.msra.mxu0 0
    %664 = vmatprep.subr.bf16.mxu0 0
    %665 = vmatpush1.bf16.msra.mxu0 0
    %666 = vmatprep.subr.bf16.mxu0 0
    %667 = vmatpush1.bf16.msra.mxu0 0
    %668 = vmatprep.subr.bf16.mxu0 0
    %669 = vmatpush1.bf16.msra.mxu0 0
    %670 = vmatprep.mubr.bf16.mxu0 0
    %671 = vmatmul.mubr.bf16.gmra.mrb[0].mxu0 %v636
    %v672 = vpop.f32.mrb[0].mxu0
    %v673 = vadd.f32 0.0, %v672
    %v674 = vpop.f32.mrb[0].mxu0
    %v675 = vpop.f32.mrb[0].mxu0
    %v676 = vadd.f32 0.0, %v675
    %v677 = vpop.f32.mrb[0].mxu0
    %678 = vdwg.mxu0
    %v679 = vld [vmem:[%s12] sm:$0xf]
    %v680 = vld [vmem:[%s12 + $0x4] sm:$0xf]
    %v681 = vld [vmem:[%s12 + $0x8] sm:$0xf]
    %v682 = vld [vmem:[%s12 + $0xc] sm:$0xf]
    %v683 = vpack.c.bf16 %v676, %v673
    %v684 = vld [vmem:[%s13] sm:$0x1]
    %v686 = vlaneseq
    %v687 = vshrl.u32 %v686, 7
    %v688 = vsub.s32 0, %v687
    %v689 = vrot.slane %v684, %v688
    %v695 = vunpack.c.l.b16 %v679
    %v696 = vunpack.c.l.b16 %v680
    %v697 = vunpack.c.l.b16 %v681
    %v698 = vunpack.c.l.b16 %v682
    %v699 = vpack.c.b16 %v696, %v695
    %v700 = vpack.c.b16 %v698, %v697
    %v704 = vsel %vm279, %v683, 0
    %706 = vmatprep.subr.bf16.mxu0 0
    %707 = vmatpush1.bf16.msra.mxu0 %v699
    %708 = vmatprep.subr.bf16.mxu0 0
    %709 = vmatpush1.bf16.msra.mxu0 %v700
    %710 = vmatprep.subr.bf16.mxu0 0
    %711 = vmatpush1.bf16.msra.mxu0 0
    %712 = vmatprep.subr.bf16.mxu0 0
    %713 = vmatpush1.bf16.msra.mxu0 0
    %714 = vmatprep.subr.bf16.mxu0 0
    %715 = vmatpush1.bf16.msra.mxu0 0
    %716 = vmatprep.subr.bf16.mxu0 0
    %717 = vmatpush1.bf16.msra.mxu0 0
    %718 = vmatprep.subr.bf16.mxu0 0
    %719 = vmatpush1.bf16.msra.mxu0 0
    %720 = vmatprep.subr.bf16.mxu0 0
    %721 = vmatpush1.bf16.msra.mxu0 0
    %722 = vmatprep.subr.bf16.mxu0 0
    %723 = vmatpush1.bf16.msra.mxu0 0
    %724 = vmatprep.subr.bf16.mxu0 0
    %725 = vmatpush1.bf16.msra.mxu0 0
    %726 = vmatprep.subr.bf16.mxu0 0
    %727 = vmatpush1.bf16.msra.mxu0 0
    %728 = vmatprep.subr.bf16.mxu0 0
    %729 = vmatpush1.bf16.msra.mxu0 0
    %730 = vmatprep.subr.bf16.mxu0 0
    %731 = vmatpush1.bf16.msra.mxu0 0
    %732 = vmatprep.subr.bf16.mxu0 0
    %733 = vmatpush1.bf16.msra.mxu0 0
    %734 = vmatprep.subr.bf16.mxu0 0
    %735 = vmatpush1.bf16.msra.mxu0 0
    %736 = vmatprep.subr.bf16.mxu0 0
    %737 = vmatpush1.bf16.msra.mxu0 0
    %738 = vmatprep.mubr.bf16.mxu0 0
    %739 = vmatmul.mubr.bf16.gmra.mrb[0].mxu0 %v704
    %v740 = vpop.f32.mrb[0].mxu0
    %v741 = vadd.f32 %v689, %v740
    %v742 = vpop.f32.mrb[0].mxu0
    %v743 = vpop.f32.mrb[0].mxu0
    %v744 = vadd.f32 %v689, %v743
    %v745 = vpop.f32.mrb[0].mxu0
    %746 = vdwg.mxu0
    %v747 = vadd.f32 %v427, %v741
    %v748 = vadd.f32 %v428, %v744
    %v749 = vld [vmem:[%s1] sm:$0xff]
    %v750 = vld [vmem:[%s1 + $0x8] sm:$0xff]
    %v751 = vld [vmem:[%s2] sm:$0xff]
    %v752 = vld [vmem:[%s2 + $0x8] sm:$0xff]
    %754 = vset.pattern.permute.xlu0 0
    %755 = vperm.xlu0 %754, %v751
    %v756 = vpop.permute.xlu0 %755
    %759 = vset.pattern.permute.xlu0 0
    %760 = vperm.xlu0 %759, %v752
    %v761 = vpop.permute.xlu0 %760
    %v763 = vmul.f32 %v749, %v756
    %v764 = vmul.f32 %v750, %v761
    %767 = vrot.lane.b32.xlu0 %v763, 32
    %v768 = vpop.permute.xlu0 %767
    %769 = vrot.lane.b32.xlu0 %v764, 32
    %v770 = vpop.permute.xlu0 %769
    %v773 = vsel %vm279, %v747, %v768
    %v774 = vsel %vm279, %v748, %v770
    %v775 = vld [vmem:[#allocation14] sm:$0xff]
    %v776 = vld [vmem:[#allocation14 + $0x8] sm:$0xff]
    %v777 = vld [vmem:[#allocation14 + $0x10] sm:$0xff]
    %v778 = vld [vmem:[#allocation14 + $0x18] sm:$0xff]
    %v779 = vld [vmem:[#allocation14 + $0x20] sm:$0xff]
    %v780 = vld [vmem:[#allocation14 + $0x28] sm:$0xff]
    %v781 = vld [vmem:[#allocation14 + $0x30] sm:$0xff]
    %v782 = vld [vmem:[#allocation14 + $0x38] sm:$0xff]
    %v783 = vld [vmem:[#allocation14 + $0x40] sm:$0xff]
    %v784 = vld [vmem:[#allocation14 + $0x48] sm:$0xff]
    %v785 = vld [vmem:[#allocation14 + $0x50] sm:$0xff]
    %v786 = vld [vmem:[#allocation14 + $0x58] sm:$0xff]
    %v787 = vld [vmem:[#allocation14 + $0x60] sm:$0xff]
    %v788 = vld [vmem:[#allocation14 + $0x68] sm:$0xff]
    %v789 = vld [vmem:[#allocation14 + $0x70] sm:$0xff]
    %v790 = vld [vmem:[#allocation14 + $0x78] sm:$0xff]
    %v791 = vpack.c.bf16 %v774, %v773
    %v792 = vld [vmem:[%s15] sm:$0xf]
    %v794 = vlaneseq
    %v795 = vshrl.u32 %v794, 7
    %v796 = vsub.s32 0, %v795
    %v797 = vrot.slane %v792, %v796
    %v798 = vlaneseq
    %v799 = vshrl.u32 %v798, 7
    %v800 = vsub.s32 1, %v799
    %v801 = vrot.slane %v792, %v800
    %v802 = vlaneseq
    %v803 = vshrl.u32 %v802, 7
    %v804 = vsub.s32 2, %v803
    %v805 = vrot.slane %v792, %v804
    %v806 = vlaneseq
    %v807 = vshrl.u32 %v806, 7
    %v808 = vsub.s32 3, %v807
    %v809 = vrot.slane %v792, %v808
    %v830 = vunpack.c.l.b16 %v775
    %v831 = vunpack.c.h.b16 %v775
    %v832 = vunpack.c.l.b16 %v776
    %v833 = vunpack.c.h.b16 %v776
    %v834 = vunpack.c.l.b16 %v777
    %v835 = vunpack.c.h.b16 %v777
    %v836 = vunpack.c.l.b16 %v778
    %v837 = vunpack.c.h.b16 %v778
    %v838 = vunpack.c.l.b16 %v779
    %v839 = vunpack.c.h.b16 %v779
    %v840 = vunpack.c.l.b16 %v780
    %v841 = vunpack.c.h.b16 %v780
    %v842 = vunpack.c.l.b16 %v781
    %v843 = vunpack.c.h.b16 %v781
    %v844 = vunpack.c.l.b16 %v782
    %v845 = vunpack.c.h.b16 %v782
    %v846 = vunpack.c.l.b16 %v783
    %v847 = vunpack.c.h.b16 %v783
    %v848 = vunpack.c.l.b16 %v784
    %v849 = vunpack.c.h.b16 %v784
    %v850 = vunpack.c.l.b16 %v785
    %v851 = vunpack.c.h.b16 %v785
    %v852 = vunpack.c.l.b16 %v786
    %v853 = vunpack.c.h.b16 %v786
    %v854 = vunpack.c.l.b16 %v787
    %v855 = vunpack.c.h.b16 %v787
    %v856 = vunpack.c.l.b16 %v788
    %v857 = vunpack.c.h.b16 %v788
    %v858 = vunpack.c.l.b16 %v789
    %v859 = vunpack.c.h.b16 %v789
    %v860 = vunpack.c.l.b16 %v790
    %v861 = vunpack.c.h.b16 %v790
    %v862 = vpack.c.b16 %v834, %v830
    %v863 = vpack.c.b16 %v835, %v831
    %v864 = vpack.c.b16 %v836, %v832
    %v865 = vpack.c.b16 %v837, %v833
    %v866 = vpack.c.b16 %v842, %v838
    %v867 = vpack.c.b16 %v843, %v839
    %v868 = vpack.c.b16 %v844, %v840
    %v869 = vpack.c.b16 %v845, %v841
    %v870 = vpack.c.b16 %v850, %v846
    %v871 = vpack.c.b16 %v851, %v847
    %v872 = vpack.c.b16 %v852, %v848
    %v873 = vpack.c.b16 %v853, %v849
    %v874 = vpack.c.b16 %v858, %v854
    %v875 = vpack.c.b16 %v859, %v855
    %v876 = vpack.c.b16 %v860, %v856
    %v877 = vpack.c.b16 %v861, %v857
    %vm894 = vcmask 523264
    %v896 = vsel %vm894, %v791, 0
    %898 = vmatprep.subr.bf16.mxu0 %v863
    %899 = vmatpush1.bf16.msra.mxu0 %v862
    %900 = vmatprep.subr.bf16.mxu0 %v867
    %901 = vmatpush1.bf16.msra.mxu0 %v866
    %902 = vmatprep.subr.bf16.mxu0 %v871
    %903 = vmatpush1.bf16.msra.mxu0 %v870
    %904 = vmatprep.subr.bf16.mxu0 %v875
    %905 = vmatpush1.bf16.msra.mxu0 %v874
    %906 = vmatprep.subr.bf16.mxu0 0
    %907 = vmatpush1.bf16.msra.mxu0 0
    %908 = vmatprep.subr.bf16.mxu0 0
    %909 = vmatpush1.bf16.msra.mxu0 0
    %910 = vmatprep.subr.bf16.mxu0 0
    %911 = vmatpush1.bf16.msra.mxu0 0
    %912 = vmatprep.subr.bf16.mxu0 0
    %913 = vmatpush1.bf16.msra.mxu0 0
    %914 = vmatprep.subr.bf16.mxu0 0
    %915 = vmatpush1.bf16.msra.mxu0 0
    %916 = vmatprep.subr.bf16.mxu0 0
    %917 = vmatpush1.bf16.msra.mxu0 0
    %918 = vmatprep.subr.bf16.mxu0 0
    %919 = vmatpush1.bf16.msra.mxu0 0
    %920 = vmatprep.subr.bf16.mxu0 0
    %921 = vmatpush1.bf16.msra.mxu0 0
    %922 = vmatprep.subr.bf16.mxu0 0
    %923 = vmatpush1.bf16.msra.mxu0 0
    %924 = vmatprep.subr.bf16.mxu0 0
    %925 = vmatpush1.bf16.msra.mxu0 0
    %926 = vmatprep.subr.bf16.mxu0 0
    %927 = vmatpush1.bf16.msra.mxu0 0
    %928 = vmatprep.subr.bf16.mxu0 0
    %929 = vmatpush1.bf16.msra.mxu0 0
    %930 = vmatprep.mubr.bf16.mxu0 0
    %931 = vmatmul.mubr.bf16.gmra.mrb[0].mxu0 %v896
    %v932 = vpop.f32.mrb[0].mxu0
    %v933 = vadd.f32 %v797, %v932
    %v934 = vpop.f32.mrb[0].mxu0
    %v935 = vadd.f32 %v801, %v934
    %v936 = vpop.f32.mrb[0].mxu0
    %v937 = vadd.f32 %v797, %v936
    %v938 = vpop.f32.mrb[0].mxu0
    %v939 = vadd.f32 %v801, %v938
    %940 = vdwg.mxu0
    %941 = vmatprep.subr.bf16.mxu0 %v865
    %942 = vmatpush1.bf16.msra.mxu0 %v864
    %943 = vmatprep.subr.bf16.mxu0 %v869
    %944 = vmatpush1.bf16.msra.mxu0 %v868
    %945 = vmatprep.subr.bf16.mxu0 %v873
    %946 = vmatpush1.bf16.msra.mxu0 %v872
    %947 = vmatprep.subr.bf16.mxu0 %v877
    %948 = vmatpush1.bf16.msra.mxu0 %v876
    %949 = vmatprep.subr.bf16.mxu0 0
    %950 = vmatpush1.bf16.msra.mxu0 0
    %951 = vmatprep.subr.bf16.mxu0 0
    %952 = vmatpush1.bf16.msra.mxu0 0
    %953 = vmatprep.subr.bf16.mxu0 0
    %954 = vmatpush1.bf16.msra.mxu0 0
    %955 = vmatprep.subr.bf16.mxu0 0
    %956 = vmatpush1.bf16.msra.mxu0 0
    %957 = vmatprep.subr.bf16.mxu0 0
    %958 = vmatpush1.bf16.msra.mxu0 0
    %959 = vmatprep.subr.bf16.mxu0 0
    %960 = vmatpush1.bf16.msra.mxu0 0
    %961 = vmatprep.subr.bf16.mxu0 0
    %962 = vmatpush1.bf16.msra.mxu0 0
    %963 = vmatprep.subr.bf16.mxu0 0
    %964 = vmatpush1.bf16.msra.mxu0 0
    %965 = vmatprep.subr.bf16.mxu0 0
    %966 = vmatpush1.bf16.msra.mxu0 0
    %967 = vmatprep.subr.bf16.mxu0 0
    %968 = vmatpush1.bf16.msra.mxu0 0
    %969 = vmatprep.subr.bf16.mxu0 0
    %970 = vmatpush1.bf16.msra.mxu0 0
    %971 = vmatprep.subr.bf16.mxu0 0
    %972 = vmatpush1.bf16.msra.mxu0 0
    %973 = vmatprep.mubr.bf16.mxu0 0
    %974 = vmatmul.mubr.bf16.gmra.mrb[0].mxu0 %v896
    %v975 = vpop.f32.mrb[0].mxu0
    %v976 = vadd.f32 %v805, %v975
    %v977 = vpop.f32.mrb[0].mxu0
    %v978 = vadd.f32 %v809, %v977
    %v979 = vpop.f32.mrb[0].mxu0
    %v980 = vadd.f32 %v805, %v979
    %v981 = vpop.f32.mrb[0].mxu0
    %v982 = vadd.f32 %v809, %v981
    %983 = vdwg.mxu0
    %v984 = vxor.u32 %v933, 2147483648
    %v985 = vxor.u32 %v937, 2147483648
    %v986 = vmul.f32 %v984, 1.442695
    %v987 = vpow.pop %v986
    %v988 = vmul.f32 %v985, 1.442695
    %v989 = vpow.pop %v988
    %v990 = vadd.f32 %v987, 1.0
    %v991 = vadd.f32 %v989, 1.0
    %v992 = vrcp.pop %v990
    %v993 = vmul.f32 1.0, %v992
    %v994 = vrcp.pop %v991
    %v995 = vmul.f32 1.0, %v994
    %v996 = vxor.u32 %v935, 2147483648
    %v997 = vxor.u32 %v939, 2147483648
    %v998 = vmul.f32 %v996, 1.442695
    %v999 = vpow.pop %v998
    %v1000 = vmul.f32 %v997, 1.442695
    %v1001 = vpow.pop %v1000
    %v1002 = vadd.f32 %v999, 1.0
    %v1003 = vadd.f32 %v1001, 1.0
    %v1004 = vrcp.pop %v1002
    %v1005 = vmul.f32 1.0, %v1004
    %v1006 = vrcp.pop %v1003
    %v1007 = vmul.f32 1.0, %v1006
    %v1008 = vmul.f32 %v993, %v978
    %v1009 = vmul.f32 %v995, %v982
    %v1010 = vadd.f32 %v976, %v1008
    %v1011 = vadd.f32 %v980, %v1009
    %v1012 = vtanh.pop %v1010
    %v1013 = vtanh.pop %v1011
    %v1014 = vsub.f32 1.0, %v1005
    %v1015 = vsub.f32 1.0, %v1007
    %v1016 = vmul.f32 %v1014, %v1012
    %v1017 = vmul.f32 %v1015, %v1013
    %v1018 = vmul.f32 %v1005, %v763
    %v1019 = vmul.f32 %v1007, %v764
    %v1020 = vadd.f32 %v1016, %v1018
    %v1021 = vadd.f32 %v1017, %v1019
    %1022 = vst.msk [vmem:[#allocation15] sm:$0xff] %vm279, %v1020
    %1023 = vst.msk [vmem:[#allocation15 + $0x8] sm:$0xff] %vm279, %v1021
    %v1024 = vld [vmem:[%s16] sm:$0x1]
    %v1025 = vld [vmem:[%s16 + $0x1] sm:$0x1]
    %v1026 = vsel %vm279, %v1020, 0.0
    %1027 = vadd.xlane.f32.xlu0 %v1026
    %v1028 = vpop.xlane.xlu0 %1027
    %v1029 = vsel %vm279, %v1021, 0.0
    %1030 = vadd.xlane.f32.xlu0 %v1029
    %v1031 = vpop.xlane.xlu0 %1030
    %v1032 = vmul.f32 %v1028, %v286
    %v1033 = vmul.f32 %v1031, %v286
    %v1034 = vsub.f32 %v1020, %v1032
    %v1035 = vsub.f32 %v1021, %v1033
    %v1036 = vmul.f32 %v1034, %v1034
    %v1037 = vmul.f32 %v1035, %v1035
    %v1038 = vsel %vm279, %v1036, 0.0
    %1039 = vadd.xlane.f32.xlu0 %v1038
    %v1040 = vpop.xlane.xlu0 %1039
    %v1041 = vsel %vm279, %v1037, 0.0
    %1042 = vadd.xlane.f32.xlu0 %v1041
    %v1043 = vpop.xlane.xlu0 %1042
    %v1044 = vmul.f32 %v1040, %v286
    %v1045 = vmul.f32 %v1043, %v286
    %v1046 = vadd.f32 %v1044, 1e-05
    %v1047 = vadd.f32 %v1045, 1e-05
    %v1048 = vrsqrt.pop %v1046
    %v1049 = vrsqrt.pop %v1047
    %v1050 = vmul.f32 %v1034, %v1048
    %v1051 = vmul.f32 %v1035, %v1049
    %v1052 = vlaneseq
    %v1053 = vshrl.u32 %v1052, 7
    %v1054 = vsub.s32 0, %v1053
    %v1055 = vrot.slane %v1024, %v1054
    %v1056 = vmul.f32 %v1050, %v1055
    %v1057 = vmul.f32 %v1051, %v1055
    %v1058 = vlaneseq
    %v1059 = vshrl.u32 %v1058, 7
    %v1060 = vsub.s32 0, %v1059
    %v1061 = vrot.slane %v1025, %v1060
    %v1062 = vadd.f32 %v1056, %v1061
    %v1063 = vadd.f32 %v1057, %v1061
    %v1064 = vld [vmem:[%s17] sm:$0x1]
    %v1066 = vlaneseq
    %v1067 = vshrl.u32 %v1066, 7
    %v1068 = vsub.s32 0, %v1067
    %v1069 = vrot.slane %v1064, %v1068
    %v1071 = vmul.f32 %v1062, %v1069
    %v1072 = vmul.f32 %v1063, %v1069
    %v1073 = vsel %vm279, %v1071, 0.0
    %1074 = vadd.xlane.f32.xlu0 %v1073
    %v1075 = vpop.xlane.xlu0 %1074
    %v1076 = vsel %vm279, %v1072, 0.0
    %1077 = vadd.xlane.f32.xlu0 %v1076
    %v1078 = vpop.xlane.xlu0 %1077
    %v1079 = vld [vmem:[#allocation2] sm:$0x1]
    %v1081 = vlaneseq
    %v1082 = vshrl.u32 %v1081, 7
    %v1083 = vsub.s32 0, %v1082
    %v1084 = vrot.slane %v1079, %v1083
    %v1086 = vadd.f32 %v1075, %v1084
    %v1087 = vadd.f32 %v1078, %v1084
    %vm1088 = vcmask 7168
    %1089 = vst.msk [vmem:[%s19] sm:$0xff] %vm1088, %v1086
    %1090 = vst.msk [vmem:[%s19 + $0x8] sm:$0xff] %vm1088, %v1087
    // Predicated region
    $region106: #{tpu_custom_call.1} parent=1 // pred_check
      _
    $region107: #{tpu_custom_call.1} parent=1 // pred_check_branch
      %1092 = sbr.rel (0) target = $region109
    $region108: #{tpu_custom_call.1} parent=1 // pred_region
      _
    $region109: #{tpu_custom_call.1} parent=1 // pred_fallthru
      _
    // Predicated region
    $region110: #{tpu_custom_call.1} parent=1 // pred_check
      _
    $region111: #{tpu_custom_call.1} parent=1 // pred_check_branch
      %1094 = sbr.rel (0) target = $region113
    $region112: #{tpu_custom_call.1} parent=1 // pred_region
      %s1096 = ssub.s32 256, 256
      %1097 = vsyncadd [#allocation5], %s1096
      %s1098 = sshll.u32 [#allocation15], 4
      %s1099 = int_to_ptr.vmem [resolvable:$true] %s1098
      %1104 = dma.vmem_to_hbm [thread:$0]  %s1099, 256, %s20, [#allocation5], 128, 128, 8
    $region113: #{tpu_custom_call.1} parent=1 // pred_fallthru
      _
    // Predicated region
    $region114: #{tpu_custom_call.1} parent=1 // pred_check
      _
    $region115: #{tpu_custom_call.1} parent=1 // pred_check_branch
      %1106 = sbr.rel (0) target = $region117
    $region116: #{tpu_custom_call.1} parent=1 // pred_region
      _
    $region117: #{tpu_custom_call.1} parent=1 // pred_fallthru
      _
    // Predicated region
    $region118: #{tpu_custom_call.1} parent=1 // pred_check
      _
    $region119: #{tpu_custom_call.1} parent=1 // pred_check_branch
      %1108 = sbr.rel (0) target = $region121
    $region120: #{tpu_custom_call.1} parent=1 // pred_region
      %1109 = dma.done [#allocation5], 256
    $region121: #{tpu_custom_call.1} parent=1 // pred_fallthru
      _
    %1110 = vsyncpa [#allocation4], 1
    %1111 = vsyncpa [#allocation7], 1
    %1112 = vsyncpa [#allocation10], 1
    %1113 = vsyncpa [#allocation13], 1
    %1114 = vsyncpa [#allocation5], 1

// kernel: tpu_custom_call.1
$region0: #{tpu_custom_call.1}
  #allocation0 [shape = 'u32[]', space=smem, size = 0x4, offset = 0x4, fixed_abs, tag = 'smem constant byte address 0x4 - core index']
  #allocation1 [shape = 'u32[144,128]{1,0:T(1,128)}', space=vmem, size = 0x12000, scoped, tag = 'internal scratch']
  #allocation2 [shape = 'f32[1,1]{1,0:T(1,128)S(1)}', space=vmem, size = 0x200, scoped, tag = 'scoped memory for tpu_custom_call.1']
  %s0 = inlined_call_operand.vmem [shape: f32[16,48], index: 0, kind: input, shape index: {}]
  %s1 = inlined_call_operand.vmem [shape: f32[16,32], index: 1, kind: input, shape index: {}]
  %s2 = inlined_call_operand.vmem [shape: f32[16,1], index: 2, kind: input, shape index: {}]
  %s3 = inlined_call_operand.hbm [shape: f32[16,16], index: 3, kind: input, shape index: {}]
  %s4 = inlined_call_operand.vmem [shape: f32[2,48], index: 4, kind: input, shape index: {}]
  %s5 = inlined_call_operand.vmem [shape: bf16[48,32], index: 5, kind: input, shape index: {}]
  %s6 = inlined_call_operand.hbm [shape: f32[1,32], index: 6, kind: input, shape index: {}]
  %s7 = inlined_call_operand.hbm [shape: f32[2,32], index: 7, kind: input, shape index: {}]
  %s8 = inlined_call_operand.hbm [shape: bf16[32,32], index: 8, kind: input, shape index: {}]
  %s9 = inlined_call_operand.hbm [shape: f32[1,32], index: 9, kind: input, shape index: {}]
  %s10 = inlined_call_operand.hbm [shape: f32[2,32], index: 10, kind: input, shape index: {}]
  %s11 = inlined_call_operand.vmem [shape: bf16[32,384], index: 11, kind: input, shape index: {}]
  %s12 = inlined_call_operand.vmem [shape: bf16[32,32], index: 12, kind: input, shape index: {}]
  %s13 = inlined_call_operand.vmem [shape: f32[1,32], index: 13, kind: input, shape index: {}]
  %s14 = inlined_call_operand.hbm [shape: bf16[64,512], index: 14, kind: input, shape index: {}]
  %s15 = inlined_call_operand.vmem [shape: f32[1,512], index: 15, kind: input, shape index: {}]
  %s16 = inlined_call_operand.vmem [shape: f32[2,32], index: 16, kind: input, shape index: {}]
  %s17 = inlined_call_operand.vmem [shape: f32[1,32], index: 17, kind: input, shape index: {}]
  %s18 = inlined_call_operand.<no memory space> [shape: f32[1,1], index: 18, kind: input, shape index: {}]
  %s19 = inlined_call_operand.vmem [shape: f32[16,1], index: 19, kind: output, shape index: {0}]
  %s20 = inlined_call_operand.hbm [shape: f32[16,32], index: 20, kind: output, shape index: {1}]
  %21 = xla_tuple %s19, %s20
  %s22 = sld [smem:[#allocation0]]
  $region122: #{tpu_custom_call.1} parent=0
    _
  %s24 = ssub.s32 1, %s22
  %s25 = scalar_select 0, %s24, %s22
  %v26 = vstv %s18
  %27 = vst [vmem:[#allocation2] sm:$0x1] %v26
  $region1: #{tpu_custom_call.1} parent=0
    #allocation3 [shape = 'u8[8192]{0}', space=vmem, size = 0x2000, scoped, tag = 'input window, operand 3, single buffered']
    #allocation4 [shape = 's32[1]{0}', space=sflag, size = 0x4, scoped, tag = 'scoped memory for tpu_custom_call.1']
    #allocation5 [shape = 's32[1]{0}', space=sflag, size = 0x4, scoped, tag = 'scoped memory for tpu_custom_call.1']
    #allocation6 [shape = 'u8[512]{0}', space=vmem, size = 0x400, scoped, tag = 'input window, operand 6, single buffered']
    #allocation7 [shape = 's32[1]{0}', space=sflag, size = 0x4, scoped, tag = 'scoped memory for tpu_custom_call.1']
    #allocation8 [shape = 'u8[1024]{0}', space=vmem, size = 0x400, scoped, tag = 'input window, operand 7, single buffered']
    #allocation9 [shape = 'u8[8192]{0}', space=vmem, size = 0x2000, scoped, tag = 'input window, operand 8, single buffered']
    #allocation10 [shape = 's32[1]{0}', space=sflag, size = 0x4, scoped, tag = 'scoped memory for tpu_custom_call.1']
    #allocation11 [shape = 'u8[512]{0}', space=vmem, size = 0x400, scoped, tag = 'input window, operand 9, single buffered']
    #allocation12 [shape = 'u8[1024]{0}', space=vmem, size = 0x400, scoped, tag = 'input window, operand 10, single buffered']
    #allocation13 [shape = 's32[1]{0}', space=sflag, size = 0x4, scoped, tag = 'scoped memory for tpu_custom_call.1']
    #allocation14 [shape = 'u8[65536]{0}', space=vmem, size = 0x10000, scoped, tag = 'input window, operand 14, single buffered']
    #allocation15 [shape = 'u8[8192]{0}', space=vmem, size = 0x2000, scoped, tag = 'output window, operand 1, single buffered']
    %28 = vsyncpa [#allocation4], 0
    %29 = vsyncpa [#allocation7], 0
    %30 = vsyncpa [#allocation10], 0
    %31 = vsyncpa [#allocation13], 0
    %32 = vsyncpa [#allocation5], 0
    // Predicated region
    $region2: #{tpu_custom_call.1} parent=1 // pred_check
      _
    $region3: #{tpu_custom_call.1} parent=1 // pred_check_branch
      %34 = sbr.rel (0) target = $region5
    $region4: #{tpu_custom_call.1} parent=1 // pred_region
      _
    $region5: #{tpu_custom_call.1} parent=1 // pred_fallthru
      _
    // Predicated region
    $region6: #{tpu_custom_call.1} parent=1 // pred_check
      _
    $region7: #{tpu_custom_call.1} parent=1 // pred_check_branch
      %36 = sbr.rel (0) target = $region9
    $region8: #{tpu_custom_call.1} parent=1 // pred_region
      _
    $region9: #{tpu_custom_call.1} parent=1 // pred_fallthru
      _
    // Predicated region
    $region10: #{tpu_custom_call.1} parent=1 // pred_check
      _
    $region11: #{tpu_custom_call.1} parent=1 // pred_check_branch
      %38 = sbr.rel (0) target = $region13
    $region12: #{tpu_custom_call.1} parent=1 // pred_region
      _
    $region13: #{tpu_custom_call.1} parent=1 // pred_fallthru
      _
    // Predicated region
    $region14: #{tpu_custom_call.1} parent=1 // pred_check
      _
    $region15: #{tpu_custom_call.1} parent=1 // pred_check_branch
      %40 = sbr.rel (0) target = $region17
    $region16: #{tpu_custom_call.1} parent=1 // pred_region
      %s42 = ssub.s32 256, 256
      %43 = vsyncadd [#allocation4], %s42
      %s44 = sshll.u32 [#allocation3], 4
      %s45 = int_to_ptr.vmem [resolvable:$true] %s44
      %50 = dma.hbm_to_vmem [thread:$0]  %s3, 256, %s45, [#allocation4], 128, 128, 8
    $region17: #{tpu_custom_call.1} parent=1 // pred_fallthru
      _
    // Predicated region
    $region18: #{tpu_custom_call.1} parent=1 // pred_check
      _
    $region19: #{tpu_custom_call.1} parent=1 // pred_check_branch
      %52 = sbr.rel (0) target = $region21
    $region20: #{tpu_custom_call.1} parent=1 // pred_region
      _
    $region21: #{tpu_custom_call.1} parent=1 // pred_fallthru
      _
    // Predicated region
    $region22: #{tpu_custom_call.1} parent=1 // pred_check
      _
    $region23: #{tpu_custom_call.1} parent=1 // pred_check_branch
      %54 = sbr.rel (0) target = $region25
    $region24: #{tpu_custom_call.1} parent=1 // pred_region
      _
    $region25: #{tpu_custom_call.1} parent=1 // pred_fallthru
      _
    // Predicated region
    $region26: #{tpu_custom_call.1} parent=1 // pred_check
      _
    $region27: #{tpu_custom_call.1} parent=1 // pred_check_branch
      %56 = sbr.rel (0) target = $region29
    $region28: #{tpu_custom_call.1} parent=1 // pred_region
      %s58 = ssub.s32 16, 16
      %59 = vsyncadd [#allocation7], %s58
      %s61 = sshll.u32 [#allocation6], 4
      %s62 = int_to_ptr.vmem [resolvable:$true] %s61
      %64 = dma.hbm_to_vmem [thread:$0]  %s6, 16, %s62, [#allocation7]
    $region29: #{tpu_custom_call.1} parent=1 // pred_fallthru
      _
    // Predicated region
    $region30: #{tpu_custom_call.1} parent=1 // pred_check
      _
    $region31: #{tpu_custom_call.1} parent=1 // pred_check_branch
      %66 = sbr.rel (0) target = $region33
    $region32: #{tpu_custom_call.1} parent=1 // pred_region
      %s68 = ssub.s32 32, 32
      %69 = vsyncadd [#allocation7], %s68
      %s71 = sshll.u32 [#allocation8], 4
      %s72 = int_to_ptr.vmem [resolvable:$true] %s71
      %74 = dma.hbm_to_vmem [thread:$0]  %s7, 32, %s72, [#allocation7]
    $region33: #{tpu_custom_call.1} parent=1 // pred_fallthru
      _
    // Predicated region
    $region34: #{tpu_custom_call.1} parent=1 // pred_check
      _
    $region35: #{tpu_custom_call.1} parent=1 // pred_check_branch
      %76 = sbr.rel (0) target = $region37
    $region36: #{tpu_custom_call.1} parent=1 // pred_region
      %s78 = ssub.s32 256, 256
      %79 = vsyncadd [#allocation10], %s78
      %s80 = sshll.u32 [#allocation9], 4
      %s81 = int_to_ptr.vmem [resolvable:$true] %s80
      %86 = dma.hbm_to_vmem [thread:$0]  %s8, 256, %s81, [#allocation10], 64, 64, 4
    $region37: #{tpu_custom_call.1} parent=1 // pred_fallthru
      _
    // Predicated region
    $region38: #{tpu_custom_call.1} parent=1 // pred_check
      _
    $region39: #{tpu_custom_call.1} parent=1 // pred_check_branch
      %88 = sbr.rel (0) target = $region41
    $region40: #{tpu_custom_call.1} parent=1 // pred_region
      %s90 = ssub.s32 16, 16
      %91 = vsyncadd [#allocation10], %s90
      %s93 = sshll.u32 [#allocation11], 4
      %s94 = int_to_ptr.vmem [resolvable:$true] %s93
      %96 = dma.hbm_to_vmem [thread:$0]  %s9, 16, %s94, [#allocation10]
    $region41: #{tpu_custom_call.1} parent=1 // pred_fallthru
      _
    // Predicated region
    $region42: #{tpu_custom_call.1} parent=1 // pred_check
      _
    $region43: #{tpu_custom_call.1} parent=1 // pred_check_branch
      %98 = sbr.rel (0) target = $region45
    $region44: #{tpu_custom_call.1} parent=1 // pred_region
      %s100 = ssub.s32 32, 32
      %101 = vsyncadd [#allocation13], %s100
      %s103 = sshll.u32 [#allocation12], 4
      %s104 = int_to_ptr.vmem [resolvable:$true] %s103
      %106 = dma.hbm_to_vmem [thread:$0]  %s10, 32, %s104, [#allocation13]
    $region45: #{tpu_custom_call.1} parent=1 // pred_fallthru
      _
    // Predicated region
    $region46: #{tpu_custom_call.1} parent=1 // pred_check
      _
    $region47: #{tpu_custom_call.1} parent=1 // pred_check_branch
      %108 = sbr.rel (0) target = $region49
    $region48: #{tpu_custom_call.1} parent=1 // pred_region
      _
    $region49: #{tpu_custom_call.1} parent=1 // pred_fallthru
      _
    // Predicated region
    $region50: #{tpu_custom_call.1} parent=1 // pred_check
      _
    $region51: #{tpu_custom_call.1} parent=1 // pred_check_branch
      %110 = sbr.rel (0) target = $region53
    $region52: #{tpu_custom_call.1} parent=1 // pred_region
      _
    $region53: #{tpu_custom_call.1} parent=1 // pred_fallthru
      _
    // Predicated region
    $region54: #{tpu_custom_call.1} parent=1 // pred_check
      _
    $region55: #{tpu_custom_call.1} parent=1 // pred_check_branch
      %112 = sbr.rel (0) target = $region57
    $region56: #{tpu_custom_call.1} parent=1 // pred_region
      _
    $region57: #{tpu_custom_call.1} parent=1 // pred_fallthru
      _
    // Predicated region
    $region58: #{tpu_custom_call.1} parent=1 // pred_check
      _
    $region59: #{tpu_custom_call.1} parent=1 // pred_check_branch
      %114 = sbr.rel (0) target = $region61
    $region60: #{tpu_custom_call.1} parent=1 // pred_region
      %s116 = ssub.s32 2048, 2048
      %117 = vsyncadd [#allocation13], %s116
      %s118 = sshll.u32 [#allocation14], 4
      %s119 = int_to_ptr.vmem [resolvable:$true] %s118
      %124 = dma.hbm_to_vmem [thread:$0]  %s14, 2048, %s119, [#allocation13], 256, 256, 16
    $region61: #{tpu_custom_call.1} parent=1 // pred_fallthru
      _
    // Predicated region
    $region62: #{tpu_custom_call.1} parent=1 // pred_check
      _
    $region63: #{tpu_custom_call.1} parent=1 // pred_check_branch
      %126 = sbr.rel (0) target = $region65
    $region64: #{tpu_custom_call.1} parent=1 // pred_region
      _
    $region65: #{tpu_custom_call.1} parent=1 // pred_fallthru
      _
    // Predicated region
    $region66: #{tpu_custom_call.1} parent=1 // pred_check
      _
    $region67: #{tpu_custom_call.1} parent=1 // pred_check_branch
      %128 = sbr.rel (0) target = $region69
    $region68: #{tpu_custom_call.1} parent=1 // pred_region
      _
    $region69: #{tpu_custom_call.1} parent=1 // pred_fallthru
      _
    // Predicated region
    $region70: #{tpu_custom_call.1} parent=1 // pred_check
      _
    $region71: #{tpu_custom_call.1} parent=1 // pred_check_branch
      %130 = sbr.rel (0) target = $region73
    $region72: #{tpu_custom_call.1} parent=1 // pred_region
      _
    $region73: #{tpu_custom_call.1} parent=1 // pred_fallthru
      _
    // Predicated region
    $region74: #{tpu_custom_call.1} parent=1 // pred_check
      _
    $region75: #{tpu_custom_call.1} parent=1 // pred_check_branch
      %132 = sbr.rel (0) target = $region77
    $region76: #{tpu_custom_call.1} parent=1 // pred_region
      _
    $region77: #{tpu_custom_call.1} parent=1 // pred_fallthru
      _
    // Predicated region
    $region78: #{tpu_custom_call.1} parent=1 // pred_check
      _
    $region79: #{tpu_custom_call.1} parent=1 // pred_check_branch
      %134 = sbr.rel (0) target = $region81
    $region80: #{tpu_custom_call.1} parent=1 // pred_region
      %135 = dma.done [#allocation4], 256
    $region81: #{tpu_custom_call.1} parent=1 // pred_fallthru
      _
    // Predicated region
    $region82: #{tpu_custom_call.1} parent=1 // pred_check
      _
    $region83: #{tpu_custom_call.1} parent=1 // pred_check_branch
      %137 = sbr.rel (0) target = $region85
    $region84: #{tpu_custom_call.1} parent=1 // pred_region
      %138 = dma.done [#allocation7], 16
    $region85: #{tpu_custom_call.1} parent=1 // pred_fallthru
      _
    // Predicated region
    $region86: #{tpu_custom_call.1} parent=1 // pred_check
      _
    $region87: #{tpu_custom_call.1} parent=1 // pred_check_branch
      %140 = sbr.rel (0) target = $region89
    $region88: #{tpu_custom_call.1} parent=1 // pred_region
      %141 = dma.done [#allocation7], 32
    $region89: #{tpu_custom_call.1} parent=1 // pred_fallthru
      _
    // Predicated region
    $region90: #{tpu_custom_call.1} parent=1 // pred_check
      _
    $region91: #{tpu_custom_call.1} parent=1 // pred_check_branch
      %143 = sbr.rel (0) target = $region93
    $region92: #{tpu_custom_call.1} parent=1 // pred_region
      %144 = dma.done [#allocation10], 256
    $region93: #{tpu_custom_call.1} parent=1 // pred_fallthru
      _
    // Predicated region
    $region94: #{tpu_custom_call.1} parent=1 // pred_check
      _
    $region95: #{tpu_custom_call.1} parent=1 // pred_check_branch
      %146 = sbr.rel (0) target = $region97
    $region96: #{tpu_custom_call.1} parent=1 // pred_region
      %147 = dma.done [#allocation10], 16
    $region97: #{tpu_custom_call.1} parent=1 // pred_fallthru
      _
    // Predicated region
    $region98: #{tpu_custom_call.1} parent=1 // pred_check
      _
    $region99: #{tpu_custom_call.1} parent=1 // pred_check_branch
      %149 = sbr.rel (0) target = $region101
    $region100: #{tpu_custom_call.1} parent=1 // pred_region
      %150 = dma.done [#allocation13], 32
    $region101: #{tpu_custom_call.1} parent=1 // pred_fallthru
      _
    // Predicated region
    $region102: #{tpu_custom_call.1} parent=1 // pred_check
      _
    $region103: #{tpu_custom_call.1} parent=1 // pred_check_branch
      %152 = sbr.rel (0) target = $region105
    $region104: #{tpu_custom_call.1} parent=1 // pred_region
      %153 = dma.done [#allocation13], 2048
    $region105: #{tpu_custom_call.1} parent=1 // pred_fallthru
      _
    %v155 = vld [vmem:[%s0] sm:$0xff]
    %v156 = vld [vmem:[%s0 + $0x8] sm:$0xff]
    %v157 = vld [vmem:[%s4] sm:$0x1]
    %v158 = vld [vmem:[%s4 + $0x1] sm:$0x1]
    %vm159 = vcmask 392192
    %v160 = vsel %vm159, %v155, 0.0
    %161 = vadd.xlane.f32.xlu0 %v160
    %v162 = vpop.xlane.xlu0 %161
    %v163 = vsel %vm159, %v156, 0.0
    %164 = vadd.xlane.f32.xlu0 %v163
    %v165 = vpop.xlane.xlu0 %164
    %v166 = vrcp.pop 48.0
    %v167 = vmul.f32 %v162, %v166
    %v168 = vmul.f32 %v165, %v166
    %v169 = vsub.f32 %v155, %v167
    %v170 = vsub.f32 %v156, %v168
    %v171 = vmul.f32 %v169, %v169
    %v172 = vmul.f32 %v170, %v170
    %v173 = vsel %vm159, %v171, 0.0
    %174 = vadd.xlane.f32.xlu0 %v173
    %v175 = vpop.xlane.xlu0 %174
    %v176 = vsel %vm159, %v172, 0.0
    %177 = vadd.xlane.f32.xlu0 %v176
    %v178 = vpop.xlane.xlu0 %177
    %v179 = vmul.f32 %v175, %v166
    %v180 = vmul.f32 %v178, %v166
    %v181 = vadd.f32 %v179, 1e-05
    %v182 = vadd.f32 %v180, 1e-05
    %v183 = vrsqrt.pop %v181
    %v184 = vrsqrt.pop %v182
    %v185 = vmul.f32 %v169, %v183
    %v186 = vmul.f32 %v170, %v184
    %v187 = vlaneseq
    %v188 = vshrl.u32 %v187, 7
    %v189 = vsub.s32 0, %v188
    %v190 = vrot.slane %v157, %v189
    %v191 = vmul.f32 %v185, %v190
    %v192 = vmul.f32 %v186, %v190
    %v193 = vlaneseq
    %v194 = vshrl.u32 %v193, 7
    %v195 = vsub.s32 0, %v194
    %v196 = vrot.slane %v158, %v195
    %v197 = vadd.f32 %v191, %v196
    %v198 = vadd.f32 %v192, %v196
    %v199 = vld [vmem:[%s5] sm:$0xf]
    %v200 = vld [vmem:[%s5 + $0x4] sm:$0xf]
    %v201 = vld [vmem:[%s5 + $0x8] sm:$0xf]
    %v202 = vld [vmem:[%s5 + $0xc] sm:$0xf]
    %v203 = vld [vmem:[%s5 + $0x10] sm:$0xf]
    %v204 = vld [vmem:[%s5 + $0x14] sm:$0xf]
    %v205 = vpack.c.bf16 %v198, %v197
    %v206 = vld [vmem:[#allocation6] sm:$0x1]
    %v208 = vlaneseq
    %v209 = vshrl.u32 %v208, 7
    %v210 = vsub.s32 0, %v209
    %v211 = vrot.slane %v206, %v210
    %v219 = vunpack.c.l.b16 %v199
    %v220 = vunpack.c.l.b16 %v200
    %v221 = vunpack.c.l.b16 %v201
    %v222 = vunpack.c.l.b16 %v202
    %v223 = vunpack.c.l.b16 %v203
    %v224 = vunpack.c.l.b16 %v204
    %v225 = vpack.c.b16 %v220, %v219
    %v226 = vpack.c.b16 %v222, %v221
    %v227 = vpack.c.b16 %v224, %v223
    %v232 = vsel %vm159, %v205, 0
    %234 = vmatprep.subr.bf16.mxu0 0
    %235 = vmatpush1.bf16.msra.mxu0 %v225
    %236 = vmatprep.subr.bf16.mxu0 0
    %237 = vmatpush1.bf16.msra.mxu0 %v226
    %238 = vmatprep.subr.bf16.mxu0 0
    %239 = vmatpush1.bf16.msra.mxu0 %v227
    %240 = vmatprep.subr.bf16.mxu0 0
    %241 = vmatpush1.bf16.msra.mxu0 0
    %242 = vmatprep.subr.bf16.mxu0 0
    %243 = vmatpush1.bf16.msra.mxu0 0
    %244 = vmatprep.subr.bf16.mxu0 0
    %245 = vmatpush1.bf16.msra.mxu0 0
    %246 = vmatprep.subr.bf16.mxu0 0
    %247 = vmatpush1.bf16.msra.mxu0 0
    %248 = vmatprep.subr.bf16.mxu0 0
    %249 = vmatpush1.bf16.msra.mxu0 0
    %250 = vmatprep.subr.bf16.mxu0 0
    %251 = vmatpush1.bf16.msra.mxu0 0
    %252 = vmatprep.subr.bf16.mxu0 0
    %253 = vmatpush1.bf16.msra.mxu0 0
    %254 = vmatprep.subr.bf16.mxu0 0
    %255 = vmatpush1.bf16.msra.mxu0 0
    %256 = vmatprep.subr.bf16.mxu0 0
    %257 = vmatpush1.bf16.msra.mxu0 0
    %258 = vmatprep.subr.bf16.mxu0 0
    %259 = vmatpush1.bf16.msra.mxu0 0
    %260 = vmatprep.subr.bf16.mxu0 0
    %261 = vmatpush1.bf16.msra.mxu0 0
    %262 = vmatprep.subr.bf16.mxu0 0
    %263 = vmatpush1.bf16.msra.mxu0 0
    %264 = vmatprep.subr.bf16.mxu0 0
    %265 = vmatpush1.bf16.msra.mxu0 0
    %266 = vmatprep.mubr.bf16.mxu0 0
    %267 = vmatmul.mubr.bf16.gmra.mrb[0].mxu0 %v232
    %v268 = vpop.f32.mrb[0].mxu0
    %v269 = vadd.f32 %v211, %v268
    %v270 = vpop.f32.mrb[0].mxu0
    %v271 = vpop.f32.mrb[0].mxu0
    %v272 = vadd.f32 %v211, %v271
    %v273 = vpop.f32.mrb[0].mxu0
    %274 = vdwg.mxu0
    %v275 = vmax.f32 %v269, 0.0
    %v276 = vmax.f32 %v272, 0.0
    %v277 = vld [vmem:[#allocation8] sm:$0x1]
    %v278 = vld [vmem:[#allocation8 + $0x1] sm:$0x1]
    %vm279 = vcmask 261120
    %v280 = vsel %vm279, %v275, 0.0
    %281 = vadd.xlane.f32.xlu0 %v280
    %v282 = vpop.xlane.xlu0 %281
    %v283 = vsel %vm279, %v276, 0.0
    %284 = vadd.xlane.f32.xlu0 %v283
    %v285 = vpop.xlane.xlu0 %284
    %v286 = vrcp.pop 32.0
    %v287 = vmul.f32 %v282, %v286
    %v288 = vmul.f32 %v285, %v286
    %v289 = vsub.f32 %v275, %v287
    %v290 = vsub.f32 %v276, %v288
    %v291 = vmul.f32 %v289, %v289
    %v292 = vmul.f32 %v290, %v290
    %v293 = vsel %vm279, %v291, 0.0
    %294 = vadd.xlane.f32.xlu0 %v293
    %v295 = vpop.xlane.xlu0 %294
    %v296 = vsel %vm279, %v292, 0.0
    %297 = vadd.xlane.f32.xlu0 %v296
    %v298 = vpop.xlane.xlu0 %297
    %v299 = vmul.f32 %v295, %v286
    %v300 = vmul.f32 %v298, %v286
    %v301 = vadd.f32 %v299, 1e-05
    %v302 = vadd.f32 %v300, 1e-05
    %v303 = vrsqrt.pop %v301
    %v304 = vrsqrt.pop %v302
    %v305 = vmul.f32 %v289, %v303
    %v306 = vmul.f32 %v290, %v304
    %v307 = vlaneseq
    %v308 = vshrl.u32 %v307, 7
    %v309 = vsub.s32 0, %v308
    %v310 = vrot.slane %v277, %v309
    %v311 = vmul.f32 %v305, %v310
    %v312 = vmul.f32 %v306, %v310
    %v313 = vlaneseq
    %v314 = vshrl.u32 %v313, 7
    %v315 = vsub.s32 0, %v314
    %v316 = vrot.slane %v278, %v315
    %v317 = vadd.f32 %v311, %v316
    %v318 = vadd.f32 %v312, %v316
    %v319 = vld [vmem:[#allocation9] sm:$0xf]
    %v320 = vld [vmem:[#allocation9 + $0x4] sm:$0xf]
    %v321 = vld [vmem:[#allocation9 + $0x8] sm:$0xf]
    %v322 = vld [vmem:[#allocation9 + $0xc] sm:$0xf]
    %v323 = vpack.c.bf16 %v318, %v317
    %v324 = vld [vmem:[#allocation11] sm:$0x1]
    %v326 = vlaneseq
    %v327 = vshrl.u32 %v326, 7
    %v328 = vsub.s32 0, %v327
    %v329 = vrot.slane %v324, %v328
    %v335 = vunpack.c.l.b16 %v319
    %v336 = vunpack.c.l.b16 %v320
    %v337 = vunpack.c.l.b16 %v321
    %v338 = vunpack.c.l.b16 %v322
    %v339 = vpack.c.b16 %v336, %v335
    %v340 = vpack.c.b16 %v338, %v337
    %v344 = vsel %vm279, %v323, 0
    %346 = vmatprep.subr.bf16.mxu0 0
    %347 = vmatpush1.bf16.msra.mxu0 %v339
    %348 = vmatprep.subr.bf16.mxu0 0
    %349 = vmatpush1.bf16.msra.mxu0 %v340
    %350 = vmatprep.subr.bf16.mxu0 0
    %351 = vmatpush1.bf16.msra.mxu0 0
    %352 = vmatprep.subr.bf16.mxu0 0
    %353 = vmatpush1.bf16.msra.mxu0 0
    %354 = vmatprep.subr.bf16.mxu0 0
    %355 = vmatpush1.bf16.msra.mxu0 0
    %356 = vmatprep.subr.bf16.mxu0 0
    %357 = vmatpush1.bf16.msra.mxu0 0
    %358 = vmatprep.subr.bf16.mxu0 0
    %359 = vmatpush1.bf16.msra.mxu0 0
    %360 = vmatprep.subr.bf16.mxu0 0
    %361 = vmatpush1.bf16.msra.mxu0 0
    %362 = vmatprep.subr.bf16.mxu0 0
    %363 = vmatpush1.bf16.msra.mxu0 0
    %364 = vmatprep.subr.bf16.mxu0 0
    %365 = vmatpush1.bf16.msra.mxu0 0
    %366 = vmatprep.subr.bf16.mxu0 0
    %367 = vmatpush1.bf16.msra.mxu0 0
    %368 = vmatprep.subr.bf16.mxu0 0
    %369 = vmatpush1.bf16.msra.mxu0 0
    %370 = vmatprep.subr.bf16.mxu0 0
    %371 = vmatpush1.bf16.msra.mxu0 0
    %372 = vmatprep.subr.bf16.mxu0 0
    %373 = vmatpush1.bf16.msra.mxu0 0
    %374 = vmatprep.subr.bf16.mxu0 0
    %375 = vmatpush1.bf16.msra.mxu0 0
    %376 = vmatprep.subr.bf16.mxu0 0
    %377 = vmatpush1.bf16.msra.mxu0 0
    %378 = vmatprep.mubr.bf16.mxu0 0
    %379 = vmatmul.mubr.bf16.gmra.mrb[0].mxu0 %v344
    %v380 = vpop.f32.mrb[0].mxu0
    %v381 = vadd.f32 %v329, %v380
    %v382 = vpop.f32.mrb[0].mxu0
    %v383 = vpop.f32.mrb[0].mxu0
    %v384 = vadd.f32 %v329, %v383
    %v385 = vpop.f32.mrb[0].mxu0
    %386 = vdwg.mxu0
    %v387 = vmax.f32 %v381, 0.0
    %v388 = vmax.f32 %v384, 0.0
    %v389 = vld [vmem:[#allocation12] sm:$0x1]
    %v390 = vld [vmem:[#allocation12 + $0x1] sm:$0x1]
    %v391 = vsel %vm279, %v387, 0.0
    %392 = vadd.xlane.f32.xlu0 %v391
    %v393 = vpop.xlane.xlu0 %392
    %v394 = vsel %vm279, %v388, 0.0
    %395 = vadd.xlane.f32.xlu0 %v394
    %v396 = vpop.xlane.xlu0 %395
    %v397 = vmul.f32 %v393, %v286
    %v398 = vmul.f32 %v396, %v286
    %v399 = vsub.f32 %v387, %v397
    %v400 = vsub.f32 %v388, %v398
    %v401 = vmul.f32 %v399, %v399
    %v402 = vmul.f32 %v400, %v400
    %v403 = vsel %vm279, %v401, 0.0
    %404 = vadd.xlane.f32.xlu0 %v403
    %v405 = vpop.xlane.xlu0 %404
    %v406 = vsel %vm279, %v402, 0.0
    %407 = vadd.xlane.f32.xlu0 %v406
    %v408 = vpop.xlane.xlu0 %407
    %v409 = vmul.f32 %v405, %v286
    %v410 = vmul.f32 %v408, %v286
    %v411 = vadd.f32 %v409, 1e-05
    %v412 = vadd.f32 %v410, 1e-05
    %v413 = vrsqrt.pop %v411
    %v414 = vrsqrt.pop %v412
    %v415 = vmul.f32 %v399, %v413
    %v416 = vmul.f32 %v400, %v414
    %v417 = vlaneseq
    %v418 = vshrl.u32 %v417, 7
    %v419 = vsub.s32 0, %v418
    %v420 = vrot.slane %v389, %v419
    %v421 = vmul.f32 %v415, %v420
    %v422 = vmul.f32 %v416, %v420
    %v423 = vlaneseq
    %v424 = vshrl.u32 %v423, 7
    %v425 = vsub.s32 0, %v424
    %v426 = vrot.slane %v390, %v425
    %v427 = vadd.f32 %v421, %v426
    %v428 = vadd.f32 %v422, %v426
    %v429 = vld [vmem:[%s11] sm:$0xff]
    %v430 = vld [vmem:[%s11 + $0x8] sm:$0xf]
    %v431 = vld [vmem:[%s11 + $0xc] sm:$0xff]
    %v432 = vld [vmem:[%s11 + $0x14] sm:$0xf]
    %v433 = vld [vmem:[%s11 + $0x18] sm:$0xff]
    %v434 = vld [vmem:[%s11 + $0x20] sm:$0xf]
    %v435 = vld [vmem:[%s11 + $0x24] sm:$0xff]
    %v436 = vld [vmem:[%s11 + $0x2c] sm:$0xf]
    %v437 = vpack.c.bf16 %v428, %v427
    %v446 = vunpack.c.l.b16 %v429
    %v447 = vunpack.c.h.b16 %v429
    %v448 = vunpack.c.l.b16 %v430
    %v449 = vunpack.c.l.b16 %v431
    %v450 = vunpack.c.h.b16 %v431
    %v451 = vunpack.c.l.b16 %v432
    %v452 = vunpack.c.l.b16 %v433
    %v453 = vunpack.c.h.b16 %v433
    %v454 = vunpack.c.l.b16 %v434
    %v455 = vunpack.c.l.b16 %v435
    %v456 = vunpack.c.h.b16 %v435
    %v457 = vunpack.c.l.b16 %v436
    %v458 = vpack.c.b16 %v449, %v446
    %v459 = vpack.c.b16 %v450, %v447
    %v460 = vpack.c.b16 %v451, %v448
    %v461 = vpack.c.b16 %v455, %v452
    %v462 = vpack.c.b16 %v456, %v453
    %v463 = vpack.c.b16 %v457, %v454
    %v471 = vsel %vm279, %v437, 0
    %473 = vmatprep.subr.bf16.mxu0 %v459
    %474 = vmatpush1.bf16.msra.mxu0 %v458
    %475 = vmatprep.subr.bf16.mxu0 %v462
    %476 = vmatpush1.bf16.msra.mxu0 %v461
    %477 = vmatprep.subr.bf16.mxu0 0
    %478 = vmatpush1.bf16.msra.mxu0 0
    %479 = vmatprep.subr.bf16.mxu0 0
    %480 = vmatpush1.bf16.msra.mxu0 0
    %481 = vmatprep.subr.bf16.mxu0 0
    %482 = vmatpush1.bf16.msra.mxu0 0
    %483 = vmatprep.subr.bf16.mxu0 0
    %484 = vmatpush1.bf16.msra.mxu0 0
    %485 = vmatprep.subr.bf16.mxu0 0
    %486 = vmatpush1.bf16.msra.mxu0 0
    %487 = vmatprep.subr.bf16.mxu0 0
    %488 = vmatpush1.bf16.msra.mxu0 0
    %489 = vmatprep.subr.bf16.mxu0 0
    %490 = vmatpush1.bf16.msra.mxu0 0
    %491 = vmatprep.subr.bf16.mxu0 0
    %492 = vmatpush1.bf16.msra.mxu0 0
    %493 = vmatprep.subr.bf16.mxu0 0
    %494 = vmatpush1.bf16.msra.mxu0 0
    %495 = vmatprep.subr.bf16.mxu0 0
    %496 = vmatpush1.bf16.msra.mxu0 0
    %497 = vmatprep.subr.bf16.mxu0 0
    %498 = vmatpush1.bf16.msra.mxu0 0
    %499 = vmatprep.subr.bf16.mxu0 0
    %500 = vmatpush1.bf16.msra.mxu0 0
    %501 = vmatprep.subr.bf16.mxu0 0
    %502 = vmatpush1.bf16.msra.mxu0 0
    %503 = vmatprep.subr.bf16.mxu0 0
    %504 = vmatpush1.bf16.msra.mxu0 0
    %505 = vmatprep.mubr.bf16.mxu0 0
    %506 = vmatmul.mubr.bf16.gmra.mrb[0].mxu0 %v471
    %v507 = vpop.f32.mrb[0].mxu0
    %v508 = vadd.f32 0.0, %v507
    %v509 = vpop.f32.mrb[0].mxu0
    %v510 = vadd.f32 0.0, %v509
    %v511 = vpop.f32.mrb[0].mxu0
    %v512 = vadd.f32 0.0, %v511
    %v513 = vpop.f32.mrb[0].mxu0
    %v514 = vadd.f32 0.0, %v513
    %515 = vdwg.mxu0
    %516 = vmatprep.subr.bf16.mxu0 0
    %517 = vmatpush1.bf16.msra.mxu0 %v460
    %518 = vmatprep.subr.bf16.mxu0 0
    %519 = vmatpush1.bf16.msra.mxu0 %v463
    %520 = vmatprep.subr.bf16.mxu0 0
    %521 = vmatpush1.bf16.msra.mxu0 0
    %522 = vmatprep.subr.bf16.mxu0 0
    %523 = vmatpush1.bf16.msra.mxu0 0
    %524 = vmatprep.subr.bf16.mxu0 0
    %525 = vmatpush1.bf16.msra.mxu0 0
    %526 = vmatprep.subr.bf16.mxu0 0
    %527 = vmatpush1.bf16.msra.mxu0 0
    %528 = vmatprep.subr.bf16.mxu0 0
    %529 = vmatpush1.bf16.msra.mxu0 0
    %530 = vmatprep.subr.bf16.mxu0 0
    %531 = vmatpush1.bf16.msra.mxu0 0
    %532 = vmatprep.subr.bf16.mxu0 0
    %533 = vmatpush1.bf16.msra.mxu0 0
    %534 = vmatprep.subr.bf16.mxu0 0
    %535 = vmatpush1.bf16.msra.mxu0 0
    %536 = vmatprep.subr.bf16.mxu0 0
    %537 = vmatpush1.bf16.msra.mxu0 0
    %538 = vmatprep.subr.bf16.mxu0 0
    %539 = vmatpush1.bf16.msra.mxu0 0
    %540 = vmatprep.subr.bf16.mxu0 0
    %541 = vmatpush1.bf16.msra.mxu0 0
    %542 = vmatprep.subr.bf16.mxu0 0
    %543 = vmatpush1.bf16.msra.mxu0 0
    %544 = vmatprep.subr.bf16.mxu0 0
    %545 = vmatpush1.bf16.msra.mxu0 0
    %546 = vmatprep.subr.bf16.mxu0 0
    %547 = vmatpush1.bf16.msra.mxu0 0
    %548 = vmatprep.mubr.bf16.mxu0 0
    %549 = vmatmul.mubr.bf16.gmra.mrb[0].mxu0 %v471
    %v550 = vpop.f32.mrb[0].mxu0
    %v551 = vadd.f32 0.0, %v550
    %v552 = vpop.f32.mrb[0].mxu0
    %v553 = vpop.f32.mrb[0].mxu0
    %v554 = vadd.f32 0.0, %v553
    %v555 = vpop.f32.mrb[0].mxu0
    %556 = vdwg.mxu0
    %v557 = vmul.f32 %v508, 0.17677669
    %v558 = vmul.f32 %v512, 0.17677669
    %v559 = vpack.c.bf16 %v558, %v557
    %v560 = vpack.c.bf16 %v514, %v510
    %v561 = vld [vmem:[#allocation3] sm:$0xff]
    %v562 = vld [vmem:[#allocation3 + $0x8] sm:$0xff]
    %v564 = vsel %vm279, %v559, 0
    %v567 = vsel %vm279, %v560, 0
    %569 = vmatprep.subr.bf16.mxu0 0
    %570 = vmatpush1.bf16.xpose.msra.mxu0 %v567
    %571 = vmatprep.subr.bf16.mxu0 0
    %572 = vmatpush1.bf16.xpose.msra.mxu0 0
    %573 = vmatprep.subr.bf16.mxu0 0
    %574 = vmatpush1.bf16.xpose.msra.mxu0 0
    %575 = vmatprep.subr.bf16.mxu0 0
    %576 = vmatpush1.bf16.xpose.msra.mxu0 0
    %577 = vmatprep.subr.bf16.mxu0 0
    %578 = vmatpush1.bf16.xpose.msra.mxu0 0
    %579 = vmatprep.subr.bf16.mxu0 0
    %580 = vmatpush1.bf16.xpose.msra.mxu0 0
    %581 = vmatprep.subr.bf16.mxu0 0
    %582 = vmatpush1.bf16.xpose.msra.mxu0 0
    %583 = vmatprep.subr.bf16.mxu0 0
    %584 = vmatpush1.bf16.xpose.msra.mxu0 0
    %585 = vmatprep.subr.bf16.mxu0 0
    %586 = vmatpush1.bf16.xpose.msra.mxu0 0
    %587 = vmatprep.subr.bf16.mxu0 0
    %588 = vmatpush1.bf16.xpose.msra.mxu0 0
    %589 = vmatprep.subr.bf16.mxu0 0
    %590 = vmatpush1.bf16.xpose.msra.mxu0 0
    %591 = vmatprep.subr.bf16.mxu0 0
    %592 = vmatpush1.bf16.xpose.msra.mxu0 0
    %593 = vmatprep.subr.bf16.mxu0 0
    %594 = vmatpush1.bf16.xpose.msra.mxu0 0
    %595 = vmatprep.subr.bf16.mxu0 0
    %596 = vmatpush1.bf16.xpose.msra.mxu0 0
    %597 = vmatprep.subr.bf16.mxu0 0
    %598 = vmatpush1.bf16.xpose.msra.mxu0 0
    %599 = vmatprep.subr.bf16.mxu0 0
    %600 = vmatpush1.bf16.xpose.msra.mxu0 0
    %601 = vmatprep.mubr.bf16.mxu0 0
    %602 = vmatmul.mubr.bf16.gmra.mrb[0].mxu0 %v564
    %v603 = vpop.f32.mrb[0].mxu0
    %v604 = vadd.f32 %v561, %v603
    %v605 = vpop.f32.mrb[0].mxu0
    %v606 = vpop.f32.mrb[0].mxu0
    %v607 = vadd.f32 %v562, %v606
    %v608 = vpop.f32.mrb[0].mxu0
    %609 = vdwg.mxu0
    %vm610 = vcmask 130048
    %v611 = vsel %vm610, %v604, -inf
    %612 = vmax.xlane.f32.xlu0 %v611
    %v613 = vpop.xlane.xlu0 %612
    %v614 = vsel %vm610, %v607, -inf
    %615 = vmax.xlane.f32.xlu0 %v614
    %v616 = vpop.xlane.xlu0 %615
    %v617 = vsub.f32 %v604, %v613
    %v618 = vsub.f32 %v607, %v616
    %v619 = vmul.f32 %v617, 1.442695
    %v620 = vpow.pop %v619
    %v621 = vmul.f32 %v618, 1.442695
    %v622 = vpow.pop %v621
    %v623 = vsel %vm610, %v620, 0.0
    %624 = vadd.xlane.f32.xlu0 %v623
    %v625 = vpop.xlane.xlu0 %624
    %v626 = vsel %vm610, %v622, 0.0
    %627 = vadd.xlane.f32.xlu0 %v626
    %v628 = vpop.xlane.xlu0 %627
    %v629 = vrcp.pop %v625
    %v630 = vrcp.pop %v628
    %v631 = vmul.f32 %v620, %v629
    %v632 = vmul.f32 %v622, %v630
    %v633 = vpack.c.bf16 %v632, %v631
    %v634 = vpack.c.bf16 %v554, %v551
    %v636 = vsel %vm610, %v633, 0
    %638 = vmatprep.subr.bf16.mxu0 0
    %639 = vmatpush1.bf16.msra.mxu0 %v634
    %640 = vmatprep.subr.bf16.mxu0 0
    %641 = vmatpush1.bf16.msra.mxu0 0
    %642 = vmatprep.subr.bf16.mxu0 0
    %643 = vmatpush1.bf16.msra.mxu0 0
    %644 = vmatprep.subr.bf16.mxu0 0
    %645 = vmatpush1.bf16.msra.mxu0 0
    %646 = vmatprep.subr.bf16.mxu0 0
    %647 = vmatpush1.bf16.msra.mxu0 0
    %648 = vmatprep.subr.bf16.mxu0 0
    %649 = vmatpush1.bf16.msra.mxu0 0
    %650 = vmatprep.subr.bf16.mxu0 0
    %651 = vmatpush1.bf16.msra.mxu0 0
    %652 = vmatprep.subr.bf16.mxu0 0
    %653 = vmatpush1.bf16.msra.mxu0 0
    %654 = vmatprep.subr.bf16.mxu0 0
    %655 = vmatpush1.bf16.msra.mxu0 0
    %656 = vmatprep.subr.bf16.mxu0 0
    %657 = vmatpush1.bf16.msra.mxu0 0
    %658 = vmatprep.subr.bf16.mxu0 0
    %659 = vmatpush1.bf16.msra.mxu0 0
    %660 = vmatprep.subr.bf16.mxu0 0
    %661 = vmatpush1.bf16.msra.mxu0 0
    %662 = vmatprep.subr.bf16.mxu0 0
    %663 = vmatpush1.bf16.msra.mxu0 0
    %664 = vmatprep.subr.bf16.mxu0 0
    %665 = vmatpush1.bf16.msra.mxu0 0
    %666 = vmatprep.subr.bf16.mxu0 0
    %667 = vmatpush1.bf16.msra.mxu0 0
    %668 = vmatprep.subr.bf16.mxu0 0
    %669 = vmatpush1.bf16.msra.mxu0 0
    %670 = vmatprep.mubr.bf16.mxu0 0
    %671 = vmatmul.mubr.bf16.gmra.mrb[0].mxu0 %v636
    %v672 = vpop.f32.mrb[0].mxu0
    %v673 = vadd.f32 0.0, %v672
    %v674 = vpop.f32.mrb[0].mxu0
    %v675 = vpop.f32.mrb[0].mxu0
    %v676 = vadd.f32 0.0, %v675
    %v677 = vpop.f32.mrb[0].mxu0
    %678 = vdwg.mxu0
    %v679 = vld [vmem:[%s12] sm:$0xf]
    %v680 = vld [vmem:[%s12 + $0x4] sm:$0xf]
    %v681 = vld [vmem:[%s12 + $0x8] sm:$0xf]
    %v682 = vld [vmem:[%s12 + $0xc] sm:$0xf]
    %v683 = vpack.c.bf16 %v676, %v673
    %v684 = vld [vmem:[%s13] sm:$0x1]
    %v686 = vlaneseq
    %v687 = vshrl.u32 %v686, 7
    %v688 = vsub.s32 0, %v687
    %v689 = vrot.slane %v684, %v688
    %v695 = vunpack.c.l.b16 %v679
    %v696 = vunpack.c.l.b16 %v680
    %v697 = vunpack.c.l.b16 %v681
    %v698 = vunpack.c.l.b16 %v682
    %v699 = vpack.c.b16 %v696, %v695
    %v700 = vpack.c.b16 %v698, %v697
    %v704 = vsel %vm279, %v683, 0
    %706 = vmatprep.subr.bf16.mxu0 0
    %707 = vmatpush1.bf16.msra.mxu0 %v699
    %708 = vmatprep.subr.bf16.mxu0 0
    %709 = vmatpush1.bf16.msra.mxu0 %v700
    %710 = vmatprep.subr.bf16.mxu0 0
    %711 = vmatpush1.bf16.msra.mxu0 0
    %712 = vmatprep.subr.bf16.mxu0 0
    %713 = vmatpush1.bf16.msra.mxu0 0
    %714 = vmatprep.subr.bf16.mxu0 0
    %715 = vmatpush1.bf16.msra.mxu0 0
    %716 = vmatprep.subr.bf16.mxu0 0
    %717 = vmatpush1.bf16.msra.mxu0 0
    %718 = vmatprep.subr.bf16.mxu0 0
    %719 = vmatpush1.bf16.msra.mxu0 0
    %720 = vmatprep.subr.bf16.mxu0 0
    %721 = vmatpush1.bf16.msra.mxu0 0
    %722 = vmatprep.subr.bf16.mxu0 0
    %723 = vmatpush1.bf16.msra.mxu0 0
    %724 = vmatprep.subr.bf16.mxu0 0
    %725 = vmatpush1.bf16.msra.mxu0 0
    %726 = vmatprep.subr.bf16.mxu0 0
    %727 = vmatpush1.bf16.msra.mxu0 0
    %728 = vmatprep.subr.bf16.mxu0 0
    %729 = vmatpush1.bf16.msra.mxu0 0
    %730 = vmatprep.subr.bf16.mxu0 0
    %731 = vmatpush1.bf16.msra.mxu0 0
    %732 = vmatprep.subr.bf16.mxu0 0
    %733 = vmatpush1.bf16.msra.mxu0 0
    %734 = vmatprep.subr.bf16.mxu0 0
    %735 = vmatpush1.bf16.msra.mxu0 0
    %736 = vmatprep.subr.bf16.mxu0 0
    %737 = vmatpush1.bf16.msra.mxu0 0
    %738 = vmatprep.mubr.bf16.mxu0 0
    %739 = vmatmul.mubr.bf16.gmra.mrb[0].mxu0 %v704
    %v740 = vpop.f32.mrb[0].mxu0
    %v741 = vadd.f32 %v689, %v740
    %v742 = vpop.f32.mrb[0].mxu0
    %v743 = vpop.f32.mrb[0].mxu0
    %v744 = vadd.f32 %v689, %v743
    %v745 = vpop.f32.mrb[0].mxu0
    %746 = vdwg.mxu0
    %v747 = vadd.f32 %v427, %v741
    %v748 = vadd.f32 %v428, %v744
    %v749 = vld [vmem:[%s1] sm:$0xff]
    %v750 = vld [vmem:[%s1 + $0x8] sm:$0xff]
    %v751 = vld [vmem:[%s2] sm:$0xff]
    %v752 = vld [vmem:[%s2 + $0x8] sm:$0xff]
    %754 = vset.pattern.permute.xlu0 0
    %755 = vperm.xlu0 %754, %v751
    %v756 = vpop.permute.xlu0 %755
    %759 = vset.pattern.permute.xlu0 0
    %760 = vperm.xlu0 %759, %v752
    %v761 = vpop.permute.xlu0 %760
    %v763 = vmul.f32 %v749, %v756
    %v764 = vmul.f32 %v750, %v761
    %767 = vrot.lane.b32.xlu0 %v763, 32
    %v768 = vpop.permute.xlu0 %767
    %769 = vrot.lane.b32.xlu0 %v764, 32
    %v770 = vpop.permute.xlu0 %769
    %v773 = vsel %vm279, %v747, %v768
    %v774 = vsel %vm279, %v748, %v770
    %v775 = vld [vmem:[#allocation14] sm:$0xff]
    %v776 = vld [vmem:[#allocation14 + $0x8] sm:$0xff]
    %v777 = vld [vmem:[#allocation14 + $0x10] sm:$0xff]
    %v778 = vld [vmem:[#allocation14 + $0x18] sm:$0xff]
    %v779 = vld [vmem:[#allocation14 + $0x20] sm:$0xff]
    %v780 = vld [vmem:[#allocation14 + $0x28] sm:$0xff]
    %v781 = vld [vmem:[#allocation14 + $0x30] sm:$0xff]
    %v782 = vld [vmem:[#allocation14 + $0x38] sm:$0xff]
    %v783 = vld [vmem:[#allocation14 + $0x40] sm:$0xff]
    %v784 = vld [vmem:[#allocation14 + $0x48] sm:$0xff]
    %v785 = vld [vmem:[#allocation14 + $0x50] sm:$0xff]
    %v786 = vld [vmem:[#allocation14 + $0x58] sm:$0xff]
    %v787 = vld [vmem:[#allocation14 + $0x60] sm:$0xff]
    %v788 = vld [vmem:[#allocation14 + $0x68] sm:$0xff]
    %v789 = vld [vmem:[#allocation14 + $0x70] sm:$0xff]
    %v790 = vld [vmem:[#allocation14 + $0x78] sm:$0xff]
    %v791 = vpack.c.bf16 %v774, %v773
    %v792 = vld [vmem:[%s15] sm:$0xf]
    %v794 = vlaneseq
    %v795 = vshrl.u32 %v794, 7
    %v796 = vsub.s32 0, %v795
    %v797 = vrot.slane %v792, %v796
    %v798 = vlaneseq
    %v799 = vshrl.u32 %v798, 7
    %v800 = vsub.s32 1, %v799
    %v801 = vrot.slane %v792, %v800
    %v802 = vlaneseq
    %v803 = vshrl.u32 %v802, 7
    %v804 = vsub.s32 2, %v803
    %v805 = vrot.slane %v792, %v804
    %v806 = vlaneseq
    %v807 = vshrl.u32 %v806, 7
    %v808 = vsub.s32 3, %v807
    %v809 = vrot.slane %v792, %v808
    %v830 = vunpack.c.l.b16 %v775
    %v831 = vunpack.c.h.b16 %v775
    %v832 = vunpack.c.l.b16 %v776
    %v833 = vunpack.c.h.b16 %v776
    %v834 = vunpack.c.l.b16 %v777
    %v835 = vunpack.c.h.b16 %v777
    %v836 = vunpack.c.l.b16 %v778
    %v837 = vunpack.c.h.b16 %v778
    %v838 = vunpack.c.l.b16 %v779
    %v839 = vunpack.c.h.b16 %v779
    %v840 = vunpack.c.l.b16 %v780
    %v841 = vunpack.c.h.b16 %v780
    %v842 = vunpack.c.l.b16 %v781
    %v843 = vunpack.c.h.b16 %v781
    %v844 = vunpack.c.l.b16 %v782
    %v845 = vunpack.c.h.b16 %v782
    %v846 = vunpack.c.l.b16 %v783
    %v847 = vunpack.c.h.b16 %v783
    %v848 = vunpack.c.l.b16 %v784
    %v849 = vunpack.c.h.b16 %v784
    %v850 = vunpack.c.l.b16 %v785
    %v851 = vunpack.c.h.b16 %v785
    %v852 = vunpack.c.l.b16 %v786
    %v853 = vunpack.c.h.b16 %v786
    %v854 = vunpack.c.l.b16 %v787
    %v855 = vunpack.c.h.b16 %v787
    %v856 = vunpack.c.l.b16 %v788
    %v857 = vunpack.c.h.b16 %v788
    %v858 = vunpack.c.l.b16 %v789
    %v859 = vunpack.c.h.b16 %v789
    %v860 = vunpack.c.l.b16 %v790
    %v861 = vunpack.c.h.b16 %v790
    %v862 = vpack.c.b16 %v834, %v830
    %v863 = vpack.c.b16 %v835, %v831
    %v864 = vpack.c.b16 %v836, %v832
    %v865 = vpack.c.b16 %v837, %v833
    %v866 = vpack.c.b16 %v842, %v838
    %v867 = vpack.c.b16 %v843, %v839
    %v868 = vpack.c.b16 %v844, %v840
    %v869 = vpack.c.b16 %v845, %v841
    %v870 = vpack.c.b16 %v850, %v846
    %v871 = vpack.c.b16 %v851, %v847
    %v872 = vpack.c.b16 %v852, %v848
    %v873 = vpack.c.b16 %v853, %v849
    %v874 = vpack.c.b16 %v858, %v854
    %v875 = vpack.c.b16 %v859, %v855
    %v876 = vpack.c.b16 %v860, %v856
    %v877 = vpack.c.b16 %v861, %v857
    %vm894 = vcmask 523264
    %v896 = vsel %vm894, %v791, 0
    %898 = vmatprep.subr.bf16.mxu0 %v863
    %899 = vmatpush1.bf16.msra.mxu0 %v862
    %900 = vmatprep.subr.bf16.mxu0 %v867
    %901 = vmatpush1.bf16.msra.mxu0 %v866
    %902 = vmatprep.subr.bf16.mxu0 %v871
    %903 = vmatpush1.bf16.msra.mxu0 %v870
    %904 = vmatprep.subr.bf16.mxu0 %v875
    %905 = vmatpush1.bf16.msra.mxu0 %v874
    %906 = vmatprep.subr.bf16.mxu0 0
    %907 = vmatpush1.bf16.msra.mxu0 0
    %908 = vmatprep.subr.bf16.mxu0 0
    %909 = vmatpush1.bf16.msra.mxu0 0
    %910 = vmatprep.subr.bf16.mxu0 0
    %911 = vmatpush1.bf16.msra.mxu0 0
    %912 = vmatprep.subr.bf16.mxu0 0
    %913 = vmatpush1.bf16.msra.mxu0 0
    %914 = vmatprep.subr.bf16.mxu0 0
    %915 = vmatpush1.bf16.msra.mxu0 0
    %916 = vmatprep.subr.bf16.mxu0 0
    %917 = vmatpush1.bf16.msra.mxu0 0
    %918 = vmatprep.subr.bf16.mxu0 0
    %919 = vmatpush1.bf16.msra.mxu0 0
    %920 = vmatprep.subr.bf16.mxu0 0
    %921 = vmatpush1.bf16.msra.mxu0 0
    %922 = vmatprep.subr.bf16.mxu0 0
    %923 = vmatpush1.bf16.msra.mxu0 0
    %924 = vmatprep.subr.bf16.mxu0 0
    %925 = vmatpush1.bf16.msra.mxu0 0
    %926 = vmatprep.subr.bf16.mxu0 0
    %927 = vmatpush1.bf16.msra.mxu0 0
    %928 = vmatprep.subr.bf16.mxu0 0
    %929 = vmatpush1.bf16.msra.mxu0 0
    %930 = vmatprep.mubr.bf16.mxu0 0
    %931 = vmatmul.mubr.bf16.gmra.mrb[0].mxu0 %v896
    %v932 = vpop.f32.mrb[0].mxu0
    %v933 = vadd.f32 %v797, %v932
    %v934 = vpop.f32.mrb[0].mxu0
    %v935 = vadd.f32 %v801, %v934
    %v936 = vpop.f32.mrb[0].mxu0
    %v937 = vadd.f32 %v797, %v936
    %v938 = vpop.f32.mrb[0].mxu0
    %v939 = vadd.f32 %v801, %v938
    %940 = vdwg.mxu0
    %941 = vmatprep.subr.bf16.mxu0 %v865
    %942 = vmatpush1.bf16.msra.mxu0 %v864
    %943 = vmatprep.subr.bf16.mxu0 %v869
    %944 = vmatpush1.bf16.msra.mxu0 %v868
    %945 = vmatprep.subr.bf16.mxu0 %v873
    %946 = vmatpush1.bf16.msra.mxu0 %v872
    %947 = vmatprep.subr.bf16.mxu0 %v877
    %948 = vmatpush1.bf16.msra.mxu0 %v876
    %949 = vmatprep.subr.bf16.mxu0 0
    %950 = vmatpush1.bf16.msra.mxu0 0
    %951 = vmatprep.subr.bf16.mxu0 0
    %952 = vmatpush1.bf16.msra.mxu0 0
    %953 = vmatprep.subr.bf16.mxu0 0
    %954 = vmatpush1.bf16.msra.mxu0 0
    %955 = vmatprep.subr.bf16.mxu0 0
    %956 = vmatpush1.bf16.msra.mxu0 0
    %957 = vmatprep.subr.bf16.mxu0 0
    %958 = vmatpush1.bf16.msra.mxu0 0
    %959 = vmatprep.subr.bf16.mxu0 0
    %960 = vmatpush1.bf16.msra.mxu0 0
    %961 = vmatprep.subr.bf16.mxu0 0
    %962 = vmatpush1.bf16.msra.mxu0 0
    %963 = vmatprep.subr.bf16.mxu0 0
    %964 = vmatpush1.bf16.msra.mxu0 0
    %965 = vmatprep.subr.bf16.mxu0 0
    %966 = vmatpush1.bf16.msra.mxu0 0
    %967 = vmatprep.subr.bf16.mxu0 0
    %968 = vmatpush1.bf16.msra.mxu0 0
    %969 = vmatprep.subr.bf16.mxu0 0
    %970 = vmatpush1.bf16.msra.mxu0 0
    %971 = vmatprep.subr.bf16.mxu0 0
    %972 = vmatpush1.bf16.msra.mxu0 0
    %973 = vmatprep.mubr.bf16.mxu0 0
    %974 = vmatmul.mubr.bf16.gmra.mrb[0].mxu0 %v896
    %v975 = vpop.f32.mrb[0].mxu0
    %v976 = vadd.f32 %v805, %v975
    %v977 = vpop.f32.mrb[0].mxu0
    %v978 = vadd.f32 %v809, %v977
    %v979 = vpop.f32.mrb[0].mxu0
    %v980 = vadd.f32 %v805, %v979
    %v981 = vpop.f32.mrb[0].mxu0
    %v982 = vadd.f32 %v809, %v981
    %983 = vdwg.mxu0
    %v984 = vxor.u32 %v933, 2147483648
    %v985 = vxor.u32 %v937, 2147483648
    %v986 = vmul.f32 %v984, 1.442695
    %v987 = vpow.pop %v986
    %v988 = vmul.f32 %v985, 1.442695
    %v989 = vpow.pop %v988
    %v990 = vadd.f32 %v987, 1.0
    %v991 = vadd.f32 %v989, 1.0
    %v992 = vrcp.pop %v990
    %v993 = vmul.f32 1.0, %v992
    %v994 = vrcp.pop %v991
    %v995 = vmul.f32 1.0, %v994
    %v996 = vxor.u32 %v935, 2147483648
    %v997 = vxor.u32 %v939, 2147483648
    %v998 = vmul.f32 %v996, 1.442695
    %v999 = vpow.pop %v998
    %v1000 = vmul.f32 %v997, 1.442695
    %v1001 = vpow.pop %v1000
    %v1002 = vadd.f32 %v999, 1.0
    %v1003 = vadd.f32 %v1001, 1.0
    %v1004 = vrcp.pop %v1002
    %v1005 = vmul.f32 1.0, %v1004
    %v1006 = vrcp.pop %v1003
    %v1007 = vmul.f32 1.0, %v1006
    %v1008 = vmul.f32 %v993, %v978
    %v1009 = vmul.f32 %v995, %v982
    %v1010 = vadd.f32 %v976, %v1008
    %v1011 = vadd.f32 %v980, %v1009
    %v1012 = vtanh.pop %v1010
    %v1013 = vtanh.pop %v1011
    %v1014 = vsub.f32 1.0, %v1005
    %v1015 = vsub.f32 1.0, %v1007
    %v1016 = vmul.f32 %v1014, %v1012
    %v1017 = vmul.f32 %v1015, %v1013
    %v1018 = vmul.f32 %v1005, %v763
    %v1019 = vmul.f32 %v1007, %v764
    %v1020 = vadd.f32 %v1016, %v1018
    %v1021 = vadd.f32 %v1017, %v1019
    %1022 = vst.msk [vmem:[#allocation15] sm:$0xff] %vm279, %v1020
    %1023 = vst.msk [vmem:[#allocation15 + $0x8] sm:$0xff] %vm279, %v1021
    %v1024 = vld [vmem:[%s16] sm:$0x1]
    %v1025 = vld [vmem:[%s16 + $0x1] sm:$0x1]
    %v1026 = vsel %vm279, %v1020, 0.0
    %1027 = vadd.xlane.f32.xlu0 %v1026
    %v1028 = vpop.xlane.xlu0 %1027
    %v1029 = vsel %vm279, %v1021, 0.0
    %1030 = vadd.xlane.f32.xlu0 %v1029
    %v1031 = vpop.xlane.xlu0 %1030
    %v1032 = vmul.f32 %v1028, %v286
    %v1033 = vmul.f32 %v1031, %v286
    %v1034 = vsub.f32 %v1020, %v1032
    %v1035 = vsub.f32 %v1021, %v1033
    %v1036 = vmul.f32 %v1034, %v1034
    %v1037 = vmul.f32 %v1035, %v1035
    %v1038 = vsel %vm279, %v1036, 0.0
    %1039 = vadd.xlane.f32.xlu0 %v1038
    %v1040 = vpop.xlane.xlu0 %1039
    %v1041 = vsel %vm279, %v1037, 0.0
    %1042 = vadd.xlane.f32.xlu0 %v1041
    %v1043 = vpop.xlane.xlu0 %1042
    %v1044 = vmul.f32 %v1040, %v286
    %v1045 = vmul.f32 %v1043, %v286
    %v1046 = vadd.f32 %v1044, 1e-05
    %v1047 = vadd.f32 %v1045, 1e-05
    %v1048 = vrsqrt.pop %v1046
    %v1049 = vrsqrt.pop %v1047
    %v1050 = vmul.f32 %v1034, %v1048
    %v1051 = vmul.f32 %v1035, %v1049
    %v1052 = vlaneseq
    %v1053 = vshrl.u32 %v1052, 7
    %v1054 = vsub.s32 0, %v1053
    %v1055 = vrot.slane %v1024, %v1054
    %v1056 = vmul.f32 %v1050, %v1055
    %v1057 = vmul.f32 %v1051, %v1055
    %v1058 = vlaneseq
    %v1059 = vshrl.u32 %v1058, 7
    %v1060 = vsub.s32 0, %v1059
    %v1061 = vrot.slane %v1025, %v1060
    %v1062 = vadd.f32 %v1056, %v1061
    %v1063 = vadd.f32 %v1057, %v1061
    %v1064 = vld [vmem:[%s17] sm:$0x1]
    %v1066 = vlaneseq
    %v1067 = vshrl.u32 %v1066, 7
    %v1068 = vsub.s32 0, %v1067
    %v1069 = vrot.slane %v1064, %v1068
    %v1071 = vmul.f32 %v1062, %v1069
    %v1072 = vmul.f32 %v1063, %v1069
    %v1073 = vsel %vm279, %v1071, 0.0
    %1074 = vadd.xlane.f32.xlu0 %v1073
    %v1075 = vpop.xlane.xlu0 %1074
    %v1076 = vsel %vm279, %v1072, 0.0
    %1077 = vadd.xlane.f32.xlu0 %v1076
    %v1078 = vpop.xlane.xlu0 %1077
    %v1079 = vld [vmem:[#allocation2] sm:$0x1]
    %v1081 = vlaneseq
    %v1082 = vshrl.u32 %v1081, 7
    %v1083 = vsub.s32 0, %v1082
    %v1084 = vrot.slane %v1079, %v1083
    %v1086 = vadd.f32 %v1075, %v1084
    %v1087 = vadd.f32 %v1078, %v1084
    %vm1088 = vcmask 7168
    %1089 = vst.msk [vmem:[%s19] sm:$0xff] %vm1088, %v1086
    %1090 = vst.msk [vmem:[%s19 + $0x8] sm:$0xff] %vm1088, %v1087
    // Predicated region
    $region106: #{tpu_custom_call.1} parent=1 // pred_check
      _
    $region107: #{tpu_custom_call.1} parent=1 // pred_check_branch
      %1092 = sbr.rel (0) target = $region109
    $region108: #{tpu_custom_call.1} parent=1 // pred_region
      _
    $region109: #{tpu_custom_call.1} parent=1 // pred_fallthru
      _
    // Predicated region
    $region110: #{tpu_custom_call.1} parent=1 // pred_check
      _
    $region111: #{tpu_custom_call.1} parent=1 // pred_check_branch
      %1094 = sbr.rel (0) target = $region113
    $region112: #{tpu_custom_call.1} parent=1 // pred_region
      %s1096 = ssub.s32 256, 256
      %1097 = vsyncadd [#allocation5], %s1096
      %s1098 = sshll.u32 [#allocation15], 4
      %s1099 = int_to_ptr.vmem [resolvable:$true] %s1098
      %1104 = dma.vmem_to_hbm [thread:$0]  %s1099, 256, %s20, [#allocation5], 128, 128, 8
    $region113: #{tpu_custom_call.1} parent=1 // pred_fallthru
      _
    // Predicated region
    $region114: #{tpu_custom_call.1} parent=1 // pred_check
      _
    $region115: #{tpu_custom_call.1} parent=1 // pred_check_branch
      %1106 = sbr.rel (0) target = $region117
    $region116: #{tpu_custom_call.1} parent=1 // pred_region
      _
    $region117: #{tpu_custom_call.1} parent=1 // pred_fallthru
      _
    // Predicated region
    $region118: #{tpu_custom_call.1} parent=1 // pred_check
      _
    $region119: #{tpu_custom_call.1} parent=1 // pred_check_branch
      %1108 = sbr.rel (0) target = $region121
    $region120: #{tpu_custom_call.1} parent=1 // pred_region
      %1109 = dma.done [#allocation5], 256
    $region121: #{tpu_custom_call.1} parent=1 // pred_fallthru
      _
    %1110 = vsyncpa [#allocation4], 1
    %1111 = vsyncpa [#allocation7], 1
    %1112 = vsyncpa [#allocation10], 1
    %1113 = vsyncpa [#allocation13], 1
    %1114 = vsyncpa [#allocation5], 1

</llo_original>
